<compile_context>
chip_gen: v7x
topology: tpu7x:2x2x1
jax: 0.10.0
libtpu: 0.0.40
codegen_flags: <defaults>
</compile_context>

<pallas_src>
import functools

import numpy as np
import jax
import jax.numpy as jnp
from jax.experimental import pallas as pl
from jax.experimental.pallas import tpu as pltpu

LANE = 128


def _round_up(x, m):
    return ((x + m - 1) // m) * m


# ------------------------------ Pallas kernel ------------------------------- #

def _fused_stem_kernel(p1_ref, w1_ref, s2_ref, w2_ref, s3_ref, w3_ref, aff_ref,
                       o_ref, *, eps, c1, c2, c3):
    """One grid step = one batch image through (conv -> LN -> GELU) x 3 in VMEM."""
    f32 = jnp.float32
    bf16 = jnp.bfloat16
    inv_sqrt2 = 0.7071067811865475

    def ln_gelu(acc, stage, c_true):
        # acc: (rows, 128) f32; padded lanes of acc are exactly zero.
        bias = aff_ref[3 * stage + 0:3 * stage + 1, :]    # (1, 128), zero-padded
        gamma = aff_ref[3 * stage + 1:3 * stage + 2, :]
        beta = aff_ref[3 * stage + 2:3 * stage + 3, :]
        acc = acc + bias                                  # padded lanes stay 0
        inv_c = 1.0 / float(c_true)
        u = jnp.sum(acc, axis=-1, keepdims=True) * inv_c          # true-channel mean
        ex2 = jnp.sum(acc * acc, axis=-1, keepdims=True) * inv_c  # true-channel E[x^2]
        inv = jax.lax.rsqrt(ex2 - u * u + eps)                    # EUP rsqrt
        y = gamma * ((acc - u) * inv) + beta              # padded lanes -> exactly 0
        # exact (erf-based) GELU, matching torch.nn.GELU() default
        return 0.5 * y * (1.0 + jax.lax.erf(y * inv_sqrt2))

    # ---- stage 1: conv as im2col GEMM (patches precomputed in wrapper) ----
    acc1 = jnp.dot(p1_ref[...], w1_ref[...], preferred_element_type=f32)
    h1 = ln_gelu(acc1, 0, c1).astype(bf16)                # (P1, 128)

    # ---- stage 2: in-kernel im2col via static 0/1 selection matmuls ----
    rows2 = s2_ref.shape[1]
    acc2 = jnp.zeros((rows2, LANE), f32)
    for k in range(9):                                    # unrolled; all MXU work
        patch = jnp.dot(s2_ref[k], h1, preferred_element_type=f32)       # (P2, 128)
        acc2 = acc2 + jnp.dot(patch.astype(bf16), w2_ref[k],
                              preferred_element_type=f32)
    h2 = ln_gelu(acc2, 1, c2).astype(bf16)                # (P2, 128)

    # ---- stage 3 ----
    rows3 = s3_ref.shape[1]
    acc3 = jnp.zeros((rows3, LANE), f32)
    for k in range(9):
        patch = jnp.dot(s3_ref[k], h2, preferred_element_type=f32)       # (P3, 128)
        acc3 = acc3 + jnp.dot(patch.astype(bf16), w3_ref[k],
                              preferred_element_type=f32)
    o_ref[...] = ln_gelu(acc3, 2, c3)                     # (P3, 128) f32, lane-dense store


# -------------------------------- glue (JAX) -------------------------------- #

def _im2col_nhwc(x_nhwc, ksize, stride, pad):
    """(N,H,W,C) -> (N, Ho*Wo, k*k*C) with (kh, kw, Cin) flattening order."""
    N, H, W, C = x_nhwc.shape
    xp = jnp.pad(x_nhwc, ((0, 0), (pad, pad), (pad, pad), (0, 0)))
    Ho = (H + 2 * pad - ksize) // stride + 1
    Wo = (W + 2 * pad - ksize) // stride + 1
    cols = []
    for i in range(ksize):
        for j in range(ksize):
            cols.append(xp[:, i:i + stride * Ho:stride, j:j + stride * Wo:stride, :])
    p = jnp.concatenate(cols, axis=-1)                    # (N, Ho, Wo, k*k*C)
    return p.reshape(N, Ho * Wo, ksize * ksize * C), (Ho, Wo)


def _selection_matrices(hi, wi, rows_in_pad, ho, wo, rows_out_pad, stride, pad=1, k=3):
    """Static 0/1 matrices: for each kernel offset, map output pixels <- input pixels."""
    S = np.zeros((k * k, rows_out_pad, rows_in_pad), np.float32)
    for di in range(k):
        for dj in range(k):
            kk = di * k + dj
            for oh in range(ho):
                for ow in range(wo):
                    ih = oh * stride + di - pad
                    iw = ow * stride + dj - pad
                    if 0 <= ih < hi and 0 <= iw < wi:
                        S[kk, oh * wo + ow, ih * wi + iw] = 1.0
    return S


def _per_offset_weights(w_oihw, cin_pad, cout_pad):
    """(Cout, Cin, 3, 3) -> (9, cin_pad, cout_pad), zero-padded."""
    co, ci, kh, kw = w_oihw.shape
    w = jnp.transpose(w_oihw, (2, 3, 1, 0)).reshape(kh * kw, ci, co)   # (9, Cin, Cout)
    return jnp.pad(w, ((0, 0), (0, cin_pad - ci), (0, cout_pad - co)))


def conv_block3_forward(x_nchw, params, *, eps=1e-6):
    """params: list of 3 tuples (w_oihw, bias, ln_weight, ln_bias, stride)."""
    (w1, b1, g1, be1, st1), (w2, b2, g2, be2, st2), (w3, b3, g3, be3, st3) = params
    N = x_nchw.shape[0]
    c1o, c2o, c3o = w1.shape[0], w2.shape[0], w3.shape[0]
    # TODO(synk): channels > 128 would need an extra channel-tiling grid axis.
    assert max(c1o, c2o, c3o) <= LANE

    x = jnp.transpose(x_nchw, (0, 2, 3, 1)).astype(jnp.float32)        # NCHW -> NHWC

    # stage-1 im2col in the wrapper (input comes from HBM anyway)
    patches, (h1o, w1o) = _im2col_nhwc(x, 3, st1, 1)                   # (N, P1, K1)
    K1 = patches.shape[-1]
    p1_rows = h1o * w1o
    p1_rows_pad = _round_up(p1_rows, 8)
    k1_pad = _round_up(K1, LANE)
    patches = jnp.pad(patches, ((0, 0), (0, p1_rows_pad - p1_rows), (0, k1_pad - K1)))
    patches = patches.reshape(N * p1_rows_pad, k1_pad).astype(jnp.bfloat16)

    # downstream spatial dims (k=3, pad=1)
    h2o = (h1o + 2 - 3) // st2 + 1
    w2o = (w1o + 2 - 3) // st2 + 1
    h3o = (h2o + 2 - 3) // st3 + 1
    w3o = (w2o + 2 - 3) // st3 + 1
    p2_rows, p3_rows = h2o * w2o, h3o * w3o
    p2_rows_pad = _round_up(p2_rows, 8)
    p3_rows_pad = _round_up(p3_rows, 8)

    # stage-1 GEMM weight: (kh, kw, Cin, Cout) flattening matches im2col order
    w1_mat = jnp.transpose(w1, (2, 3, 1, 0)).reshape(K1, c1o)
    w1_mat = jnp.pad(w1_mat, ((0, k1_pad - K1), (0, LANE - c1o))).astype(jnp.bfloat16)

    # static selection matrices that realize the in-kernel im2col gathers
    s2 = jnp.asarray(_selection_matrices(h1o, w1o, p1_rows_pad,
                                         h2o, w2o, p2_rows_pad, st2), jnp.bfloat16)
    s3 = jnp.asarray(_selection_matrices(h2o, w2o, p2_rows_pad,
                                         h3o, w3o, p3_rows_pad, st3), jnp.bfloat16)

    w2_off = _per_offset_weights(w2, LANE, LANE).astype(jnp.bfloat16)  # (9,128,128)
    w3_off = _per_offset_weights(w3, LANE, LANE).astype(jnp.bfloat16)

    def _pad_vec(v):
        return jnp.pad(v.astype(jnp.float32), (0, LANE - v.shape[0]))
    affine = jnp.stack([_pad_vec(v)
                        for v in (b1, g1, be1, b2, g2, be2, b3, g3, be3)])  # (9, 128)

    out_flat = pl.pallas_call(
        functools.partial(_fused_stem_kernel, eps=eps, c1=c1o, c2=c2o, c3=c3o),
        out_shape=jax.ShapeDtypeStruct((N * p3_rows_pad, LANE), jnp.float32),
        grid=(N,),
        in_specs=[
            pl.BlockSpec((p1_rows_pad, k1_pad), lambda n: (n, 0)),     # per-batch patches
            pl.BlockSpec((k1_pad, LANE), lambda n: (0, 0)),            # resident weights
            pl.BlockSpec(s2.shape, lambda n: (0, 0, 0)),
            pl.BlockSpec(w2_off.shape, lambda n: (0, 0, 0)),
            pl.BlockSpec(s3.shape, lambda n: (0, 0, 0)),
            pl.BlockSpec(w3_off.shape, lambda n: (0, 0, 0)),
            pl.BlockSpec(affine.shape, lambda n: (0, 0)),
        ],
        out_specs=pl.BlockSpec((p3_rows_pad, LANE), lambda n: (n, 0)),
        compiler_params=pltpu.CompilerParams(
            dimension_semantics=("parallel",)),   # batch across both v7x TCs
    )(patches, w1_mat, s2, w2_off, s3, w3_off, affine)

    out = out_flat.reshape(N, p3_rows_pad, LANE)[:, :p3_rows, :c3o]
    out = out.reshape(N, h3o, w3o, c3o)
    return jnp.transpose(out, (0, 3, 1, 2))               # NHWC -> NCHW


# ---------------------- deterministic parameter init ------------------------ #

def init_conv_block3_params(key, siz=16):
    planes = [(3, siz, 2), (siz, int(siz * 1.5), 2), (int(siz * 1.5), siz * 2, 1)]
    params = []
    for (cin, cout, stride) in planes:
        key, kw, kb = jax.random.split(key, 3)
        fan_in = cin * 3 * 3
        bound = 1.0 / float(np.sqrt(fan_in))
        w = jax.random.uniform(kw, (cout, cin, 3, 3), jnp.float32, -bound, bound)
        b = jax.random.uniform(kb, (cout,), jnp.float32, -bound, bound)
        gamma = jnp.ones((cout,), jnp.float32)   # LayerNorm weight init
        beta = jnp.zeros((cout,), jnp.float32)   # LayerNorm bias init
        params.append((w, b, gamma, beta, stride))
    return params


# ---------------------------- pure-JAX reference ----------------------------- #

def reference_forward(x_nchw, params, eps=1e-6):
    out = x_nchw
    for (w, b, g, be, stride) in params:
        out = jax.lax.conv_general_dilated(
            out, w, (stride, stride), ((1, 1), (1, 1)),
            dimension_numbers=("NCHW", "OIHW", "NCHW"))
        out = out + b[None, :, None, None]
        u = jnp.mean(out, axis=1, keepdims=True)
        s = jnp.mean((out - u) ** 2, axis=1, keepdims=True)
        out = (out - u) / jnp.sqrt(s + eps)
        out = g[None, :, None, None] * out + be[None, :, None, None]
        out = 0.5 * out * (1.0 + jax.lax.erf(out * (1.0 / jnp.sqrt(2.0))))
    return out


# ---------------------------------- main ------------------------------------- #

if __name__ == "__main__":
    key = jax.random.PRNGKey(0)
    key, kx = jax.random.split(key)

    siz = 16                                                # small ConvBlock3(siz=16)
    x = jax.random.normal(kx, (2, 3, 16, 16), jnp.float32)  # NCHW like PyTorch
    params = init_conv_block3_params(key, siz=siz)

    out = conv_block3_forward(x, params)
    out = jax.block_until_ready(out)

    # sanity: shape = (N, 2*siz, H/4, W/4); numerics vs f32 reference.
    # Tolerance is loose (bf16 MXU operands, f32 accumulation) but far tighter
    # than any structural/indexing error would produce.
    assert out.shape == (2, 2 * siz, 4, 4), out.shape
    ref = jax.block_until_ready(reference_forward(x, params))
    max_err = float(jnp.abs(out - ref).max())
    assert jnp.allclose(out, ref, atol=5e-2, rtol=5e-2), max_err

    print("KERNEL_OK")
</pallas_src>

<mosaic_0001>
module attributes {stable_mosaic.version = 11 : i64} {
  func.func @_fused_stem_kernel(%arg0: i32, %arg1: memref<64x128xbf16, #tpu.memory_space<vmem>>, %arg2: memref<128x128xbf16, #tpu.memory_space<vmem>>, %arg3: memref<9x16x64xbf16, #tpu.memory_space<vmem>>, %arg4: memref<9x128x128xbf16, #tpu.memory_space<vmem>>, %arg5: memref<9x16x16xbf16, #tpu.memory_space<vmem>>, %arg6: memref<9x128x128xbf16, #tpu.memory_space<vmem>>, %arg7: memref<9x128xf32, #tpu.memory_space<vmem>>, %arg8: memref<16x128xf32, #tpu.memory_space<vmem>>) attributes {dimension_semantics = [#tpu.dimension_semantics<parallel>], iteration_bounds = array<i64: 2>, scalar_prefetch = 0 : i64, scratch_operands = 0 : i64, tpu.core_type = #tpu.core_type<tc>, window_params = [{transform_indices = @transform_0, window_bounds = array<i64: 64, 128>}, {pipeline_mode = #tpu.pipeline_mode<synchronous>, transform_indices = @transform_1, window_bounds = array<i64: 128, 128>}, {pipeline_mode = #tpu.pipeline_mode<synchronous>, transform_indices = @transform_2, window_bounds = array<i64: 9, 16, 64>}, {pipeline_mode = #tpu.pipeline_mode<synchronous>, transform_indices = @transform_3, window_bounds = array<i64: 9, 128, 128>}, {pipeline_mode = #tpu.pipeline_mode<synchronous>, transform_indices = @transform_4, window_bounds = array<i64: 9, 16, 16>}, {pipeline_mode = #tpu.pipeline_mode<synchronous>, transform_indices = @transform_5, window_bounds = array<i64: 9, 128, 128>}, {pipeline_mode = #tpu.pipeline_mode<synchronous>, transform_indices = @transform_6, window_bounds = array<i64: 9, 128>}, {transform_indices = @transform_7, window_bounds = array<i64: 16, 128>}]} {
    %c0 = arith.constant 0 : index
    %c0_0 = arith.constant 0 : index
    %0 = vector.load %arg1[%c0, %c0_0] : memref<64x128xbf16, #tpu.memory_space<vmem>>, vector<64x128xbf16>
    %c0_1 = arith.constant 0 : index
    %c0_2 = arith.constant 0 : index
    %1 = vector.load %arg2[%c0_1, %c0_2] : memref<128x128xbf16, #tpu.memory_space<vmem>>, vector<128x128xbf16>
    %cst = arith.constant dense<0.000000e+00> : vector<64x128xf32>
    %2 = tpu.matmul %0, %1, %cst {dimension_numbers = #tpu.dot_dimension_numbers<[1], [0], [0], [1], [0, 0, 1, 1], [], []>} : vector<64x128xbf16>, vector<128x128xbf16>, vector<64x128xf32> -> vector<64x128xf32>
    %c0_3 = arith.constant 0 : index
    %c0_4 = arith.constant 0 : index
    %3 = vector.load %arg7[%c0_3, %c0_4] : memref<9x128xf32, #tpu.memory_space<vmem>>, vector<1x128xf32>
    %c1 = arith.constant 1 : index
    %c0_5 = arith.constant 0 : index
    %4 = vector.load %arg7[%c1, %c0_5] : memref<9x128xf32, #tpu.memory_space<vmem>>, vector<1x128xf32>
    %c2 = arith.constant 2 : index
    %c0_6 = arith.constant 0 : index
    %5 = vector.load %arg7[%c2, %c0_6] : memref<9x128xf32, #tpu.memory_space<vmem>>, vector<1x128xf32>
    %6 = vector.broadcast %3 : vector<1x128xf32> to vector<64x128xf32>
    %7 = arith.addf %2, %6 : vector<64x128xf32>
    %cst_7 = arith.constant dense<0.000000e+00> : vector<64xf32>
    %8 = vector.multi_reduction <add>, %7, %cst_7 [1] : vector<64x128xf32> to vector<64xf32>
    %9 = vector.shape_cast %8 : vector<64xf32> to vector<64x1xf32>
    %cst_8 = arith.constant 6.250000e-02 : f32
    %10 = vector.broadcast %cst_8 : f32 to vector<64x1xf32>
    %11 = arith.mulf %9, %10 : vector<64x1xf32>
    %12 = arith.mulf %7, %7 : vector<64x128xf32>
    %cst_9 = arith.constant dense<0.000000e+00> : vector<64xf32>
    %13 = vector.multi_reduction <add>, %12, %cst_9 [1] : vector<64x128xf32> to vector<64xf32>
    %14 = vector.shape_cast %13 : vector<64xf32> to vector<64x1xf32>
    %cst_10 = arith.constant 6.250000e-02 : f32
    %15 = vector.broadcast %cst_10 : f32 to vector<64x1xf32>
    %16 = arith.mulf %14, %15 : vector<64x1xf32>
    %17 = arith.mulf %11, %11 : vector<64x1xf32>
    %18 = arith.subf %16, %17 : vector<64x1xf32>
    %cst_11 = arith.constant 9.99999997E-7 : f32
    %19 = vector.broadcast %cst_11 : f32 to vector<64x1xf32>
    %20 = arith.addf %18, %19 : vector<64x1xf32>
    %21 = math.rsqrt %20 : vector<64x1xf32>
    %22 = vector.broadcast %11 : vector<64x1xf32> to vector<64x128xf32>
    %23 = arith.subf %7, %22 : vector<64x128xf32>
    %24 = vector.broadcast %21 : vector<64x1xf32> to vector<64x128xf32>
    %25 = arith.mulf %23, %24 : vector<64x128xf32>
    %26 = vector.broadcast %4 : vector<1x128xf32> to vector<64x128xf32>
    %27 = arith.mulf %26, %25 : vector<64x128xf32>
    %28 = vector.broadcast %5 : vector<1x128xf32> to vector<64x128xf32>
    %29 = arith.addf %27, %28 : vector<64x128xf32>
    %cst_12 = arith.constant 5.000000e-01 : f32
    %30 = vector.broadcast %cst_12 : f32 to vector<64x128xf32>
    %31 = arith.mulf %30, %29 : vector<64x128xf32>
    %cst_13 = arith.constant 0.707106769 : f32
    %32 = vector.broadcast %cst_13 : f32 to vector<64x128xf32>
    %33 = arith.mulf %29, %32 : vector<64x128xf32>
    %34 = math.erf %33 : vector<64x128xf32>
    %cst_14 = arith.constant 1.000000e+00 : f32
    %35 = vector.broadcast %cst_14 : f32 to vector<64x128xf32>
    %36 = arith.addf %35, %34 : vector<64x128xf32>
    %37 = arith.mulf %31, %36 : vector<64x128xf32>
    %38 = arith.truncf %37 : vector<64x128xf32> to vector<64x128xbf16>
    %cst_15 = arith.constant 0.000000e+00 : f32
    %39 = vector.broadcast %cst_15 : f32 to vector<16x128xf32>
    %c0_16 = arith.constant 0 : index
    %c0_17 = arith.constant 0 : index
    %c0_18 = arith.constant 0 : index
    %40 = vector.load %arg3[%c0_16, %c0_17, %c0_18] : memref<9x16x64xbf16, #tpu.memory_space<vmem>>, vector<1x16x64xbf16>
    %41 = vector.shape_cast %40 : vector<1x16x64xbf16> to vector<16x64xbf16>
    %cst_19 = arith.constant dense<0.000000e+00> : vector<16x128xf32>
    %42 = tpu.matmul %41, %38, %cst_19 {dimension_numbers = #tpu.dot_dimension_numbers<[1], [0], [0], [1], [0, 0, 1, 1], [], []>} : vector<16x64xbf16>, vector<64x128xbf16>, vector<16x128xf32> -> vector<16x128xf32>
    %43 = arith.truncf %42 : vector<16x128xf32> to vector<16x128xbf16>
    %c0_20 = arith.constant 0 : index
    %c0_21 = arith.constant 0 : index
    %c0_22 = arith.constant 0 : index
    %44 = vector.load %arg4[%c0_20, %c0_21, %c0_22] : memref<9x128x128xbf16, #tpu.memory_space<vmem>>, vector<1x128x128xbf16>
    %45 = vector.shape_cast %44 : vector<1x128x128xbf16> to vector<128x128xbf16>
    %cst_23 = arith.constant dense<0.000000e+00> : vector<16x128xf32>
    %46 = tpu.matmul %43, %45, %cst_23 {dimension_numbers = #tpu.dot_dimension_numbers<[1], [0], [0], [1], [0, 0, 1, 1], [], []>} : vector<16x128xbf16>, vector<128x128xbf16>, vector<16x128xf32> -> vector<16x128xf32>
    %47 = arith.addf %39, %46 : vector<16x128xf32>
    %c1_24 = arith.constant 1 : index
    %c0_25 = arith.constant 0 : index
    %c0_26 = arith.constant 0 : index
    %48 = vector.load %arg3[%c1_24, %c0_25, %c0_26] : memref<9x16x64xbf16, #tpu.memory_space<vmem>>, vector<1x16x64xbf16>
    %49 = vector.shape_cast %48 : vector<1x16x64xbf16> to vector<16x64xbf16>
    %cst_27 = arith.constant dense<0.000000e+00> : vector<16x128xf32>
    %50 = tpu.matmul %49, %38, %cst_27 {dimension_numbers = #tpu.dot_dimension_numbers<[1], [0], [0], [1], [0, 0, 1, 1], [], []>} : vector<16x64xbf16>, vector<64x128xbf16>, vector<16x128xf32> -> vector<16x128xf32>
    %51 = arith.truncf %50 : vector<16x128xf32> to vector<16x128xbf16>
    %c1_28 = arith.constant 1 : index
    %c0_29 = arith.constant 0 : index
    %c0_30 = arith.constant 0 : index
    %52 = vector.load %arg4[%c1_28, %c0_29, %c0_30] : memref<9x128x128xbf16, #tpu.memory_space<vmem>>, vector<1x128x128xbf16>
    %53 = vector.shape_cast %52 : vector<1x128x128xbf16> to vector<128x128xbf16>
    %cst_31 = arith.constant dense<0.000000e+00> : vector<16x128xf32>
    %54 = tpu.matmul %51, %53, %cst_31 {dimension_numbers = #tpu.dot_dimension_numbers<[1], [0], [0], [1], [0, 0, 1, 1], [], []>} : vector<16x128xbf16>, vector<128x128xbf16>, vector<16x128xf32> -> vector<16x128xf32>
    %55 = arith.addf %47, %54 : vector<16x128xf32>
    %c2_32 = arith.constant 2 : index
    %c0_33 = arith.constant 0 : index
    %c0_34 = arith.constant 0 : index
    %56 = vector.load %arg3[%c2_32, %c0_33, %c0_34] : memref<9x16x64xbf16, #tpu.memory_space<vmem>>, vector<1x16x64xbf16>
    %57 = vector.shape_cast %56 : vector<1x16x64xbf16> to vector<16x64xbf16>
    %cst_35 = arith.constant dense<0.000000e+00> : vector<16x128xf32>
    %58 = tpu.matmul %57, %38, %cst_35 {dimension_numbers = #tpu.dot_dimension_numbers<[1], [0], [0], [1], [0, 0, 1, 1], [], []>} : vector<16x64xbf16>, vector<64x128xbf16>, vector<16x128xf32> -> vector<16x128xf32>
    %59 = arith.truncf %58 : vector<16x128xf32> to vector<16x128xbf16>
    %c2_36 = arith.constant 2 : index
    %c0_37 = arith.constant 0 : index
    %c0_38 = arith.constant 0 : index
    %60 = vector.load %arg4[%c2_36, %c0_37, %c0_38] : memref<9x128x128xbf16, #tpu.memory_space<vmem>>, vector<1x128x128xbf16>
    %61 = vector.shape_cast %60 : vector<1x128x128xbf16> to vector<128x128xbf16>
    %cst_39 = arith.constant dense<0.000000e+00> : vector<16x128xf32>
    %62 = tpu.matmul %59, %61, %cst_39 {dimension_numbers = #tpu.dot_dimension_numbers<[1], [0], [0], [1], [0, 0, 1, 1], [], []>} : vector<16x128xbf16>, vector<128x128xbf16>, vector<16x128xf32> -> vector<16x128xf32>
    %63 = arith.addf %55, %62 : vector<16x128xf32>
    %c3 = arith.constant 3 : index
    %c0_40 = arith.constant 0 : index
    %c0_41 = arith.constant 0 : index
    %64 = vector.load %arg3[%c3, %c0_40, %c0_41] : memref<9x16x64xbf16, #tpu.memory_space<vmem>>, vector<1x16x64xbf16>
    %65 = vector.shape_cast %64 : vector<1x16x64xbf16> to vector<16x64xbf16>
    %cst_42 = arith.constant dense<0.000000e+00> : vector<16x128xf32>
    %66 = tpu.matmul %65, %38, %cst_42 {dimension_numbers = #tpu.dot_dimension_numbers<[1], [0], [0], [1], [0, 0, 1, 1], [], []>} : vector<16x64xbf16>, vector<64x128xbf16>, vector<16x128xf32> -> vector<16x128xf32>
    %67 = arith.truncf %66 : vector<16x128xf32> to vector<16x128xbf16>
    %c3_43 = arith.constant 3 : index
    %c0_44 = arith.constant 0 : index
    %c0_45 = arith.constant 0 : index
    %68 = vector.load %arg4[%c3_43, %c0_44, %c0_45] : memref<9x128x128xbf16, #tpu.memory_space<vmem>>, vector<1x128x128xbf16>
    %69 = vector.shape_cast %68 : vector<1x128x128xbf16> to vector<128x128xbf16>
    %cst_46 = arith.constant dense<0.000000e+00> : vector<16x128xf32>
    %70 = tpu.matmul %67, %69, %cst_46 {dimension_numbers = #tpu.dot_dimension_numbers<[1], [0], [0], [1], [0, 0, 1, 1], [], []>} : vector<16x128xbf16>, vector<128x128xbf16>, vector<16x128xf32> -> vector<16x128xf32>
    %71 = arith.addf %63, %70 : vector<16x128xf32>
    %c4 = arith.constant 4 : index
    %c0_47 = arith.constant 0 : index
    %c0_48 = arith.constant 0 : index
    %72 = vector.load %arg3[%c4, %c0_47, %c0_48] : memref<9x16x64xbf16, #tpu.memory_space<vmem>>, vector<1x16x64xbf16>
    %73 = vector.shape_cast %72 : vector<1x16x64xbf16> to vector<16x64xbf16>
    %cst_49 = arith.constant dense<0.000000e+00> : vector<16x128xf32>
    %74 = tpu.matmul %73, %38, %cst_49 {dimension_numbers = #tpu.dot_dimension_numbers<[1], [0], [0], [1], [0, 0, 1, 1], [], []>} : vector<16x64xbf16>, vector<64x128xbf16>, vector<16x128xf32> -> vector<16x128xf32>
    %75 = arith.truncf %74 : vector<16x128xf32> to vector<16x128xbf16>
    %c4_50 = arith.constant 4 : index
    %c0_51 = arith.constant 0 : index
    %c0_52 = arith.constant 0 : index
    %76 = vector.load %arg4[%c4_50, %c0_51, %c0_52] : memref<9x128x128xbf16, #tpu.memory_space<vmem>>, vector<1x128x128xbf16>
    %77 = vector.shape_cast %76 : vector<1x128x128xbf16> to vector<128x128xbf16>
    %cst_53 = arith.constant dense<0.000000e+00> : vector<16x128xf32>
    %78 = tpu.matmul %75, %77, %cst_53 {dimension_numbers = #tpu.dot_dimension_numbers<[1], [0], [0], [1], [0, 0, 1, 1], [], []>} : vector<16x128xbf16>, vector<128x128xbf16>, vector<16x128xf32> -> vector<16x128xf32>
    %79 = arith.addf %71, %78 : vector<16x128xf32>
    %c5 = arith.constant 5 : index
    %c0_54 = arith.constant 0 : index
    %c0_55 = arith.constant 0 : index
    %80 = vector.load %arg3[%c5, %c0_54, %c0_55] : memref<9x16x64xbf16, #tpu.memory_space<vmem>>, vector<1x16x64xbf16>
    %81 = vector.shape_cast %80 : vector<1x16x64xbf16> to vector<16x64xbf16>
    %cst_56 = arith.constant dense<0.000000e+00> : vector<16x128xf32>
    %82 = tpu.matmul %81, %38, %cst_56 {dimension_numbers = #tpu.dot_dimension_numbers<[1], [0], [0], [1], [0, 0, 1, 1], [], []>} : vector<16x64xbf16>, vector<64x128xbf16>, vector<16x128xf32> -> vector<16x128xf32>
    %83 = arith.truncf %82 : vector<16x128xf32> to vector<16x128xbf16>
    %c5_57 = arith.constant 5 : index
    %c0_58 = arith.constant 0 : index
    %c0_59 = arith.constant 0 : index
    %84 = vector.load %arg4[%c5_57, %c0_58, %c0_59] : memref<9x128x128xbf16, #tpu.memory_space<vmem>>, vector<1x128x128xbf16>
    %85 = vector.shape_cast %84 : vector<1x128x128xbf16> to vector<128x128xbf16>
    %cst_60 = arith.constant dense<0.000000e+00> : vector<16x128xf32>
    %86 = tpu.matmul %83, %85, %cst_60 {dimension_numbers = #tpu.dot_dimension_numbers<[1], [0], [0], [1], [0, 0, 1, 1], [], []>} : vector<16x128xbf16>, vector<128x128xbf16>, vector<16x128xf32> -> vector<16x128xf32>
    %87 = arith.addf %79, %86 : vector<16x128xf32>
    %c6 = arith.constant 6 : index
    %c0_61 = arith.constant 0 : index
    %c0_62 = arith.constant 0 : index
    %88 = vector.load %arg3[%c6, %c0_61, %c0_62] : memref<9x16x64xbf16, #tpu.memory_space<vmem>>, vector<1x16x64xbf16>
    %89 = vector.shape_cast %88 : vector<1x16x64xbf16> to vector<16x64xbf16>
    %cst_63 = arith.constant dense<0.000000e+00> : vector<16x128xf32>
    %90 = tpu.matmul %89, %38, %cst_63 {dimension_numbers = #tpu.dot_dimension_numbers<[1], [0], [0], [1], [0, 0, 1, 1], [], []>} : vector<16x64xbf16>, vector<64x128xbf16>, vector<16x128xf32> -> vector<16x128xf32>
    %91 = arith.truncf %90 : vector<16x128xf32> to vector<16x128xbf16>
    %c6_64 = arith.constant 6 : index
    %c0_65 = arith.constant 0 : index
    %c0_66 = arith.constant 0 : index
    %92 = vector.load %arg4[%c6_64, %c0_65, %c0_66] : memref<9x128x128xbf16, #tpu.memory_space<vmem>>, vector<1x128x128xbf16>
    %93 = vector.shape_cast %92 : vector<1x128x128xbf16> to vector<128x128xbf16>
    %cst_67 = arith.constant dense<0.000000e+00> : vector<16x128xf32>
    %94 = tpu.matmul %91, %93, %cst_67 {dimension_numbers = #tpu.dot_dimension_numbers<[1], [0], [0], [1], [0, 0, 1, 1], [], []>} : vector<16x128xbf16>, vector<128x128xbf16>, vector<16x128xf32> -> vector<16x128xf32>
    %95 = arith.addf %87, %94 : vector<16x128xf32>
    %c7 = arith.constant 7 : index
    %c0_68 = arith.constant 0 : index
    %c0_69 = arith.constant 0 : index
    %96 = vector.load %arg3[%c7, %c0_68, %c0_69] : memref<9x16x64xbf16, #tpu.memory_space<vmem>>, vector<1x16x64xbf16>
    %97 = vector.shape_cast %96 : vector<1x16x64xbf16> to vector<16x64xbf16>
    %cst_70 = arith.constant dense<0.000000e+00> : vector<16x128xf32>
    %98 = tpu.matmul %97, %38, %cst_70 {dimension_numbers = #tpu.dot_dimension_numbers<[1], [0], [0], [1], [0, 0, 1, 1], [], []>} : vector<16x64xbf16>, vector<64x128xbf16>, vector<16x128xf32> -> vector<16x128xf32>
    %99 = arith.truncf %98 : vector<16x128xf32> to vector<16x128xbf16>
    %c7_71 = arith.constant 7 : index
    %c0_72 = arith.constant 0 : index
    %c0_73 = arith.constant 0 : index
    %100 = vector.load %arg4[%c7_71, %c0_72, %c0_73] : memref<9x128x128xbf16, #tpu.memory_space<vmem>>, vector<1x128x128xbf16>
    %101 = vector.shape_cast %100 : vector<1x128x128xbf16> to vector<128x128xbf16>
    %cst_74 = arith.constant dense<0.000000e+00> : vector<16x128xf32>
    %102 = tpu.matmul %99, %101, %cst_74 {dimension_numbers = #tpu.dot_dimension_numbers<[1], [0], [0], [1], [0, 0, 1, 1], [], []>} : vector<16x128xbf16>, vector<128x128xbf16>, vector<16x128xf32> -> vector<16x128xf32>
    %103 = arith.addf %95, %102 : vector<16x128xf32>
    %c8 = arith.constant 8 : index
    %c0_75 = arith.constant 0 : index
    %c0_76 = arith.constant 0 : index
    %104 = vector.load %arg3[%c8, %c0_75, %c0_76] : memref<9x16x64xbf16, #tpu.memory_space<vmem>>, vector<1x16x64xbf16>
    %105 = vector.shape_cast %104 : vector<1x16x64xbf16> to vector<16x64xbf16>
    %cst_77 = arith.constant dense<0.000000e+00> : vector<16x128xf32>
    %106 = tpu.matmul %105, %38, %cst_77 {dimension_numbers = #tpu.dot_dimension_numbers<[1], [0], [0], [1], [0, 0, 1, 1], [], []>} : vector<16x64xbf16>, vector<64x128xbf16>, vector<16x128xf32> -> vector<16x128xf32>
    %107 = arith.truncf %106 : vector<16x128xf32> to vector<16x128xbf16>
    %c8_78 = arith.constant 8 : index
    %c0_79 = arith.constant 0 : index
    %c0_80 = arith.constant 0 : index
    %108 = vector.load %arg4[%c8_78, %c0_79, %c0_80] : memref<9x128x128xbf16, #tpu.memory_space<vmem>>, vector<1x128x128xbf16>
    %109 = vector.shape_cast %108 : vector<1x128x128xbf16> to vector<128x128xbf16>
    %cst_81 = arith.constant dense<0.000000e+00> : vector<16x128xf32>
    %110 = tpu.matmul %107, %109, %cst_81 {dimension_numbers = #tpu.dot_dimension_numbers<[1], [0], [0], [1], [0, 0, 1, 1], [], []>} : vector<16x128xbf16>, vector<128x128xbf16>, vector<16x128xf32> -> vector<16x128xf32>
    %111 = arith.addf %103, %110 : vector<16x128xf32>
    %c3_82 = arith.constant 3 : index
    %c0_83 = arith.constant 0 : index
    %112 = vector.load %arg7[%c3_82, %c0_83] : memref<9x128xf32, #tpu.memory_space<vmem>>, vector<1x128xf32>
    %c4_84 = arith.constant 4 : index
    %c0_85 = arith.constant 0 : index
    %113 = vector.load %arg7[%c4_84, %c0_85] : memref<9x128xf32, #tpu.memory_space<vmem>>, vector<1x128xf32>
    %c5_86 = arith.constant 5 : index
    %c0_87 = arith.constant 0 : index
    %114 = vector.load %arg7[%c5_86, %c0_87] : memref<9x128xf32, #tpu.memory_space<vmem>>, vector<1x128xf32>
    %115 = vector.broadcast %112 : vector<1x128xf32> to vector<16x128xf32>
    %116 = arith.addf %111, %115 : vector<16x128xf32>
    %cst_88 = arith.constant dense<0.000000e+00> : vector<16xf32>
    %117 = vector.multi_reduction <add>, %116, %cst_88 [1] : vector<16x128xf32> to vector<16xf32>
    %118 = vector.shape_cast %117 : vector<16xf32> to vector<16x1xf32>
    %cst_89 = arith.constant 0.0416666679 : f32
    %119 = vector.broadcast %cst_89 : f32 to vector<16x1xf32>
    %120 = arith.mulf %118, %119 : vector<16x1xf32>
    %121 = arith.mulf %116, %116 : vector<16x128xf32>
    %cst_90 = arith.constant dense<0.000000e+00> : vector<16xf32>
    %122 = vector.multi_reduction <add>, %121, %cst_90 [1] : vector<16x128xf32> to vector<16xf32>
    %123 = vector.shape_cast %122 : vector<16xf32> to vector<16x1xf32>
    %cst_91 = arith.constant 0.0416666679 : f32
    %124 = vector.broadcast %cst_91 : f32 to vector<16x1xf32>
    %125 = arith.mulf %123, %124 : vector<16x1xf32>
    %126 = arith.mulf %120, %120 : vector<16x1xf32>
    %127 = arith.subf %125, %126 : vector<16x1xf32>
    %cst_92 = arith.constant 9.99999997E-7 : f32
    %128 = vector.broadcast %cst_92 : f32 to vector<16x1xf32>
    %129 = arith.addf %127, %128 : vector<16x1xf32>
    %130 = math.rsqrt %129 : vector<16x1xf32>
    %131 = vector.broadcast %120 : vector<16x1xf32> to vector<16x128xf32>
    %132 = arith.subf %116, %131 : vector<16x128xf32>
    %133 = vector.broadcast %130 : vector<16x1xf32> to vector<16x128xf32>
    %134 = arith.mulf %132, %133 : vector<16x128xf32>
    %135 = vector.broadcast %113 : vector<1x128xf32> to vector<16x128xf32>
    %136 = arith.mulf %135, %134 : vector<16x128xf32>
    %137 = vector.broadcast %114 : vector<1x128xf32> to vector<16x128xf32>
    %138 = arith.addf %136, %137 : vector<16x128xf32>
    %cst_93 = arith.constant 5.000000e-01 : f32
    %139 = vector.broadcast %cst_93 : f32 to vector<16x128xf32>
    %140 = arith.mulf %139, %138 : vector<16x128xf32>
    %cst_94 = arith.constant 0.707106769 : f32
    %141 = vector.broadcast %cst_94 : f32 to vector<16x128xf32>
    %142 = arith.mulf %138, %141 : vector<16x128xf32>
    %143 = math.erf %142 : vector<16x128xf32>
    %cst_95 = arith.constant 1.000000e+00 : f32
    %144 = vector.broadcast %cst_95 : f32 to vector<16x128xf32>
    %145 = arith.addf %144, %143 : vector<16x128xf32>
    %146 = arith.mulf %140, %145 : vector<16x128xf32>
    %147 = arith.truncf %146 : vector<16x128xf32> to vector<16x128xbf16>
    %cst_96 = arith.constant 0.000000e+00 : f32
    %148 = vector.broadcast %cst_96 : f32 to vector<16x128xf32>
    %c0_97 = arith.constant 0 : index
    %c0_98 = arith.constant 0 : index
    %c0_99 = arith.constant 0 : index
    %149 = vector.load %arg5[%c0_97, %c0_98, %c0_99] : memref<9x16x16xbf16, #tpu.memory_space<vmem>>, vector<1x16x16xbf16>
    %150 = vector.shape_cast %149 : vector<1x16x16xbf16> to vector<16x16xbf16>
    %cst_100 = arith.constant dense<0.000000e+00> : vector<16x128xf32>
    %151 = tpu.matmul %150, %147, %cst_100 {dimension_numbers = #tpu.dot_dimension_numbers<[1], [0], [0], [1], [0, 0, 1, 1], [], []>} : vector<16x16xbf16>, vector<16x128xbf16>, vector<16x128xf32> -> vector<16x128xf32>
    %152 = arith.truncf %151 : vector<16x128xf32> to vector<16x128xbf16>
    %c0_101 = arith.constant 0 : index
    %c0_102 = arith.constant 0 : index
    %c0_103 = arith.constant 0 : index
    %153 = vector.load %arg6[%c0_101, %c0_102, %c0_103] : memref<9x128x128xbf16, #tpu.memory_space<vmem>>, vector<1x128x128xbf16>
    %154 = vector.shape_cast %153 : vector<1x128x128xbf16> to vector<128x128xbf16>
    %cst_104 = arith.constant dense<0.000000e+00> : vector<16x128xf32>
    %155 = tpu.matmul %152, %154, %cst_104 {dimension_numbers = #tpu.dot_dimension_numbers<[1], [0], [0], [1], [0, 0, 1, 1], [], []>} : vector<16x128xbf16>, vector<128x128xbf16>, vector<16x128xf32> -> vector<16x128xf32>
    %156 = arith.addf %148, %155 : vector<16x128xf32>
    %c1_105 = arith.constant 1 : index
    %c0_106 = arith.constant 0 : index
    %c0_107 = arith.constant 0 : index
    %157 = vector.load %arg5[%c1_105, %c0_106, %c0_107] : memref<9x16x16xbf16, #tpu.memory_space<vmem>>, vector<1x16x16xbf16>
    %158 = vector.shape_cast %157 : vector<1x16x16xbf16> to vector<16x16xbf16>
    %cst_108 = arith.constant dense<0.000000e+00> : vector<16x128xf32>
    %159 = tpu.matmul %158, %147, %cst_108 {dimension_numbers = #tpu.dot_dimension_numbers<[1], [0], [0], [1], [0, 0, 1, 1], [], []>} : vector<16x16xbf16>, vector<16x128xbf16>, vector<16x128xf32> -> vector<16x128xf32>
    %160 = arith.truncf %159 : vector<16x128xf32> to vector<16x128xbf16>
    %c1_109 = arith.constant 1 : index
    %c0_110 = arith.constant 0 : index
    %c0_111 = arith.constant 0 : index
    %161 = vector.load %arg6[%c1_109, %c0_110, %c0_111] : memref<9x128x128xbf16, #tpu.memory_space<vmem>>, vector<1x128x128xbf16>
    %162 = vector.shape_cast %161 : vector<1x128x128xbf16> to vector<128x128xbf16>
    %cst_112 = arith.constant dense<0.000000e+00> : vector<16x128xf32>
    %163 = tpu.matmul %160, %162, %cst_112 {dimension_numbers = #tpu.dot_dimension_numbers<[1], [0], [0], [1], [0, 0, 1, 1], [], []>} : vector<16x128xbf16>, vector<128x128xbf16>, vector<16x128xf32> -> vector<16x128xf32>
    %164 = arith.addf %156, %163 : vector<16x128xf32>
    %c2_113 = arith.constant 2 : index
    %c0_114 = arith.constant 0 : index
    %c0_115 = arith.constant 0 : index
    %165 = vector.load %arg5[%c2_113, %c0_114, %c0_115] : memref<9x16x16xbf16, #tpu.memory_space<vmem>>, vector<1x16x16xbf16>
    %166 = vector.shape_cast %165 : vector<1x16x16xbf16> to vector<16x16xbf16>
    %cst_116 = arith.constant dense<0.000000e+00> : vector<16x128xf32>
    %167 = tpu.matmul %166, %147, %cst_116 {dimension_numbers = #tpu.dot_dimension_numbers<[1], [0], [0], [1], [0, 0, 1, 1], [], []>} : vector<16x16xbf16>, vector<16x128xbf16>, vector<16x128xf32> -> vector<16x128xf32>
    %168 = arith.truncf %167 : vector<16x128xf32> to vector<16x128xbf16>
    %c2_117 = arith.constant 2 : index
    %c0_118 = arith.constant 0 : index
    %c0_119 = arith.constant 0 : index
    %169 = vector.load %arg6[%c2_117, %c0_118, %c0_119] : memref<9x128x128xbf16, #tpu.memory_space<vmem>>, vector<1x128x128xbf16>
    %170 = vector.shape_cast %169 : vector<1x128x128xbf16> to vector<128x128xbf16>
    %cst_120 = arith.constant dense<0.000000e+00> : vector<16x128xf32>
    %171 = tpu.matmul %168, %170, %cst_120 {dimension_numbers = #tpu.dot_dimension_numbers<[1], [0], [0], [1], [0, 0, 1, 1], [], []>} : vector<16x128xbf16>, vector<128x128xbf16>, vector<16x128xf32> -> vector<16x128xf32>
    %172 = arith.addf %164, %171 : vector<16x128xf32>
    %c3_121 = arith.constant 3 : index
    %c0_122 = arith.constant 0 : index
    %c0_123 = arith.constant 0 : index
    %173 = vector.load %arg5[%c3_121, %c0_122, %c0_123] : memref<9x16x16xbf16, #tpu.memory_space<vmem>>, vector<1x16x16xbf16>
    %174 = vector.shape_cast %173 : vector<1x16x16xbf16> to vector<16x16xbf16>
    %cst_124 = arith.constant dense<0.000000e+00> : vector<16x128xf32>
    %175 = tpu.matmul %174, %147, %cst_124 {dimension_numbers = #tpu.dot_dimension_numbers<[1], [0], [0], [1], [0, 0, 1, 1], [], []>} : vector<16x16xbf16>, vector<16x128xbf16>, vector<16x128xf32> -> vector<16x128xf32>
    %176 = arith.truncf %175 : vector<16x128xf32> to vector<16x128xbf16>
    %c3_125 = arith.constant 3 : index
    %c0_126 = arith.constant 0 : index
    %c0_127 = arith.constant 0 : index
    %177 = vector.load %arg6[%c3_125, %c0_126, %c0_127] : memref<9x128x128xbf16, #tpu.memory_space<vmem>>, vector<1x128x128xbf16>
    %178 = vector.shape_cast %177 : vector<1x128x128xbf16> to vector<128x128xbf16>
    %cst_128 = arith.constant dense<0.000000e+00> : vector<16x128xf32>
    %179 = tpu.matmul %176, %178, %cst_128 {dimension_numbers = #tpu.dot_dimension_numbers<[1], [0], [0], [1], [0, 0, 1, 1], [], []>} : vector<16x128xbf16>, vector<128x128xbf16>, vector<16x128xf32> -> vector<16x128xf32>
    %180 = arith.addf %172, %179 : vector<16x128xf32>
    %c4_129 = arith.constant 4 : index
    %c0_130 = arith.constant 0 : index
    %c0_131 = arith.constant 0 : index
    %181 = vector.load %arg5[%c4_129, %c0_130, %c0_131] : memref<9x16x16xbf16, #tpu.memory_space<vmem>>, vector<1x16x16xbf16>
    %182 = vector.shape_cast %181 : vector<1x16x16xbf16> to vector<16x16xbf16>
    %cst_132 = arith.constant dense<0.000000e+00> : vector<16x128xf32>
    %183 = tpu.matmul %182, %147, %cst_132 {dimension_numbers = #tpu.dot_dimension_numbers<[1], [0], [0], [1], [0, 0, 1, 1], [], []>} : vector<16x16xbf16>, vector<16x128xbf16>, vector<16x128xf32> -> vector<16x128xf32>
    %184 = arith.truncf %183 : vector<16x128xf32> to vector<16x128xbf16>
    %c4_133 = arith.constant 4 : index
    %c0_134 = arith.constant 0 : index
    %c0_135 = arith.constant 0 : index
    %185 = vector.load %arg6[%c4_133, %c0_134, %c0_135] : memref<9x128x128xbf16, #tpu.memory_space<vmem>>, vector<1x128x128xbf16>
    %186 = vector.shape_cast %185 : vector<1x128x128xbf16> to vector<128x128xbf16>
    %cst_136 = arith.constant dense<0.000000e+00> : vector<16x128xf32>
    %187 = tpu.matmul %184, %186, %cst_136 {dimension_numbers = #tpu.dot_dimension_numbers<[1], [0], [0], [1], [0, 0, 1, 1], [], []>} : vector<16x128xbf16>, vector<128x128xbf16>, vector<16x128xf32> -> vector<16x128xf32>
    %188 = arith.addf %180, %187 : vector<16x128xf32>
    %c5_137 = arith.constant 5 : index
    %c0_138 = arith.constant 0 : index
    %c0_139 = arith.constant 0 : index
    %189 = vector.load %arg5[%c5_137, %c0_138, %c0_139] : memref<9x16x16xbf16, #tpu.memory_space<vmem>>, vector<1x16x16xbf16>
    %190 = vector.shape_cast %189 : vector<1x16x16xbf16> to vector<16x16xbf16>
    %cst_140 = arith.constant dense<0.000000e+00> : vector<16x128xf32>
    %191 = tpu.matmul %190, %147, %cst_140 {dimension_numbers = #tpu.dot_dimension_numbers<[1], [0], [0], [1], [0, 0, 1, 1], [], []>} : vector<16x16xbf16>, vector<16x128xbf16>, vector<16x128xf32> -> vector<16x128xf32>
    %192 = arith.truncf %191 : vector<16x128xf32> to vector<16x128xbf16>
    %c5_141 = arith.constant 5 : index
    %c0_142 = arith.constant 0 : index
    %c0_143 = arith.constant 0 : index
    %193 = vector.load %arg6[%c5_141, %c0_142, %c0_143] : memref<9x128x128xbf16, #tpu.memory_space<vmem>>, vector<1x128x128xbf16>
    %194 = vector.shape_cast %193 : vector<1x128x128xbf16> to vector<128x128xbf16>
    %cst_144 = arith.constant dense<0.000000e+00> : vector<16x128xf32>
    %195 = tpu.matmul %192, %194, %cst_144 {dimension_numbers = #tpu.dot_dimension_numbers<[1], [0], [0], [1], [0, 0, 1, 1], [], []>} : vector<16x128xbf16>, vector<128x128xbf16>, vector<16x128xf32> -> vector<16x128xf32>
    %196 = arith.addf %188, %195 : vector<16x128xf32>
    %c6_145 = arith.constant 6 : index
    %c0_146 = arith.constant 0 : index
    %c0_147 = arith.constant 0 : index
    %197 = vector.load %arg5[%c6_145, %c0_146, %c0_147] : memref<9x16x16xbf16, #tpu.memory_space<vmem>>, vector<1x16x16xbf16>
    %198 = vector.shape_cast %197 : vector<1x16x16xbf16> to vector<16x16xbf16>
    %cst_148 = arith.constant dense<0.000000e+00> : vector<16x128xf32>
    %199 = tpu.matmul %198, %147, %cst_148 {dimension_numbers = #tpu.dot_dimension_numbers<[1], [0], [0], [1], [0, 0, 1, 1], [], []>} : vector<16x16xbf16>, vector<16x128xbf16>, vector<16x128xf32> -> vector<16x128xf32>
    %200 = arith.truncf %199 : vector<16x128xf32> to vector<16x128xbf16>
    %c6_149 = arith.constant 6 : index
    %c0_150 = arith.constant 0 : index
    %c0_151 = arith.constant 0 : index
    %201 = vector.load %arg6[%c6_149, %c0_150, %c0_151] : memref<9x128x128xbf16, #tpu.memory_space<vmem>>, vector<1x128x128xbf16>
    %202 = vector.shape_cast %201 : vector<1x128x128xbf16> to vector<128x128xbf16>
    %cst_152 = arith.constant dense<0.000000e+00> : vector<16x128xf32>
    %203 = tpu.matmul %200, %202, %cst_152 {dimension_numbers = #tpu.dot_dimension_numbers<[1], [0], [0], [1], [0, 0, 1, 1], [], []>} : vector<16x128xbf16>, vector<128x128xbf16>, vector<16x128xf32> -> vector<16x128xf32>
    %204 = arith.addf %196, %203 : vector<16x128xf32>
    %c7_153 = arith.constant 7 : index
    %c0_154 = arith.constant 0 : index
    %c0_155 = arith.constant 0 : index
    %205 = vector.load %arg5[%c7_153, %c0_154, %c0_155] : memref<9x16x16xbf16, #tpu.memory_space<vmem>>, vector<1x16x16xbf16>
    %206 = vector.shape_cast %205 : vector<1x16x16xbf16> to vector<16x16xbf16>
    %cst_156 = arith.constant dense<0.000000e+00> : vector<16x128xf32>
    %207 = tpu.matmul %206, %147, %cst_156 {dimension_numbers = #tpu.dot_dimension_numbers<[1], [0], [0], [1], [0, 0, 1, 1], [], []>} : vector<16x16xbf16>, vector<16x128xbf16>, vector<16x128xf32> -> vector<16x128xf32>
    %208 = arith.truncf %207 : vector<16x128xf32> to vector<16x128xbf16>
    %c7_157 = arith.constant 7 : index
    %c0_158 = arith.constant 0 : index
    %c0_159 = arith.constant 0 : index
    %209 = vector.load %arg6[%c7_157, %c0_158, %c0_159] : memref<9x128x128xbf16, #tpu.memory_space<vmem>>, vector<1x128x128xbf16>
    %210 = vector.shape_cast %209 : vector<1x128x128xbf16> to vector<128x128xbf16>
    %cst_160 = arith.constant dense<0.000000e+00> : vector<16x128xf32>
    %211 = tpu.matmul %208, %210, %cst_160 {dimension_numbers = #tpu.dot_dimension_numbers<[1], [0], [0], [1], [0, 0, 1, 1], [], []>} : vector<16x128xbf16>, vector<128x128xbf16>, vector<16x128xf32> -> vector<16x128xf32>
    %212 = arith.addf %204, %211 : vector<16x128xf32>
    %c8_161 = arith.constant 8 : index
    %c0_162 = arith.constant 0 : index
    %c0_163 = arith.constant 0 : index
    %213 = vector.load %arg5[%c8_161, %c0_162, %c0_163] : memref<9x16x16xbf16, #tpu.memory_space<vmem>>, vector<1x16x16xbf16>
    %214 = vector.shape_cast %213 : vector<1x16x16xbf16> to vector<16x16xbf16>
    %cst_164 = arith.constant dense<0.000000e+00> : vector<16x128xf32>
    %215 = tpu.matmul %214, %147, %cst_164 {dimension_numbers = #tpu.dot_dimension_numbers<[1], [0], [0], [1], [0, 0, 1, 1], [], []>} : vector<16x16xbf16>, vector<16x128xbf16>, vector<16x128xf32> -> vector<16x128xf32>
    %216 = arith.truncf %215 : vector<16x128xf32> to vector<16x128xbf16>
    %c8_165 = arith.constant 8 : index
    %c0_166 = arith.constant 0 : index
    %c0_167 = arith.constant 0 : index
    %217 = vector.load %arg6[%c8_165, %c0_166, %c0_167] : memref<9x128x128xbf16, #tpu.memory_space<vmem>>, vector<1x128x128xbf16>
    %218 = vector.shape_cast %217 : vector<1x128x128xbf16> to vector<128x128xbf16>
    %cst_168 = arith.constant dense<0.000000e+00> : vector<16x128xf32>
    %219 = tpu.matmul %216, %218, %cst_168 {dimension_numbers = #tpu.dot_dimension_numbers<[1], [0], [0], [1], [0, 0, 1, 1], [], []>} : vector<16x128xbf16>, vector<128x128xbf16>, vector<16x128xf32> -> vector<16x128xf32>
    %220 = arith.addf %212, %219 : vector<16x128xf32>
    %c6_169 = arith.constant 6 : index
    %c0_170 = arith.constant 0 : index
    %221 = vector.load %arg7[%c6_169, %c0_170] : memref<9x128xf32, #tpu.memory_space<vmem>>, vector<1x128xf32>
    %c7_171 = arith.constant 7 : index
    %c0_172 = arith.constant 0 : index
    %222 = vector.load %arg7[%c7_171, %c0_172] : memref<9x128xf32, #tpu.memory_space<vmem>>, vector<1x128xf32>
    %c8_173 = arith.constant 8 : index
    %c0_174 = arith.constant 0 : index
    %223 = vector.load %arg7[%c8_173, %c0_174] : memref<9x128xf32, #tpu.memory_space<vmem>>, vector<1x128xf32>
    %224 = vector.broadcast %221 : vector<1x128xf32> to vector<16x128xf32>
    %225 = arith.addf %220, %224 : vector<16x128xf32>
    %cst_175 = arith.constant dense<0.000000e+00> : vector<16xf32>
    %226 = vector.multi_reduction <add>, %225, %cst_175 [1] : vector<16x128xf32> to vector<16xf32>
    %227 = vector.shape_cast %226 : vector<16xf32> to vector<16x1xf32>
    %cst_176 = arith.constant 3.125000e-02 : f32
    %228 = vector.broadcast %cst_176 : f32 to vector<16x1xf32>
    %229 = arith.mulf %227, %228 : vector<16x1xf32>
    %230 = arith.mulf %225, %225 : vector<16x128xf32>
    %cst_177 = arith.constant dense<0.000000e+00> : vector<16xf32>
    %231 = vector.multi_reduction <add>, %230, %cst_177 [1] : vector<16x128xf32> to vector<16xf32>
    %232 = vector.shape_cast %231 : vector<16xf32> to vector<16x1xf32>
    %cst_178 = arith.constant 3.125000e-02 : f32
    %233 = vector.broadcast %cst_178 : f32 to vector<16x1xf32>
    %234 = arith.mulf %232, %233 : vector<16x1xf32>
    %235 = arith.mulf %229, %229 : vector<16x1xf32>
    %236 = arith.subf %234, %235 : vector<16x1xf32>
    %cst_179 = arith.constant 9.99999997E-7 : f32
    %237 = vector.broadcast %cst_179 : f32 to vector<16x1xf32>
    %238 = arith.addf %236, %237 : vector<16x1xf32>
    %239 = math.rsqrt %238 : vector<16x1xf32>
    %240 = vector.broadcast %229 : vector<16x1xf32> to vector<16x128xf32>
    %241 = arith.subf %225, %240 : vector<16x128xf32>
    %242 = vector.broadcast %239 : vector<16x1xf32> to vector<16x128xf32>
    %243 = arith.mulf %241, %242 : vector<16x128xf32>
    %244 = vector.broadcast %222 : vector<1x128xf32> to vector<16x128xf32>
    %245 = arith.mulf %244, %243 : vector<16x128xf32>
    %246 = vector.broadcast %223 : vector<1x128xf32> to vector<16x128xf32>
    %247 = arith.addf %245, %246 : vector<16x128xf32>
    %cst_180 = arith.constant 5.000000e-01 : f32
    %248 = vector.broadcast %cst_180 : f32 to vector<16x128xf32>
    %249 = arith.mulf %248, %247 : vector<16x128xf32>
    %cst_181 = arith.constant 0.707106769 : f32
    %250 = vector.broadcast %cst_181 : f32 to vector<16x128xf32>
    %251 = arith.mulf %247, %250 : vector<16x128xf32>
    %252 = math.erf %251 : vector<16x128xf32>
    %cst_182 = arith.constant 1.000000e+00 : f32
    %253 = vector.broadcast %cst_182 : f32 to vector<16x128xf32>
    %254 = arith.addf %253, %252 : vector<16x128xf32>
    %255 = arith.mulf %249, %254 : vector<16x128xf32>
    %c0_183 = arith.constant 0 : index
    %c0_184 = arith.constant 0 : index
    %256 = vector.load %arg8[%c0_183, %c0_184] : memref<16x128xf32, #tpu.memory_space<vmem>>, vector<16x128xf32>
    tpu.vector_store %arg8[%c0_183, %c0_184], %255 {strides = array<i32>} : memref<16x128xf32, #tpu.memory_space<vmem>>, vector<16x128xf32>,
    return
  }
  func.func @transform_0(%arg0: i32) -> (i32, i32) {
    %c0_i32 = arith.constant 0 : i32
    %c0_i32_0 = arith.constant 0 : i32
    return %arg0, %c0_i32 : i32, i32
  }
  func.func @transform_1(%arg0: i32) -> (i32, i32) {
    %c0_i32 = arith.constant 0 : i32
    %c0_i32_0 = arith.constant 0 : i32
    %c0_i32_1 = arith.constant 0 : i32
    return %c0_i32, %c0_i32_0 : i32, i32
  }
  func.func @transform_2(%arg0: i32) -> (i32, i32, i32) {
    %c0_i32 = arith.constant 0 : i32
    %c0_i32_0 = arith.constant 0 : i32
    %c0_i32_1 = arith.constant 0 : i32
    %c0_i32_2 = arith.constant 0 : i32
    return %c0_i32, %c0_i32_0, %c0_i32_1 : i32, i32, i32
  }
  func.func @transform_3(%arg0: i32) -> (i32, i32, i32) {
    %c0_i32 = arith.constant 0 : i32
    %c0_i32_0 = arith.constant 0 : i32
    %c0_i32_1 = arith.constant 0 : i32
    %c0_i32_2 = arith.constant 0 : i32
    return %c0_i32, %c0_i32_0, %c0_i32_1 : i32, i32, i32
  }
  func.func @transform_4(%arg0: i32) -> (i32, i32, i32) {
    %c0_i32 = arith.constant 0 : i32
    %c0_i32_0 = arith.constant 0 : i32
    %c0_i32_1 = arith.constant 0 : i32
    %c0_i32_2 = arith.constant 0 : i32
    return %c0_i32, %c0_i32_0, %c0_i32_1 : i32, i32, i32
  }
  func.func @transform_5(%arg0: i32) -> (i32, i32, i32) {
    %c0_i32 = arith.constant 0 : i32
    %c0_i32_0 = arith.constant 0 : i32
    %c0_i32_1 = arith.constant 0 : i32
    %c0_i32_2 = arith.constant 0 : i32
    return %c0_i32, %c0_i32_0, %c0_i32_1 : i32, i32, i32
  }
  func.func @transform_6(%arg0: i32) -> (i32, i32) {
    %c0_i32 = arith.constant 0 : i32
    %c0_i32_0 = arith.constant 0 : i32
    %c0_i32_1 = arith.constant 0 : i32
    return %c0_i32, %c0_i32_0 : i32, i32
  }
  func.func @transform_7(%arg0: i32) -> (i32, i32) {
    %c0_i32 = arith.constant 0 : i32
    %c0_i32_0 = arith.constant 0 : i32
    return %arg0, %c0_i32 : i32, i32
  }
}

</mosaic_0001>

<llo_original>
// kernel: tpu_custom_call.1
$region0: #{tpu_custom_call.1}
  #allocation0 [shape = 'u32[]', space=smem, size = 0x4, offset = 0x4, fixed_abs, tag = 'smem constant byte address 0x4 - core index']
  #allocation1 [shape = 'u32[144,128]{1,0:T(1,128)}', space=vmem, size = 0x12000, scoped, tag = 'internal scratch']
  %s0 = inlined_call_operand.hbm [shape: bf16[128,128], index: 0, kind: input, shape index: {}]
  %s1 = inlined_call_operand.hbm [shape: bf16[128,128], index: 1, kind: input, shape index: {}]
  %s2 = inlined_call_operand.hbm [shape: bf16[9,16,64], index: 2, kind: input, shape index: {}]
  %s3 = inlined_call_operand.hbm [shape: bf16[9,128,128], index: 3, kind: input, shape index: {}]
  %s4 = inlined_call_operand.hbm [shape: bf16[9,16,16], index: 4, kind: input, shape index: {}]
  %s5 = inlined_call_operand.hbm [shape: bf16[9,128,128], index: 5, kind: input, shape index: {}]
  %s6 = inlined_call_operand.vmem [shape: f32[9,128], index: 6, kind: input, shape index: {}]
  %s7 = inlined_call_operand.hbm [shape: f32[32,128], index: 7, kind: output, shape index: {}]
  %s8 = sld [smem:[#allocation0]]
  $region85: #{tpu_custom_call.1} parent=0
    _
  %s10 = ssub.s32 1, %s8
  %s11 = scalar_select 0, %s10, %s8
  $region1: #{tpu_custom_call.1} parent=0
    #allocation2 [shape = 'u8[32768]{0}', space=vmem, size = 0x8000, scoped, tag = 'input window, operand 0']
    #allocation3 [shape = 's32[2]{0}', space=sflag, size = 0x8, scoped, tag = 'scoped memory for tpu_custom_call.1']
    #allocation4 [shape = 's32[2]{0}', space=sflag, size = 0x8, scoped, tag = 'scoped memory for tpu_custom_call.1']
    #allocation5 [shape = 'u8[32768]{0}', space=vmem, size = 0x8000, scoped, tag = 'input window, operand 1, single buffered']
    #allocation6 [shape = 's32[1]{0}', space=sflag, size = 0x4, scoped, tag = 'scoped memory for tpu_custom_call.1']
    #allocation7 [shape = 'u8[36864]{0}', space=vmem, size = 0x9000, scoped, tag = 'input window, operand 2, single buffered']
    #allocation8 [shape = 'u8[294912]{0}', space=vmem, size = 0x48000, scoped, tag = 'input window, operand 3, single buffered']
    #allocation9 [shape = 's32[1]{0}', space=sflag, size = 0x4, scoped, tag = 'scoped memory for tpu_custom_call.1']
    #allocation10 [shape = 'u8[36864]{0}', space=vmem, size = 0x9000, scoped, tag = 'input window, operand 4, single buffered']
    #allocation11 [shape = 'u8[294912]{0}', space=vmem, size = 0x48000, scoped, tag = 'input window, operand 5, single buffered']
    #allocation12 [shape = 's32[1]{0}', space=sflag, size = 0x4, scoped, tag = 'scoped memory for tpu_custom_call.1']
    #allocation13 [shape = 'u8[16384]{0}', space=vmem, size = 0x4000, scoped, tag = 'output window, operand 0']
    %12 = vsyncpa [#allocation3], 0
    %s13 = scalar_lea.sflag [#allocation3], 1
    %14 = vsyncpa %s13, 0
    %15 = vsyncpa [#allocation6], 0
    %16 = vsyncpa [#allocation9], 0
    %17 = vsyncpa [#allocation12], 0
    %18 = vsyncpa [#allocation4], 0
    %s19 = scalar_lea.sflag [#allocation4], 1
    %20 = vsyncpa %s19, 0
    loop: start=0, step=1, limit=4
    $region2: #{tpu_custom_call.1} parent=1 // loop_pre_header
      _
    $region3: #{tpu_custom_call.1} parent=1 // loop_header
      %s22 = sphi 0, %s26
      %p23 = scmp.ge.s32.totalorder %s22, 4
      %s32 = sphi 0, %s34
      %s35 = sphi 0, %s32
      %s36 = sphi 0, %s35
      %s52 = sphi 0, %s36
      %s56 = sphi 0, %s56
      %s58 = sphi 0, %s56
      %s59 = sphi 0, %s58
      %s73 = sphi 0, %s59
      %s77 = sphi 0, %s77
      %s79 = sphi 0, %s77
      %s80 = sphi 0, %s79
      %s94 = sphi 0, %s80
      %s98 = sphi 0, %s98
      %s100 = sphi 0, %s98
      %s101 = sphi 0, %s100
      %s115 = sphi 0, %s101
      %s119 = sphi 0, %s119
      %s121 = sphi 0, %s119
      %s122 = sphi 0, %s121
      %s136 = sphi 0, %s122
      %s140 = sphi 0, %s140
      %s142 = sphi 0, %s140
      %s143 = sphi 0, %s142
      %s157 = sphi 0, %s143
      %s161 = sphi 0, %s161
      %s163 = sphi 0, %s161
      %s164 = sphi 0, %s163
      %s178 = sphi 0, %s164
      %s184 = sphi 0, %s186
      %s187 = sphi 0, %s184
      %s188 = sphi 0, %s187
      %s204 = sphi 0, %s188
    $region4: #{tpu_custom_call.1} parent=1 // loop_header_branch
      %25 = sbr.rel (%p23) target = $region8
    $region5: #{tpu_custom_call.1} parent=1 // loop_body
      %s27 = ssub.s32 %s22, 1
      %s28 = ssub.s32 %s22, 2
      %s29 = sadd.s32 %s22, 1
      %s30 = ssub.s32 %s22, %s29
      %p31 = scmp.eq.s32.totalorder %s30, 0
      %s33 = sadd.s32 %s32, 1
      %s34 = scalar_select %p31, %s32, %s33
      %p37 = pneg %p31
      %p38 = scmp.eq.s32.totalorder %s22, 1
      %p39 = por %p37, %p38
      %p40 = scmp.ne.s32.totalorder %s32, %s35
      %p41 = scmp.eq.s32.totalorder %s22, 0
      %p42 = por %p40, %p41
      %p43 = scmp.ne.s32.totalorder %s32, %s35
      %p44 = scmp.eq.s32.totalorder %s27, 1
      %p45 = por %p43, %p44
      %p46 = scmp.ne.s32.totalorder %s35, %s36
      %p47 = scmp.eq.s32.totalorder %s27, 0
      %p48 = por %p46, %p47
      %p49 = scmp.ne.s32.totalorder %s35, %s36
      %p50 = scmp.eq.s32.totalorder %s28, 1
      %p51 = por %p49, %p50
      %p53 = scmp.ne.s32.totalorder %s36, %s52
      %p54 = scmp.eq.s32.totalorder %s28, 0
      %p55 = por %p53, %p54
      %s57 = sadd.s32 %s56, 1
      %p60 = scmp.eq.s32.totalorder %s22, 1
      %p61 = scmp.ne.s32.totalorder %s56, %s58
      %p62 = scmp.eq.s32.totalorder %s22, 0
      %p63 = por %p61, %p62
      %p64 = scmp.ne.s32.totalorder %s56, %s58
      %p65 = scmp.eq.s32.totalorder %s27, 1
      %p66 = por %p64, %p65
      %p67 = scmp.ne.s32.totalorder %s58, %s59
      %p68 = scmp.eq.s32.totalorder %s27, 0
      %p69 = por %p67, %p68
      %p70 = scmp.ne.s32.totalorder %s58, %s59
      %p71 = scmp.eq.s32.totalorder %s28, 1
      %p72 = por %p70, %p71
      %p74 = scmp.ne.s32.totalorder %s59, %s73
      %p75 = scmp.eq.s32.totalorder %s28, 0
      %p76 = por %p74, %p75
      %s78 = sadd.s32 %s77, 1
      %p81 = scmp.eq.s32.totalorder %s22, 1
      %p82 = scmp.ne.s32.totalorder %s77, %s79
      %p83 = scmp.eq.s32.totalorder %s22, 0
      %p84 = por %p82, %p83
      %p85 = scmp.ne.s32.totalorder %s77, %s79
      %p86 = scmp.eq.s32.totalorder %s27, 1
      %p87 = por %p85, %p86
      %p88 = scmp.ne.s32.totalorder %s79, %s80
      %p89 = scmp.eq.s32.totalorder %s27, 0
      %p90 = por %p88, %p89
      %p91 = scmp.ne.s32.totalorder %s79, %s80
      %p92 = scmp.eq.s32.totalorder %s28, 1
      %p93 = por %p91, %p92
      %p95 = scmp.ne.s32.totalorder %s80, %s94
      %p96 = scmp.eq.s32.totalorder %s28, 0
      %p97 = por %p95, %p96
      %s99 = sadd.s32 %s98, 1
      %p102 = scmp.eq.s32.totalorder %s22, 1
      %p103 = scmp.ne.s32.totalorder %s98, %s100
      %p104 = scmp.eq.s32.totalorder %s22, 0
      %p105 = por %p103, %p104
      %p106 = scmp.ne.s32.totalorder %s98, %s100
      %p107 = scmp.eq.s32.totalorder %s27, 1
      %p108 = por %p106, %p107
      %p109 = scmp.ne.s32.totalorder %s100, %s101
      %p110 = scmp.eq.s32.totalorder %s27, 0
      %p111 = por %p109, %p110
      %p112 = scmp.ne.s32.totalorder %s100, %s101
      %p113 = scmp.eq.s32.totalorder %s28, 1
      %p114 = por %p112, %p113
      %p116 = scmp.ne.s32.totalorder %s101, %s115
      %p117 = scmp.eq.s32.totalorder %s28, 0
      %p118 = por %p116, %p117
      %s120 = sadd.s32 %s119, 1
      %p123 = scmp.eq.s32.totalorder %s22, 1
      %p124 = scmp.ne.s32.totalorder %s119, %s121
      %p125 = scmp.eq.s32.totalorder %s22, 0
      %p126 = por %p124, %p125
      %p127 = scmp.ne.s32.totalorder %s119, %s121
      %p128 = scmp.eq.s32.totalorder %s27, 1
      %p129 = por %p127, %p128
      %p130 = scmp.ne.s32.totalorder %s121, %s122
      %p131 = scmp.eq.s32.totalorder %s27, 0
      %p132 = por %p130, %p131
      %p133 = scmp.ne.s32.totalorder %s121, %s122
      %p134 = scmp.eq.s32.totalorder %s28, 1
      %p135 = por %p133, %p134
      %p137 = scmp.ne.s32.totalorder %s122, %s136
      %p138 = scmp.eq.s32.totalorder %s28, 0
      %p139 = por %p137, %p138
      %s141 = sadd.s32 %s140, 1
      %p144 = scmp.eq.s32.totalorder %s22, 1
      %p145 = scmp.ne.s32.totalorder %s140, %s142
      %p146 = scmp.eq.s32.totalorder %s22, 0
      %p147 = por %p145, %p146
      %p148 = scmp.ne.s32.totalorder %s140, %s142
      %p149 = scmp.eq.s32.totalorder %s27, 1
      %p150 = por %p148, %p149
      %p151 = scmp.ne.s32.totalorder %s142, %s143
      %p152 = scmp.eq.s32.totalorder %s27, 0
      %p153 = por %p151, %p152
      %p154 = scmp.ne.s32.totalorder %s142, %s143
      %p155 = scmp.eq.s32.totalorder %s28, 1
      %p156 = por %p154, %p155
      %p158 = scmp.ne.s32.totalorder %s143, %s157
      %p159 = scmp.eq.s32.totalorder %s28, 0
      %p160 = por %p158, %p159
      %s162 = sadd.s32 %s161, 1
      %p165 = scmp.eq.s32.totalorder %s22, 1
      %p166 = scmp.ne.s32.totalorder %s161, %s163
      %p167 = scmp.eq.s32.totalorder %s22, 0
      %p168 = por %p166, %p167
      %p169 = scmp.ne.s32.totalorder %s161, %s163
      %p170 = scmp.eq.s32.totalorder %s27, 1
      %p171 = por %p169, %p170
      %p172 = scmp.ne.s32.totalorder %s163, %s164
      %p173 = scmp.eq.s32.totalorder %s27, 0
      %p174 = por %p172, %p173
      %p175 = scmp.ne.s32.totalorder %s163, %s164
      %p176 = scmp.eq.s32.totalorder %s28, 1
      %p177 = por %p175, %p176
      %p179 = scmp.ne.s32.totalorder %s164, %s178
      %p180 = scmp.eq.s32.totalorder %s28, 0
      %p181 = por %p179, %p180
      %s182 = ssub.s32 %s22, %s29
      %p183 = scmp.eq.s32.totalorder %s182, 0
      %s185 = sadd.s32 %s184, 1
      %s186 = scalar_select %p183, %s184, %s185
      %p189 = pneg %p183
      %p190 = scmp.eq.s32.totalorder %s22, 1
      %p191 = por %p189, %p190
      %p192 = scmp.ne.s32.totalorder %s184, %s187
      %p193 = scmp.eq.s32.totalorder %s22, 0
      %p194 = por %p192, %p193
      %p195 = scmp.ne.s32.totalorder %s184, %s187
      %p196 = scmp.eq.s32.totalorder %s27, 1
      %p197 = por %p195, %p196
      %p198 = scmp.ne.s32.totalorder %s187, %s188
      %p199 = scmp.eq.s32.totalorder %s27, 0
      %p200 = por %p198, %p199
      %p201 = scmp.ne.s32.totalorder %s187, %s188
      %p202 = scmp.eq.s32.totalorder %s28, 1
      %p203 = por %p201, %p202
      %p205 = scmp.ne.s32.totalorder %s188, %s204
      %p206 = scmp.eq.s32.totalorder %s28, 0
      %p207 = por %p205, %p206
      %p208 = scmp.le.s32.totalorder 1, %s22
      %p209 = scmp.lt.s32.totalorder %s22, 3
      %p210 = pnand %p208, %p209
      %p211 = pneg %p210
      // Predicated region
      $region9: #{tpu_custom_call.1} parent=5 // pred_check
        _
      $region10: #{tpu_custom_call.1} parent=5 // pred_check_branch
        %213 = sbr.rel (%p210) target = $region12
      $region11: #{tpu_custom_call.1} parent=5 // pred_region
        %s214 = ssub.s32 %s22, 1
        // Predicated region
        $region13: #{tpu_custom_call.1} parent=11 // pred_check
          %p215 = pneg %p69
        $region14: #{tpu_custom_call.1} parent=11 // pred_check_branch
          %217 = sbr.rel (%p215) target = $region16
        $region15: #{tpu_custom_call.1} parent=11 // pred_region
          %s219 = ssub.s32 1024, 1024
          %220 = vsyncadd [#allocation6], %s219
          %s221 = sshll.u32 [#allocation5], 4
          %s222 = int_to_ptr.vmem [resolvable:$true] %s221
          %227 = dma.hbm_to_vmem [thread:$0]  %s1, 1024, %s222, [#allocation6], 64, 64, 4
        $region16: #{tpu_custom_call.1} parent=11 // pred_fallthru
          _
        // Predicated region
        $region17: #{tpu_custom_call.1} parent=11 // pred_check
          %p228 = pneg %p90
        $region18: #{tpu_custom_call.1} parent=11 // pred_check_branch
          %230 = sbr.rel (%p228) target = $region20
        $region19: #{tpu_custom_call.1} parent=11 // pred_region
          %s232 = ssub.s32 1152, 1152
          %233 = vsyncadd [#allocation6], %s232
          %s234 = sshll.u32 [#allocation7], 4
          %s235 = int_to_ptr.vmem [resolvable:$true] %s234
          %240 = dma.hbm_to_vmem [thread:$0]  %s2, 1152, %s235, [#allocation6], 64, 64, 4
        $region20: #{tpu_custom_call.1} parent=11 // pred_fallthru
          _
        // Predicated region
        $region21: #{tpu_custom_call.1} parent=11 // pred_check
          %p241 = pneg %p111
        $region22: #{tpu_custom_call.1} parent=11 // pred_check_branch
          %243 = sbr.rel (%p241) target = $region24
        $region23: #{tpu_custom_call.1} parent=11 // pred_region
          %s245 = ssub.s32 9216, 9216
          %246 = vsyncadd [#allocation9], %s245
          %s247 = sshll.u32 [#allocation8], 4
          %s248 = int_to_ptr.vmem [resolvable:$true] %s247
          %253 = dma.hbm_to_vmem [thread:$0]  %s3, 9216, %s248, [#allocation9], 64, 64, 4
        $region24: #{tpu_custom_call.1} parent=11 // pred_fallthru
          _
        // Predicated region
        $region25: #{tpu_custom_call.1} parent=11 // pred_check
          %p254 = pneg %p132
        $region26: #{tpu_custom_call.1} parent=11 // pred_check_branch
          %256 = sbr.rel (%p254) target = $region28
        $region27: #{tpu_custom_call.1} parent=11 // pred_region
          %s258 = ssub.s32 1152, 1152
          %259 = vsyncadd [#allocation9], %s258
          %s260 = sshll.u32 [#allocation10], 4
          %s261 = int_to_ptr.vmem [resolvable:$true] %s260
          %266 = dma.hbm_to_vmem [thread:$0]  %s4, 1152, %s261, [#allocation9], 64, 64, 4
        $region28: #{tpu_custom_call.1} parent=11 // pred_fallthru
          _
        // Predicated region
        $region29: #{tpu_custom_call.1} parent=11 // pred_check
          %p267 = pneg %p153
        $region30: #{tpu_custom_call.1} parent=11 // pred_check_branch
          %269 = sbr.rel (%p267) target = $region32
        $region31: #{tpu_custom_call.1} parent=11 // pred_region
          %s271 = ssub.s32 9216, 9216
          %272 = vsyncadd [#allocation12], %s271
          %s273 = sshll.u32 [#allocation11], 4
          %s274 = int_to_ptr.vmem [resolvable:$true] %s273
          %279 = dma.hbm_to_vmem [thread:$0]  %s5, 9216, %s274, [#allocation12], 64, 64, 4
        $region32: #{tpu_custom_call.1} parent=11 // pred_fallthru
          _
        // Predicated region
        $region33: #{tpu_custom_call.1} parent=11 // pred_check
          %p280 = pneg %p174
        $region34: #{tpu_custom_call.1} parent=11 // pred_check_branch
          %282 = sbr.rel (%p280) target = $region36
        $region35: #{tpu_custom_call.1} parent=11 // pred_region
          _
        $region36: #{tpu_custom_call.1} parent=11 // pred_fallthru
          _
      $region12: #{tpu_custom_call.1} parent=5 // pred_fallthru
        _
      %p283 = scmp.lt.s32.totalorder %s22, 2
      // Predicated region
      $region37: #{tpu_custom_call.1} parent=5 // pred_check
        %p284 = pneg %p283
      $region38: #{tpu_custom_call.1} parent=5 // pred_check_branch
        %286 = sbr.rel (%p284) target = $region40
      $region39: #{tpu_custom_call.1} parent=5 // pred_region
        // Predicated region
        $region41: #{tpu_custom_call.1} parent=39 // pred_check
          %p287 = pneg %p42
        $region42: #{tpu_custom_call.1} parent=39 // pred_check_branch
          %289 = sbr.rel (%p287) target = $region44
        $region43: #{tpu_custom_call.1} parent=39 // pred_region
          %s290 = sand.u32 %s32, 1
          %s291 = scalar_lea.sflag [#allocation3], %s290
          %s292 = sand.u32 %s32, 1
          %s293 = smul.addr %s292, 32
          %s294 = scalar_lea.vmem [#allocation2], %s293
          %s295 = smul.u32 8, %s22
          %s297 = ssub.s32 512, 512
          %298 = vsyncadd %s291, %s297
          %s299 = smul.addr %s295, 64
          %s300 = scalar_lea.hbm %s0, %s299
          %s301 = sshll.u32 %s294, 4
          %s302 = int_to_ptr.vmem [resolvable:$true] %s301
          %307 = dma.hbm_to_vmem [thread:$0]  %s300, 512, %s302, %s291, 64, 64, 4
        $region44: #{tpu_custom_call.1} parent=39 // pred_fallthru
          _
      $region40: #{tpu_custom_call.1} parent=5 // pred_fallthru
        _
      %p308 = scmp.le.s32.totalorder 1, %s22
      %p309 = scmp.lt.s32.totalorder %s22, 3
      %p310 = pnand %p308, %p309
      %p311 = pneg %p310
      // Predicated region
      $region45: #{tpu_custom_call.1} parent=5 // pred_check
        _
      $region46: #{tpu_custom_call.1} parent=5 // pred_check_branch
        %313 = sbr.rel (%p310) target = $region48
      $region47: #{tpu_custom_call.1} parent=5 // pred_region
        %s314 = ssub.s32 %s22, 1
        %s315 = sand.u32 %s35, 1
        %s316 = scalar_lea.sflag [#allocation3], %s315
        %s317 = sand.u32 %s35, 1
        %s318 = smul.addr %s317, 32
        %s319 = scalar_lea.vmem [#allocation2], %s318
        // Predicated region
        $region49: #{tpu_custom_call.1} parent=47 // pred_check
          %p320 = pneg %p48
        $region50: #{tpu_custom_call.1} parent=47 // pred_check_branch
          %322 = sbr.rel (%p320) target = $region52
        $region51: #{tpu_custom_call.1} parent=47 // pred_region
          %323 = dma.done %s316, 512
        $region52: #{tpu_custom_call.1} parent=47 // pred_fallthru
          _
        // Predicated region
        $region53: #{tpu_custom_call.1} parent=47 // pred_check
          %p324 = pneg %p69
        $region54: #{tpu_custom_call.1} parent=47 // pred_check_branch
          %326 = sbr.rel (%p324) target = $region56
        $region55: #{tpu_custom_call.1} parent=47 // pred_region
          %327 = dma.done [#allocation6], 1024
        $region56: #{tpu_custom_call.1} parent=47 // pred_fallthru
          _
        // Predicated region
        $region57: #{tpu_custom_call.1} parent=47 // pred_check
          %p328 = pneg %p90
        $region58: #{tpu_custom_call.1} parent=47 // pred_check_branch
          %330 = sbr.rel (%p328) target = $region60
        $region59: #{tpu_custom_call.1} parent=47 // pred_region
          %331 = dma.done [#allocation6], 1152
        $region60: #{tpu_custom_call.1} parent=47 // pred_fallthru
          _
        // Predicated region
        $region61: #{tpu_custom_call.1} parent=47 // pred_check
          %p332 = pneg %p111
        $region62: #{tpu_custom_call.1} parent=47 // pred_check_branch
          %334 = sbr.rel (%p332) target = $region64
        $region63: #{tpu_custom_call.1} parent=47 // pred_region
          %335 = dma.done [#allocation9], 9216
        $region64: #{tpu_custom_call.1} parent=47 // pred_fallthru
          _
        // Predicated region
        $region65: #{tpu_custom_call.1} parent=47 // pred_check
          %p336 = pneg %p132
        $region66: #{tpu_custom_call.1} parent=47 // pred_check_branch
          %338 = sbr.rel (%p336) target = $region68
        $region67: #{tpu_custom_call.1} parent=47 // pred_region
          %339 = dma.done [#allocation9], 1152
        $region68: #{tpu_custom_call.1} parent=47 // pred_fallthru
          _
        // Predicated region
        $region69: #{tpu_custom_call.1} parent=47 // pred_check
          %p340 = pneg %p153
        $region70: #{tpu_custom_call.1} parent=47 // pred_check_branch
          %342 = sbr.rel (%p340) target = $region72
        $region71: #{tpu_custom_call.1} parent=47 // pred_region
          %343 = dma.done [#allocation12], 9216
        $region72: #{tpu_custom_call.1} parent=47 // pred_fallthru
          _
        %s344 = sand.u32 %s35, 1
        %s345 = scalar_lea.sflag [#allocation3], %s344
        %s346 = sand.u32 %s35, 1
        %s347 = smul.addr %s346, 32
        %s348 = scalar_lea.vmem [#allocation2], %s347
        %p349 = pneg %p48
        %p350 = pneg %p45
        %p351 = pneg %p69
        %p352 = pneg %p66
        %p353 = pneg %p90
        %p354 = pneg %p87
        %p355 = pneg %p111
        %p356 = pneg %p108
        %p357 = pneg %p132
        %p358 = pneg %p129
        %p359 = pneg %p153
        %p360 = pneg %p150
        %p361 = pneg %p174
        %p362 = pneg %p171
        %p363 = pneg %p200
        %p364 = pneg %p197
        %s365 = sand.u32 %s187, 1
        %s366 = scalar_lea.sflag [#allocation4], %s365
        %s367 = sand.u32 %s187, 1
        %s368 = smul.addr %s367, 16
        %s369 = scalar_lea.vmem [#allocation13], %s368
        %s370 = smul.u32 8, %s27
        %s371 = smul.u32 2, %s27
        %v373 = vld [vmem:[%s319] sm:$0xf]
        %v374 = vld [vmem:[%s319 + $0x4] sm:$0xf]
        %v375 = vld [vmem:[%s319 + $0x8] sm:$0xf]
        %v376 = vld [vmem:[%s319 + $0xc] sm:$0xf]
        %v377 = vld [vmem:[%s319 + $0x10] sm:$0xf]
        %v378 = vld [vmem:[%s319 + $0x14] sm:$0xf]
        %v379 = vld [vmem:[%s319 + $0x18] sm:$0xf]
        %v380 = vld [vmem:[%s319 + $0x1c] sm:$0xf]
        %v381 = vld [vmem:[#allocation5] sm:$0xf]
        %v382 = vld [vmem:[#allocation5 + $0x4] sm:$0xf]
        %v383 = vld [vmem:[#allocation5 + $0x8] sm:$0xf]
        %v384 = vld [vmem:[#allocation5 + $0xc] sm:$0xf]
        %v385 = vld [vmem:[#allocation5 + $0x10] sm:$0xf]
        %v386 = vld [vmem:[#allocation5 + $0x14] sm:$0xf]
        %v387 = vld [vmem:[#allocation5 + $0x18] sm:$0xf]
        %v388 = vld [vmem:[#allocation5 + $0x1c] sm:$0xf]
        %v389 = vld [vmem:[#allocation5 + $0x20] sm:$0xf]
        %v390 = vld [vmem:[#allocation5 + $0x24] sm:$0xf]
        %v391 = vld [vmem:[#allocation5 + $0x28] sm:$0xf]
        %v392 = vld [vmem:[#allocation5 + $0x2c] sm:$0xf]
        %v393 = vld [vmem:[#allocation5 + $0x30] sm:$0xf]
        %v394 = vld [vmem:[#allocation5 + $0x34] sm:$0xf]
        %v395 = vld [vmem:[#allocation5 + $0x38] sm:$0xf]
        %v396 = vld [vmem:[#allocation5 + $0x3c] sm:$0xf]
        %v397 = vld [vmem:[%s6] sm:$0x1]
        %v398 = vld [vmem:[%s6 + $0x1] sm:$0x1]
        %v399 = vld [vmem:[%s6 + $0x2] sm:$0x1]
        %v400 = vlaneseq
        %v401 = vshrl.u32 %v400, 7
        %v402 = vsub.s32 0, %v401
        %v403 = vrot.slane %v397, %v402
        %v412 = vunpack.c.l.b16 %v373
        %v413 = vunpack.c.l.b16 %v374
        %v414 = vunpack.c.l.b16 %v375
        %v415 = vunpack.c.l.b16 %v376
        %v416 = vunpack.c.l.b16 %v377
        %v417 = vunpack.c.l.b16 %v378
        %v418 = vunpack.c.l.b16 %v379
        %v419 = vunpack.c.l.b16 %v380
        %v420 = vpack.c.b16 %v413, %v412
        %v421 = vpack.c.b16 %v415, %v414
        %v422 = vpack.c.b16 %v417, %v416
        %v423 = vpack.c.b16 %v419, %v418
        %v444 = vunpack.c.l.b16 %v381
        %v445 = vunpack.c.l.b16 %v382
        %v446 = vunpack.c.l.b16 %v383
        %v447 = vunpack.c.l.b16 %v384
        %v448 = vunpack.c.l.b16 %v385
        %v449 = vunpack.c.l.b16 %v386
        %v450 = vunpack.c.l.b16 %v387
        %v451 = vunpack.c.l.b16 %v388
        %v452 = vunpack.c.l.b16 %v389
        %v453 = vunpack.c.l.b16 %v390
        %v454 = vunpack.c.l.b16 %v391
        %v455 = vunpack.c.l.b16 %v392
        %v456 = vunpack.c.l.b16 %v393
        %v457 = vunpack.c.l.b16 %v394
        %v458 = vunpack.c.l.b16 %v395
        %v459 = vunpack.c.l.b16 %v396
        %v460 = vpack.c.b16 %v445, %v444
        %v461 = vpack.c.b16 %v447, %v446
        %v462 = vpack.c.b16 %v449, %v448
        %v463 = vpack.c.b16 %v451, %v450
        %v464 = vpack.c.b16 %v453, %v452
        %v465 = vpack.c.b16 %v455, %v454
        %v466 = vpack.c.b16 %v457, %v456
        %v467 = vpack.c.b16 %v459, %v458
        %476 = vmatprep.subr.bf16.mxu0 0
        %477 = vmatpush1.bf16.msra.mxu0 %v460
        %478 = vmatprep.subr.bf16.mxu0 0
        %479 = vmatpush1.bf16.msra.mxu0 %v461
        %480 = vmatprep.subr.bf16.mxu0 0
        %481 = vmatpush1.bf16.msra.mxu0 %v462
        %482 = vmatprep.subr.bf16.mxu0 0
        %483 = vmatpush1.bf16.msra.mxu0 %v463
        %484 = vmatprep.subr.bf16.mxu0 0
        %485 = vmatpush1.bf16.msra.mxu0 %v464
        %486 = vmatprep.subr.bf16.mxu0 0
        %487 = vmatpush1.bf16.msra.mxu0 %v465
        %488 = vmatprep.subr.bf16.mxu0 0
        %489 = vmatpush1.bf16.msra.mxu0 %v466
        %490 = vmatprep.subr.bf16.mxu0 0
        %491 = vmatpush1.bf16.msra.mxu0 %v467
        %492 = vmatprep.subr.bf16.mxu0 0
        %493 = vmatpush1.bf16.msra.mxu0 0
        %494 = vmatprep.subr.bf16.mxu0 0
        %495 = vmatpush1.bf16.msra.mxu0 0
        %496 = vmatprep.subr.bf16.mxu0 0
        %497 = vmatpush1.bf16.msra.mxu0 0
        %498 = vmatprep.subr.bf16.mxu0 0
        %499 = vmatpush1.bf16.msra.mxu0 0
        %500 = vmatprep.subr.bf16.mxu0 0
        %501 = vmatpush1.bf16.msra.mxu0 0
        %502 = vmatprep.subr.bf16.mxu0 0
        %503 = vmatpush1.bf16.msra.mxu0 0
        %504 = vmatprep.subr.bf16.mxu0 0
        %505 = vmatpush1.bf16.msra.mxu0 0
        %506 = vmatprep.subr.bf16.mxu0 0
        %507 = vmatpush1.bf16.msra.mxu0 0
        %508 = vmatprep.mubr.bf16.mxu0 0
        %509 = vmatmul.mubr.bf16.gmra.mrb[0].mxu0 %v420
        %v510 = vpop.f32.mrb[0].mxu0
        %v511 = vadd.f32 %v403, %v510
        %v512 = vpop.f32.mrb[0].mxu0
        %v513 = vpop.f32.mrb[0].mxu0
        %v514 = vadd.f32 %v403, %v513
        %v515 = vpop.f32.mrb[0].mxu0
        %516 = vmatprep.mubr.bf16.mxu0 0
        %517 = vmatmul.mubr.bf16.gmra.mrb[0].mxu0 %v421
        %v518 = vpop.f32.mrb[0].mxu0
        %v519 = vadd.f32 %v403, %v518
        %v520 = vpop.f32.mrb[0].mxu0
        %v521 = vpop.f32.mrb[0].mxu0
        %v522 = vadd.f32 %v403, %v521
        %v523 = vpop.f32.mrb[0].mxu0
        %524 = vmatprep.mubr.bf16.mxu0 0
        %525 = vmatmul.mubr.bf16.gmra.mrb[0].mxu0 %v422
        %v526 = vpop.f32.mrb[0].mxu0
        %v527 = vadd.f32 %v403, %v526
        %v528 = vpop.f32.mrb[0].mxu0
        %v529 = vpop.f32.mrb[0].mxu0
        %v530 = vadd.f32 %v403, %v529
        %v531 = vpop.f32.mrb[0].mxu0
        %532 = vmatprep.mubr.bf16.mxu0 0
        %533 = vmatmul.mubr.bf16.gmra.mrb[0].mxu0 %v423
        %v534 = vpop.f32.mrb[0].mxu0
        %v535 = vadd.f32 %v403, %v534
        %v536 = vpop.f32.mrb[0].mxu0
        %v537 = vpop.f32.mrb[0].mxu0
        %v538 = vadd.f32 %v403, %v537
        %v539 = vpop.f32.mrb[0].mxu0
        %540 = vdwg.mxu0
        %541 = vadd.xlane.f32.xlu0 %v511
        %v542 = vpop.xlane.xlu0 %541
        %543 = vadd.xlane.f32.xlu0 %v514
        %v544 = vpop.xlane.xlu0 %543
        %545 = vadd.xlane.f32.xlu0 %v519
        %v546 = vpop.xlane.xlu0 %545
        %547 = vadd.xlane.f32.xlu0 %v522
        %v548 = vpop.xlane.xlu0 %547
        %549 = vadd.xlane.f32.xlu0 %v527
        %v550 = vpop.xlane.xlu0 %549
        %551 = vadd.xlane.f32.xlu0 %v530
        %v552 = vpop.xlane.xlu0 %551
        %553 = vadd.xlane.f32.xlu0 %v535
        %v554 = vpop.xlane.xlu0 %553
        %555 = vadd.xlane.f32.xlu0 %v538
        %v556 = vpop.xlane.xlu0 %555
        %v557 = vmul.f32 %v542, 0.0625
        %v558 = vmul.f32 %v544, 0.0625
        %v559 = vmul.f32 %v546, 0.0625
        %v560 = vmul.f32 %v548, 0.0625
        %v561 = vmul.f32 %v550, 0.0625
        %v562 = vmul.f32 %v552, 0.0625
        %v563 = vmul.f32 %v554, 0.0625
        %v564 = vmul.f32 %v556, 0.0625
        %v565 = vmul.f32 %v511, %v511
        %v566 = vmul.f32 %v514, %v514
        %v567 = vmul.f32 %v519, %v519
        %v568 = vmul.f32 %v522, %v522
        %v569 = vmul.f32 %v527, %v527
        %v570 = vmul.f32 %v530, %v530
        %v571 = vmul.f32 %v535, %v535
        %v572 = vmul.f32 %v538, %v538
        %573 = vadd.xlane.f32.xlu0 %v565
        %v574 = vpop.xlane.xlu0 %573
        %575 = vadd.xlane.f32.xlu0 %v566
        %v576 = vpop.xlane.xlu0 %575
        %577 = vadd.xlane.f32.xlu0 %v567
        %v578 = vpop.xlane.xlu0 %577
        %579 = vadd.xlane.f32.xlu0 %v568
        %v580 = vpop.xlane.xlu0 %579
        %581 = vadd.xlane.f32.xlu0 %v569
        %v582 = vpop.xlane.xlu0 %581
        %583 = vadd.xlane.f32.xlu0 %v570
        %v584 = vpop.xlane.xlu0 %583
        %585 = vadd.xlane.f32.xlu0 %v571
        %v586 = vpop.xlane.xlu0 %585
        %587 = vadd.xlane.f32.xlu0 %v572
        %v588 = vpop.xlane.xlu0 %587
        %v589 = vmul.f32 %v574, 0.0625
        %v590 = vmul.f32 %v576, 0.0625
        %v591 = vmul.f32 %v578, 0.0625
        %v592 = vmul.f32 %v580, 0.0625
        %v593 = vmul.f32 %v582, 0.0625
        %v594 = vmul.f32 %v584, 0.0625
        %v595 = vmul.f32 %v586, 0.0625
        %v596 = vmul.f32 %v588, 0.0625
        %v597 = vmul.f32 %v557, %v557
        %v598 = vmul.f32 %v558, %v558
        %v599 = vmul.f32 %v559, %v559
        %v600 = vmul.f32 %v560, %v560
        %v601 = vmul.f32 %v561, %v561
        %v602 = vmul.f32 %v562, %v562
        %v603 = vmul.f32 %v563, %v563
        %v604 = vmul.f32 %v564, %v564
        %v605 = vsub.f32 %v589, %v597
        %v606 = vsub.f32 %v590, %v598
        %v607 = vsub.f32 %v591, %v599
        %v608 = vsub.f32 %v592, %v600
        %v609 = vsub.f32 %v593, %v601
        %v610 = vsub.f32 %v594, %v602
        %v611 = vsub.f32 %v595, %v603
        %v612 = vsub.f32 %v596, %v604
        %v613 = vadd.f32 %v605, 1e-06
        %v614 = vadd.f32 %v606, 1e-06
        %v615 = vadd.f32 %v607, 1e-06
        %v616 = vadd.f32 %v608, 1e-06
        %v617 = vadd.f32 %v609, 1e-06
        %v618 = vadd.f32 %v610, 1e-06
        %v619 = vadd.f32 %v611, 1e-06
        %v620 = vadd.f32 %v612, 1e-06
        %v621 = vrsqrt.pop %v613
        %v622 = vrsqrt.pop %v614
        %v623 = vrsqrt.pop %v615
        %v624 = vrsqrt.pop %v616
        %v625 = vrsqrt.pop %v617
        %v626 = vrsqrt.pop %v618
        %v627 = vrsqrt.pop %v619
        %v628 = vrsqrt.pop %v620
        %v629 = vsub.f32 %v511, %v557
        %v630 = vsub.f32 %v514, %v558
        %v631 = vsub.f32 %v519, %v559
        %v632 = vsub.f32 %v522, %v560
        %v633 = vsub.f32 %v527, %v561
        %v634 = vsub.f32 %v530, %v562
        %v635 = vsub.f32 %v535, %v563
        %v636 = vsub.f32 %v538, %v564
        %v637 = vmul.f32 %v629, %v621
        %v638 = vmul.f32 %v630, %v622
        %v639 = vmul.f32 %v631, %v623
        %v640 = vmul.f32 %v632, %v624
        %v641 = vmul.f32 %v633, %v625
        %v642 = vmul.f32 %v634, %v626
        %v643 = vmul.f32 %v635, %v627
        %v644 = vmul.f32 %v636, %v628
        %v645 = vlaneseq
        %v646 = vshrl.u32 %v645, 7
        %v647 = vsub.s32 0, %v646
        %v648 = vrot.slane %v398, %v647
        %v649 = vmul.f32 %v648, %v637
        %v650 = vmul.f32 %v648, %v638
        %v651 = vmul.f32 %v648, %v639
        %v652 = vmul.f32 %v648, %v640
        %v653 = vmul.f32 %v648, %v641
        %v654 = vmul.f32 %v648, %v642
        %v655 = vmul.f32 %v648, %v643
        %v656 = vmul.f32 %v648, %v644
        %v657 = vlaneseq
        %v658 = vshrl.u32 %v657, 7
        %v659 = vsub.s32 0, %v658
        %v660 = vrot.slane %v399, %v659
        %v661 = vadd.f32 %v649, %v660
        %v662 = vadd.f32 %v650, %v660
        %v663 = vadd.f32 %v651, %v660
        %v664 = vadd.f32 %v652, %v660
        %v665 = vadd.f32 %v653, %v660
        %v666 = vadd.f32 %v654, %v660
        %v667 = vadd.f32 %v655, %v660
        %v668 = vadd.f32 %v656, %v660
        %v669 = vmul.f32 %v661, 0.5
        %v670 = vmul.f32 %v662, 0.5
        %v671 = vmul.f32 %v663, 0.5
        %v672 = vmul.f32 %v664, 0.5
        %v673 = vmul.f32 %v665, 0.5
        %v674 = vmul.f32 %v666, 0.5
        %v675 = vmul.f32 %v667, 0.5
        %v676 = vmul.f32 %v668, 0.5
        %v677 = vmul.f32 %v661, 0.70710677
        %v678 = vmul.f32 %v662, 0.70710677
        %v679 = vmul.f32 %v663, 0.70710677
        %v680 = vmul.f32 %v664, 0.70710677
        %v681 = vmul.f32 %v665, 0.70710677
        %v682 = vmul.f32 %v666, 0.70710677
        %v683 = vmul.f32 %v667, 0.70710677
        %v684 = vmul.f32 %v668, 0.70710677
        %v685 = verf.f32.pop %v677
        %v686 = verf.f32.pop %v678
        %v687 = verf.f32.pop %v679
        %v688 = verf.f32.pop %v680
        %v689 = verf.f32.pop %v681
        %v690 = verf.f32.pop %v682
        %v691 = verf.f32.pop %v683
        %v692 = verf.f32.pop %v684
        %v693 = vadd.f32 %v685, 1.0
        %v694 = vadd.f32 %v686, 1.0
        %v695 = vadd.f32 %v687, 1.0
        %v696 = vadd.f32 %v688, 1.0
        %v697 = vadd.f32 %v689, 1.0
        %v698 = vadd.f32 %v690, 1.0
        %v699 = vadd.f32 %v691, 1.0
        %v700 = vadd.f32 %v692, 1.0
        %v701 = vmul.f32 %v669, %v693
        %v702 = vmul.f32 %v670, %v694
        %v703 = vmul.f32 %v671, %v695
        %v704 = vmul.f32 %v672, %v696
        %v705 = vmul.f32 %v673, %v697
        %v706 = vmul.f32 %v674, %v698
        %v707 = vmul.f32 %v675, %v699
        %v708 = vmul.f32 %v676, %v700
        %v709 = vpack.c.bf16 %v702, %v701
        %v710 = vpack.c.bf16 %v704, %v703
        %v711 = vpack.c.bf16 %v706, %v705
        %v712 = vpack.c.bf16 %v708, %v707
        %v713 = vld [vmem:[#allocation7] sm:$0xf]
        %v714 = vld [vmem:[#allocation7 + $0x4] sm:$0xf]
        %v717 = vunpack.c.l.b16 %v713
        %v718 = vunpack.c.l.b16 %v714
        %v719 = vpack.c.b16 %v718, %v717
        %vm720 = vcmask 523264
        %v722 = vsel %vm720, %v719, 0
        %724 = vmatprep.subr.bf16.mxu0 0
        %725 = vmatpush1.bf16.msra.mxu0 %v709
        %726 = vmatprep.subr.bf16.mxu0 0
        %727 = vmatpush1.bf16.msra.mxu0 %v710
        %728 = vmatprep.subr.bf16.mxu0 0
        %729 = vmatpush1.bf16.msra.mxu0 %v711
        %730 = vmatprep.subr.bf16.mxu0 0
        %731 = vmatpush1.bf16.msra.mxu0 %v712
        %732 = vmatprep.subr.bf16.mxu0 0
        %733 = vmatpush1.bf16.msra.mxu0 0
        %734 = vmatprep.subr.bf16.mxu0 0
        %735 = vmatpush1.bf16.msra.mxu0 0
        %736 = vmatprep.subr.bf16.mxu0 0
        %737 = vmatpush1.bf16.msra.mxu0 0
        %738 = vmatprep.subr.bf16.mxu0 0
        %739 = vmatpush1.bf16.msra.mxu0 0
        %740 = vmatprep.subr.bf16.mxu0 0
        %741 = vmatpush1.bf16.msra.mxu0 0
        %742 = vmatprep.subr.bf16.mxu0 0
        %743 = vmatpush1.bf16.msra.mxu0 0
        %744 = vmatprep.subr.bf16.mxu0 0
        %745 = vmatpush1.bf16.msra.mxu0 0
        %746 = vmatprep.subr.bf16.mxu0 0
        %747 = vmatpush1.bf16.msra.mxu0 0
        %748 = vmatprep.subr.bf16.mxu0 0
        %749 = vmatpush1.bf16.msra.mxu0 0
        %750 = vmatprep.subr.bf16.mxu0 0
        %751 = vmatpush1.bf16.msra.mxu0 0
        %752 = vmatprep.subr.bf16.mxu0 0
        %753 = vmatpush1.bf16.msra.mxu0 0
        %754 = vmatprep.subr.bf16.mxu0 0
        %755 = vmatpush1.bf16.msra.mxu0 0
        %756 = vmatprep.mubr.bf16.mxu0 0
        %757 = vmatmul.mubr.bf16.gmra.mrb[0].mxu0 %v722
        %v758 = vpop.f32.mrb[0].mxu0
        %v759 = vadd.f32 0.0, %v758
        %v760 = vpop.f32.mrb[0].mxu0
        %v761 = vpop.f32.mrb[0].mxu0
        %v762 = vadd.f32 0.0, %v761
        %v763 = vpop.f32.mrb[0].mxu0
        %764 = vdwg.mxu0
        %v765 = vpack.c.bf16 %v762, %v759
        %v766 = vld [vmem:[#allocation8] sm:$0xf]
        %v767 = vld [vmem:[#allocation8 + $0x4] sm:$0xf]
        %v768 = vld [vmem:[#allocation8 + $0x8] sm:$0xf]
        %v769 = vld [vmem:[#allocation8 + $0xc] sm:$0xf]
        %v770 = vld [vmem:[#allocation8 + $0x10] sm:$0xf]
        %v771 = vld [vmem:[#allocation8 + $0x14] sm:$0xf]
        %v772 = vld [vmem:[#allocation8 + $0x18] sm:$0xf]
        %v773 = vld [vmem:[#allocation8 + $0x1c] sm:$0xf]
        %v774 = vld [vmem:[#allocation8 + $0x20] sm:$0xf]
        %v775 = vld [vmem:[#allocation8 + $0x24] sm:$0xf]
        %v776 = vld [vmem:[#allocation8 + $0x28] sm:$0xf]
        %v777 = vld [vmem:[#allocation8 + $0x2c] sm:$0xf]
        %v778 = vld [vmem:[#allocation8 + $0x30] sm:$0xf]
        %v779 = vld [vmem:[#allocation8 + $0x34] sm:$0xf]
        %v780 = vld [vmem:[#allocation8 + $0x38] sm:$0xf]
        %v781 = vld [vmem:[#allocation8 + $0x3c] sm:$0xf]
        %s782 = scalar_lea.vmem [#allocation7], 8
        %v783 = vld [vmem:[%s782] sm:$0xf]
        %v784 = vld [vmem:[%s782 + $0x4] sm:$0xf]
        %v787 = vunpack.c.l.b16 %v783
        %v788 = vunpack.c.l.b16 %v784
        %v789 = vpack.c.b16 %v788, %v787
        %v791 = vsel %vm720, %v789, 0
        %793 = vmatprep.subr.bf16.mxu0 0
        %794 = vmatpush1.bf16.msra.mxu0 %v709
        %795 = vmatprep.subr.bf16.mxu0 0
        %796 = vmatpush1.bf16.msra.mxu0 %v710
        %797 = vmatprep.subr.bf16.mxu0 0
        %798 = vmatpush1.bf16.msra.mxu0 %v711
        %799 = vmatprep.subr.bf16.mxu0 0
        %800 = vmatpush1.bf16.msra.mxu0 %v712
        %801 = vmatprep.subr.bf16.mxu0 0
        %802 = vmatpush1.bf16.msra.mxu0 0
        %803 = vmatprep.subr.bf16.mxu0 0
        %804 = vmatpush1.bf16.msra.mxu0 0
        %805 = vmatprep.subr.bf16.mxu0 0
        %806 = vmatpush1.bf16.msra.mxu0 0
        %807 = vmatprep.subr.bf16.mxu0 0
        %808 = vmatpush1.bf16.msra.mxu0 0
        %809 = vmatprep.subr.bf16.mxu0 0
        %810 = vmatpush1.bf16.msra.mxu0 0
        %811 = vmatprep.subr.bf16.mxu0 0
        %812 = vmatpush1.bf16.msra.mxu0 0
        %813 = vmatprep.subr.bf16.mxu0 0
        %814 = vmatpush1.bf16.msra.mxu0 0
        %815 = vmatprep.subr.bf16.mxu0 0
        %816 = vmatpush1.bf16.msra.mxu0 0
        %817 = vmatprep.subr.bf16.mxu0 0
        %818 = vmatpush1.bf16.msra.mxu0 0
        %819 = vmatprep.subr.bf16.mxu0 0
        %820 = vmatpush1.bf16.msra.mxu0 0
        %821 = vmatprep.subr.bf16.mxu0 0
        %822 = vmatpush1.bf16.msra.mxu0 0
        %823 = vmatprep.subr.bf16.mxu0 0
        %824 = vmatpush1.bf16.msra.mxu0 0
        %825 = vmatprep.mubr.bf16.mxu0 0
        %826 = vmatmul.mubr.bf16.gmra.mrb[0].mxu0 %v791
        %v827 = vpop.f32.mrb[0].mxu0
        %v828 = vadd.f32 0.0, %v827
        %v829 = vpop.f32.mrb[0].mxu0
        %v830 = vpop.f32.mrb[0].mxu0
        %v831 = vadd.f32 0.0, %v830
        %v832 = vpop.f32.mrb[0].mxu0
        %833 = vdwg.mxu0
        %v834 = vpack.c.bf16 %v831, %v828
        %s835 = scalar_lea.vmem [#allocation8], 64
        %v836 = vld [vmem:[%s835] sm:$0xf]
        %v837 = vld [vmem:[%s835 + $0x4] sm:$0xf]
        %v838 = vld [vmem:[%s835 + $0x8] sm:$0xf]
        %v839 = vld [vmem:[%s835 + $0xc] sm:$0xf]
        %v840 = vld [vmem:[%s835 + $0x10] sm:$0xf]
        %v841 = vld [vmem:[%s835 + $0x14] sm:$0xf]
        %v842 = vld [vmem:[%s835 + $0x18] sm:$0xf]
        %v843 = vld [vmem:[%s835 + $0x1c] sm:$0xf]
        %v844 = vld [vmem:[%s835 + $0x20] sm:$0xf]
        %v845 = vld [vmem:[%s835 + $0x24] sm:$0xf]
        %v846 = vld [vmem:[%s835 + $0x28] sm:$0xf]
        %v847 = vld [vmem:[%s835 + $0x2c] sm:$0xf]
        %v848 = vld [vmem:[%s835 + $0x30] sm:$0xf]
        %v849 = vld [vmem:[%s835 + $0x34] sm:$0xf]
        %v850 = vld [vmem:[%s835 + $0x38] sm:$0xf]
        %v851 = vld [vmem:[%s835 + $0x3c] sm:$0xf]
        %v868 = vunpack.c.l.b16 %v836
        %v869 = vunpack.c.l.b16 %v837
        %v870 = vunpack.c.l.b16 %v838
        %v871 = vunpack.c.l.b16 %v839
        %v872 = vunpack.c.l.b16 %v840
        %v873 = vunpack.c.l.b16 %v841
        %v874 = vunpack.c.l.b16 %v842
        %v875 = vunpack.c.l.b16 %v843
        %v876 = vunpack.c.l.b16 %v844
        %v877 = vunpack.c.l.b16 %v845
        %v878 = vunpack.c.l.b16 %v846
        %v879 = vunpack.c.l.b16 %v847
        %v880 = vunpack.c.l.b16 %v848
        %v881 = vunpack.c.l.b16 %v849
        %v882 = vunpack.c.l.b16 %v850
        %v883 = vunpack.c.l.b16 %v851
        %v884 = vpack.c.b16 %v869, %v868
        %v885 = vpack.c.b16 %v871, %v870
        %v886 = vpack.c.b16 %v873, %v872
        %v887 = vpack.c.b16 %v875, %v874
        %v888 = vpack.c.b16 %v877, %v876
        %v889 = vpack.c.b16 %v879, %v878
        %v890 = vpack.c.b16 %v881, %v880
        %v891 = vpack.c.b16 %v883, %v882
        %900 = vmatprep.subr.bf16.mxu0 0
        %901 = vmatpush1.bf16.msra.mxu0 %v884
        %902 = vmatprep.subr.bf16.mxu0 0
        %903 = vmatpush1.bf16.msra.mxu0 %v885
        %904 = vmatprep.subr.bf16.mxu0 0
        %905 = vmatpush1.bf16.msra.mxu0 %v886
        %906 = vmatprep.subr.bf16.mxu0 0
        %907 = vmatpush1.bf16.msra.mxu0 %v887
        %908 = vmatprep.subr.bf16.mxu0 0
        %909 = vmatpush1.bf16.msra.mxu0 %v888
        %910 = vmatprep.subr.bf16.mxu0 0
        %911 = vmatpush1.bf16.msra.mxu0 %v889
        %912 = vmatprep.subr.bf16.mxu0 0
        %913 = vmatpush1.bf16.msra.mxu0 %v890
        %914 = vmatprep.subr.bf16.mxu0 0
        %915 = vmatpush1.bf16.msra.mxu0 %v891
        %916 = vmatprep.subr.bf16.mxu0 0
        %917 = vmatpush1.bf16.msra.mxu0 0
        %918 = vmatprep.subr.bf16.mxu0 0
        %919 = vmatpush1.bf16.msra.mxu0 0
        %920 = vmatprep.subr.bf16.mxu0 0
        %921 = vmatpush1.bf16.msra.mxu0 0
        %922 = vmatprep.subr.bf16.mxu0 0
        %923 = vmatpush1.bf16.msra.mxu0 0
        %924 = vmatprep.subr.bf16.mxu0 0
        %925 = vmatpush1.bf16.msra.mxu0 0
        %926 = vmatprep.subr.bf16.mxu0 0
        %927 = vmatpush1.bf16.msra.mxu0 0
        %928 = vmatprep.subr.bf16.mxu0 0
        %929 = vmatpush1.bf16.msra.mxu0 0
        %930 = vmatprep.subr.bf16.mxu0 0
        %931 = vmatpush1.bf16.msra.mxu0 0
        %932 = vmatprep.mubr.bf16.mxu0 0
        %933 = vmatmul.mubr.bf16.gmra.mrb[0].mxu0 %v834
        %v934 = vpop.f32.mrb[0].mxu0
        %v935 = vadd.f32 0.0, %v934
        %v936 = vpop.f32.mrb[0].mxu0
        %v937 = vpop.f32.mrb[0].mxu0
        %v938 = vadd.f32 0.0, %v937
        %v939 = vpop.f32.mrb[0].mxu0
        %940 = vdwg.mxu0
        %v957 = vunpack.c.l.b16 %v766
        %v958 = vunpack.c.l.b16 %v767
        %v959 = vunpack.c.l.b16 %v768
        %v960 = vunpack.c.l.b16 %v769
        %v961 = vunpack.c.l.b16 %v770
        %v962 = vunpack.c.l.b16 %v771
        %v963 = vunpack.c.l.b16 %v772
        %v964 = vunpack.c.l.b16 %v773
        %v965 = vunpack.c.l.b16 %v774
        %v966 = vunpack.c.l.b16 %v775
        %v967 = vunpack.c.l.b16 %v776
        %v968 = vunpack.c.l.b16 %v777
        %v969 = vunpack.c.l.b16 %v778
        %v970 = vunpack.c.l.b16 %v779
        %v971 = vunpack.c.l.b16 %v780
        %v972 = vunpack.c.l.b16 %v781
        %v973 = vpack.c.b16 %v958, %v957
        %v974 = vpack.c.b16 %v960, %v959
        %v975 = vpack.c.b16 %v962, %v961
        %v976 = vpack.c.b16 %v964, %v963
        %v977 = vpack.c.b16 %v966, %v965
        %v978 = vpack.c.b16 %v968, %v967
        %v979 = vpack.c.b16 %v970, %v969
        %v980 = vpack.c.b16 %v972, %v971
        %989 = vmatprep.subr.bf16.mxu0 0
        %990 = vmatpush1.bf16.msra.mxu0 %v973
        %991 = vmatprep.subr.bf16.mxu0 0
        %992 = vmatpush1.bf16.msra.mxu0 %v974
        %993 = vmatprep.subr.bf16.mxu0 0
        %994 = vmatpush1.bf16.msra.mxu0 %v975
        %995 = vmatprep.subr.bf16.mxu0 0
        %996 = vmatpush1.bf16.msra.mxu0 %v976
        %997 = vmatprep.subr.bf16.mxu0 0
        %998 = vmatpush1.bf16.msra.mxu0 %v977
        %999 = vmatprep.subr.bf16.mxu0 0
        %1000 = vmatpush1.bf16.msra.mxu0 %v978
        %1001 = vmatprep.subr.bf16.mxu0 0
        %1002 = vmatpush1.bf16.msra.mxu0 %v979
        %1003 = vmatprep.subr.bf16.mxu0 0
        %1004 = vmatpush1.bf16.msra.mxu0 %v980
        %1005 = vmatprep.subr.bf16.mxu0 0
        %1006 = vmatpush1.bf16.msra.mxu0 0
        %1007 = vmatprep.subr.bf16.mxu0 0
        %1008 = vmatpush1.bf16.msra.mxu0 0
        %1009 = vmatprep.subr.bf16.mxu0 0
        %1010 = vmatpush1.bf16.msra.mxu0 0
        %1011 = vmatprep.subr.bf16.mxu0 0
        %1012 = vmatpush1.bf16.msra.mxu0 0
        %1013 = vmatprep.subr.bf16.mxu0 0
        %1014 = vmatpush1.bf16.msra.mxu0 0
        %1015 = vmatprep.subr.bf16.mxu0 0
        %1016 = vmatpush1.bf16.msra.mxu0 0
        %1017 = vmatprep.subr.bf16.mxu0 0
        %1018 = vmatpush1.bf16.msra.mxu0 0
        %1019 = vmatprep.subr.bf16.mxu0 0
        %1020 = vmatpush1.bf16.msra.mxu0 0
        %1021 = vmatprep.mubr.bf16.mxu0 0
        %1022 = vmatmul.mubr.bf16.gmra.mrb[0].mxu0 %v765
        %v1023 = vpop.f32.mrb[0].mxu0
        %v1024 = vadd.f32 %v935, %v1023
        %v1025 = vpop.f32.mrb[0].mxu0
        %v1026 = vpop.f32.mrb[0].mxu0
        %v1027 = vadd.f32 %v938, %v1026
        %v1028 = vpop.f32.mrb[0].mxu0
        %1029 = vdwg.mxu0
        %s1030 = scalar_lea.vmem [#allocation7], 16
        %v1031 = vld [vmem:[%s1030] sm:$0xf]
        %v1032 = vld [vmem:[%s1030 + $0x4] sm:$0xf]
        %v1035 = vunpack.c.l.b16 %v1031
        %v1036 = vunpack.c.l.b16 %v1032
        %v1037 = vpack.c.b16 %v1036, %v1035
        %v1039 = vsel %vm720, %v1037, 0
        %1041 = vmatprep.subr.bf16.mxu0 0
        %1042 = vmatpush1.bf16.msra.mxu0 %v709
        %1043 = vmatprep.subr.bf16.mxu0 0
        %1044 = vmatpush1.bf16.msra.mxu0 %v710
        %1045 = vmatprep.subr.bf16.mxu0 0
        %1046 = vmatpush1.bf16.msra.mxu0 %v711
        %1047 = vmatprep.subr.bf16.mxu0 0
        %1048 = vmatpush1.bf16.msra.mxu0 %v712
        %1049 = vmatprep.subr.bf16.mxu0 0
        %1050 = vmatpush1.bf16.msra.mxu0 0
        %1051 = vmatprep.subr.bf16.mxu0 0
        %1052 = vmatpush1.bf16.msra.mxu0 0
        %1053 = vmatprep.subr.bf16.mxu0 0
        %1054 = vmatpush1.bf16.msra.mxu0 0
        %1055 = vmatprep.subr.bf16.mxu0 0
        %1056 = vmatpush1.bf16.msra.mxu0 0
        %1057 = vmatprep.subr.bf16.mxu0 0
        %1058 = vmatpush1.bf16.msra.mxu0 0
        %1059 = vmatprep.subr.bf16.mxu0 0
        %1060 = vmatpush1.bf16.msra.mxu0 0
        %1061 = vmatprep.subr.bf16.mxu0 0
        %1062 = vmatpush1.bf16.msra.mxu0 0
        %1063 = vmatprep.subr.bf16.mxu0 0
        %1064 = vmatpush1.bf16.msra.mxu0 0
        %1065 = vmatprep.subr.bf16.mxu0 0
        %1066 = vmatpush1.bf16.msra.mxu0 0
        %1067 = vmatprep.subr.bf16.mxu0 0
        %1068 = vmatpush1.bf16.msra.mxu0 0
        %1069 = vmatprep.subr.bf16.mxu0 0
        %1070 = vmatpush1.bf16.msra.mxu0 0
        %1071 = vmatprep.subr.bf16.mxu0 0
        %1072 = vmatpush1.bf16.msra.mxu0 0
        %1073 = vmatprep.mubr.bf16.mxu0 0
        %1074 = vmatmul.mubr.bf16.gmra.mrb[0].mxu0 %v1039
        %v1075 = vpop.f32.mrb[0].mxu0
        %v1076 = vadd.f32 0.0, %v1075
        %v1077 = vpop.f32.mrb[0].mxu0
        %v1078 = vpop.f32.mrb[0].mxu0
        %v1079 = vadd.f32 0.0, %v1078
        %v1080 = vpop.f32.mrb[0].mxu0
        %1081 = vdwg.mxu0
        %v1082 = vpack.c.bf16 %v1079, %v1076
        %s1083 = scalar_lea.vmem [#allocation8], 128
        %v1084 = vld [vmem:[%s1083] sm:$0xf]
        %v1085 = vld [vmem:[%s1083 + $0x4] sm:$0xf]
        %v1086 = vld [vmem:[%s1083 + $0x8] sm:$0xf]
        %v1087 = vld [vmem:[%s1083 + $0xc] sm:$0xf]
        %v1088 = vld [vmem:[%s1083 + $0x10] sm:$0xf]
        %v1089 = vld [vmem:[%s1083 + $0x14] sm:$0xf]
        %v1090 = vld [vmem:[%s1083 + $0x18] sm:$0xf]
        %v1091 = vld [vmem:[%s1083 + $0x1c] sm:$0xf]
        %v1092 = vld [vmem:[%s1083 + $0x20] sm:$0xf]
        %v1093 = vld [vmem:[%s1083 + $0x24] sm:$0xf]
        %v1094 = vld [vmem:[%s1083 + $0x28] sm:$0xf]
        %v1095 = vld [vmem:[%s1083 + $0x2c] sm:$0xf]
        %v1096 = vld [vmem:[%s1083 + $0x30] sm:$0xf]
        %v1097 = vld [vmem:[%s1083 + $0x34] sm:$0xf]
        %v1098 = vld [vmem:[%s1083 + $0x38] sm:$0xf]
        %v1099 = vld [vmem:[%s1083 + $0x3c] sm:$0xf]
        %v1116 = vunpack.c.l.b16 %v1084
        %v1117 = vunpack.c.l.b16 %v1085
        %v1118 = vunpack.c.l.b16 %v1086
        %v1119 = vunpack.c.l.b16 %v1087
        %v1120 = vunpack.c.l.b16 %v1088
        %v1121 = vunpack.c.l.b16 %v1089
        %v1122 = vunpack.c.l.b16 %v1090
        %v1123 = vunpack.c.l.b16 %v1091
        %v1124 = vunpack.c.l.b16 %v1092
        %v1125 = vunpack.c.l.b16 %v1093
        %v1126 = vunpack.c.l.b16 %v1094
        %v1127 = vunpack.c.l.b16 %v1095
        %v1128 = vunpack.c.l.b16 %v1096
        %v1129 = vunpack.c.l.b16 %v1097
        %v1130 = vunpack.c.l.b16 %v1098
        %v1131 = vunpack.c.l.b16 %v1099
        %v1132 = vpack.c.b16 %v1117, %v1116
        %v1133 = vpack.c.b16 %v1119, %v1118
        %v1134 = vpack.c.b16 %v1121, %v1120
        %v1135 = vpack.c.b16 %v1123, %v1122
        %v1136 = vpack.c.b16 %v1125, %v1124
        %v1137 = vpack.c.b16 %v1127, %v1126
        %v1138 = vpack.c.b16 %v1129, %v1128
        %v1139 = vpack.c.b16 %v1131, %v1130
        %1148 = vmatprep.subr.bf16.mxu0 0
        %1149 = vmatpush1.bf16.msra.mxu0 %v1132
        %1150 = vmatprep.subr.bf16.mxu0 0
        %1151 = vmatpush1.bf16.msra.mxu0 %v1133
        %1152 = vmatprep.subr.bf16.mxu0 0
        %1153 = vmatpush1.bf16.msra.mxu0 %v1134
        %1154 = vmatprep.subr.bf16.mxu0 0
        %1155 = vmatpush1.bf16.msra.mxu0 %v1135
        %1156 = vmatprep.subr.bf16.mxu0 0
        %1157 = vmatpush1.bf16.msra.mxu0 %v1136
        %1158 = vmatprep.subr.bf16.mxu0 0
        %1159 = vmatpush1.bf16.msra.mxu0 %v1137
        %1160 = vmatprep.subr.bf16.mxu0 0
        %1161 = vmatpush1.bf16.msra.mxu0 %v1138
        %1162 = vmatprep.subr.bf16.mxu0 0
        %1163 = vmatpush1.bf16.msra.mxu0 %v1139
        %1164 = vmatprep.subr.bf16.mxu0 0
        %1165 = vmatpush1.bf16.msra.mxu0 0
        %1166 = vmatprep.subr.bf16.mxu0 0
        %1167 = vmatpush1.bf16.msra.mxu0 0
        %1168 = vmatprep.subr.bf16.mxu0 0
        %1169 = vmatpush1.bf16.msra.mxu0 0
        %1170 = vmatprep.subr.bf16.mxu0 0
        %1171 = vmatpush1.bf16.msra.mxu0 0
        %1172 = vmatprep.subr.bf16.mxu0 0
        %1173 = vmatpush1.bf16.msra.mxu0 0
        %1174 = vmatprep.subr.bf16.mxu0 0
        %1175 = vmatpush1.bf16.msra.mxu0 0
        %1176 = vmatprep.subr.bf16.mxu0 0
        %1177 = vmatpush1.bf16.msra.mxu0 0
        %1178 = vmatprep.subr.bf16.mxu0 0
        %1179 = vmatpush1.bf16.msra.mxu0 0
        %1180 = vmatprep.mubr.bf16.mxu0 0
        %1181 = vmatmul.mubr.bf16.gmra.mrb[0].mxu0 %v1082
        %v1182 = vpop.f32.mrb[0].mxu0
        %v1183 = vadd.f32 0.0, %v1182
        %v1184 = vpop.f32.mrb[0].mxu0
        %v1185 = vpop.f32.mrb[0].mxu0
        %v1186 = vadd.f32 0.0, %v1185
        %v1187 = vpop.f32.mrb[0].mxu0
        %1188 = vdwg.mxu0
        %v1189 = vadd.f32 %v1024, %v1183
        %v1190 = vadd.f32 %v1027, %v1186
        %s1191 = scalar_lea.vmem [#allocation7], 24
        %v1192 = vld [vmem:[%s1191] sm:$0xf]
        %v1193 = vld [vmem:[%s1191 + $0x4] sm:$0xf]
        %v1196 = vunpack.c.l.b16 %v1192
        %v1197 = vunpack.c.l.b16 %v1193
        %v1198 = vpack.c.b16 %v1197, %v1196
        %v1200 = vsel %vm720, %v1198, 0
        %1202 = vmatprep.subr.bf16.mxu0 0
        %1203 = vmatpush1.bf16.msra.mxu0 %v709
        %1204 = vmatprep.subr.bf16.mxu0 0
        %1205 = vmatpush1.bf16.msra.mxu0 %v710
        %1206 = vmatprep.subr.bf16.mxu0 0
        %1207 = vmatpush1.bf16.msra.mxu0 %v711
        %1208 = vmatprep.subr.bf16.mxu0 0
        %1209 = vmatpush1.bf16.msra.mxu0 %v712
        %1210 = vmatprep.subr.bf16.mxu0 0
        %1211 = vmatpush1.bf16.msra.mxu0 0
        %1212 = vmatprep.subr.bf16.mxu0 0
        %1213 = vmatpush1.bf16.msra.mxu0 0
        %1214 = vmatprep.subr.bf16.mxu0 0
        %1215 = vmatpush1.bf16.msra.mxu0 0
        %1216 = vmatprep.subr.bf16.mxu0 0
        %1217 = vmatpush1.bf16.msra.mxu0 0
        %1218 = vmatprep.subr.bf16.mxu0 0
        %1219 = vmatpush1.bf16.msra.mxu0 0
        %1220 = vmatprep.subr.bf16.mxu0 0
        %1221 = vmatpush1.bf16.msra.mxu0 0
        %1222 = vmatprep.subr.bf16.mxu0 0
        %1223 = vmatpush1.bf16.msra.mxu0 0
        %1224 = vmatprep.subr.bf16.mxu0 0
        %1225 = vmatpush1.bf16.msra.mxu0 0
        %1226 = vmatprep.subr.bf16.mxu0 0
        %1227 = vmatpush1.bf16.msra.mxu0 0
        %1228 = vmatprep.subr.bf16.mxu0 0
        %1229 = vmatpush1.bf16.msra.mxu0 0
        %1230 = vmatprep.subr.bf16.mxu0 0
        %1231 = vmatpush1.bf16.msra.mxu0 0
        %1232 = vmatprep.subr.bf16.mxu0 0
        %1233 = vmatpush1.bf16.msra.mxu0 0
        %1234 = vmatprep.mubr.bf16.mxu0 0
        %1235 = vmatmul.mubr.bf16.gmra.mrb[0].mxu0 %v1200
        %v1236 = vpop.f32.mrb[0].mxu0
        %v1237 = vadd.f32 0.0, %v1236
        %v1238 = vpop.f32.mrb[0].mxu0
        %v1239 = vpop.f32.mrb[0].mxu0
        %v1240 = vadd.f32 0.0, %v1239
        %v1241 = vpop.f32.mrb[0].mxu0
        %1242 = vdwg.mxu0
        %v1243 = vpack.c.bf16 %v1240, %v1237
        %s1244 = scalar_lea.vmem [#allocation8], 192
        %v1245 = vld [vmem:[%s1244] sm:$0xf]
        %v1246 = vld [vmem:[%s1244 + $0x4] sm:$0xf]
        %v1247 = vld [vmem:[%s1244 + $0x8] sm:$0xf]
        %v1248 = vld [vmem:[%s1244 + $0xc] sm:$0xf]
        %v1249 = vld [vmem:[%s1244 + $0x10] sm:$0xf]
        %v1250 = vld [vmem:[%s1244 + $0x14] sm:$0xf]
        %v1251 = vld [vmem:[%s1244 + $0x18] sm:$0xf]
        %v1252 = vld [vmem:[%s1244 + $0x1c] sm:$0xf]
        %v1253 = vld [vmem:[%s1244 + $0x20] sm:$0xf]
        %v1254 = vld [vmem:[%s1244 + $0x24] sm:$0xf]
        %v1255 = vld [vmem:[%s1244 + $0x28] sm:$0xf]
        %v1256 = vld [vmem:[%s1244 + $0x2c] sm:$0xf]
        %v1257 = vld [vmem:[%s1244 + $0x30] sm:$0xf]
        %v1258 = vld [vmem:[%s1244 + $0x34] sm:$0xf]
        %v1259 = vld [vmem:[%s1244 + $0x38] sm:$0xf]
        %v1260 = vld [vmem:[%s1244 + $0x3c] sm:$0xf]
        %v1277 = vunpack.c.l.b16 %v1245
        %v1278 = vunpack.c.l.b16 %v1246
        %v1279 = vunpack.c.l.b16 %v1247
        %v1280 = vunpack.c.l.b16 %v1248
        %v1281 = vunpack.c.l.b16 %v1249
        %v1282 = vunpack.c.l.b16 %v1250
        %v1283 = vunpack.c.l.b16 %v1251
        %v1284 = vunpack.c.l.b16 %v1252
        %v1285 = vunpack.c.l.b16 %v1253
        %v1286 = vunpack.c.l.b16 %v1254
        %v1287 = vunpack.c.l.b16 %v1255
        %v1288 = vunpack.c.l.b16 %v1256
        %v1289 = vunpack.c.l.b16 %v1257
        %v1290 = vunpack.c.l.b16 %v1258
        %v1291 = vunpack.c.l.b16 %v1259
        %v1292 = vunpack.c.l.b16 %v1260
        %v1293 = vpack.c.b16 %v1278, %v1277
        %v1294 = vpack.c.b16 %v1280, %v1279
        %v1295 = vpack.c.b16 %v1282, %v1281
        %v1296 = vpack.c.b16 %v1284, %v1283
        %v1297 = vpack.c.b16 %v1286, %v1285
        %v1298 = vpack.c.b16 %v1288, %v1287
        %v1299 = vpack.c.b16 %v1290, %v1289
        %v1300 = vpack.c.b16 %v1292, %v1291
        %1309 = vmatprep.subr.bf16.mxu0 0
        %1310 = vmatpush1.bf16.msra.mxu0 %v1293
        %1311 = vmatprep.subr.bf16.mxu0 0
        %1312 = vmatpush1.bf16.msra.mxu0 %v1294
        %1313 = vmatprep.subr.bf16.mxu0 0
        %1314 = vmatpush1.bf16.msra.mxu0 %v1295
        %1315 = vmatprep.subr.bf16.mxu0 0
        %1316 = vmatpush1.bf16.msra.mxu0 %v1296
        %1317 = vmatprep.subr.bf16.mxu0 0
        %1318 = vmatpush1.bf16.msra.mxu0 %v1297
        %1319 = vmatprep.subr.bf16.mxu0 0
        %1320 = vmatpush1.bf16.msra.mxu0 %v1298
        %1321 = vmatprep.subr.bf16.mxu0 0
        %1322 = vmatpush1.bf16.msra.mxu0 %v1299
        %1323 = vmatprep.subr.bf16.mxu0 0
        %1324 = vmatpush1.bf16.msra.mxu0 %v1300
        %1325 = vmatprep.subr.bf16.mxu0 0
        %1326 = vmatpush1.bf16.msra.mxu0 0
        %1327 = vmatprep.subr.bf16.mxu0 0
        %1328 = vmatpush1.bf16.msra.mxu0 0
        %1329 = vmatprep.subr.bf16.mxu0 0
        %1330 = vmatpush1.bf16.msra.mxu0 0
        %1331 = vmatprep.subr.bf16.mxu0 0
        %1332 = vmatpush1.bf16.msra.mxu0 0
        %1333 = vmatprep.subr.bf16.mxu0 0
        %1334 = vmatpush1.bf16.msra.mxu0 0
        %1335 = vmatprep.subr.bf16.mxu0 0
        %1336 = vmatpush1.bf16.msra.mxu0 0
        %1337 = vmatprep.subr.bf16.mxu0 0
        %1338 = vmatpush1.bf16.msra.mxu0 0
        %1339 = vmatprep.subr.bf16.mxu0 0
        %1340 = vmatpush1.bf16.msra.mxu0 0
        %1341 = vmatprep.mubr.bf16.mxu0 0
        %1342 = vmatmul.mubr.bf16.gmra.mrb[0].mxu0 %v1243
        %v1343 = vpop.f32.mrb[0].mxu0
        %v1344 = vadd.f32 0.0, %v1343
        %v1345 = vpop.f32.mrb[0].mxu0
        %v1346 = vpop.f32.mrb[0].mxu0
        %v1347 = vadd.f32 0.0, %v1346
        %v1348 = vpop.f32.mrb[0].mxu0
        %1349 = vdwg.mxu0
        %v1350 = vadd.f32 %v1189, %v1344
        %v1351 = vadd.f32 %v1190, %v1347
        %s1352 = scalar_lea.vmem [#allocation7], 32
        %v1353 = vld [vmem:[%s1352] sm:$0xf]
        %v1354 = vld [vmem:[%s1352 + $0x4] sm:$0xf]
        %v1357 = vunpack.c.l.b16 %v1353
        %v1358 = vunpack.c.l.b16 %v1354
        %v1359 = vpack.c.b16 %v1358, %v1357
        %v1361 = vsel %vm720, %v1359, 0
        %1363 = vmatprep.subr.bf16.mxu0 0
        %1364 = vmatpush1.bf16.msra.mxu0 %v709
        %1365 = vmatprep.subr.bf16.mxu0 0
        %1366 = vmatpush1.bf16.msra.mxu0 %v710
        %1367 = vmatprep.subr.bf16.mxu0 0
        %1368 = vmatpush1.bf16.msra.mxu0 %v711
        %1369 = vmatprep.subr.bf16.mxu0 0
        %1370 = vmatpush1.bf16.msra.mxu0 %v712
        %1371 = vmatprep.subr.bf16.mxu0 0
        %1372 = vmatpush1.bf16.msra.mxu0 0
        %1373 = vmatprep.subr.bf16.mxu0 0
        %1374 = vmatpush1.bf16.msra.mxu0 0
        %1375 = vmatprep.subr.bf16.mxu0 0
        %1376 = vmatpush1.bf16.msra.mxu0 0
        %1377 = vmatprep.subr.bf16.mxu0 0
        %1378 = vmatpush1.bf16.msra.mxu0 0
        %1379 = vmatprep.subr.bf16.mxu0 0
        %1380 = vmatpush1.bf16.msra.mxu0 0
        %1381 = vmatprep.subr.bf16.mxu0 0
        %1382 = vmatpush1.bf16.msra.mxu0 0
        %1383 = vmatprep.subr.bf16.mxu0 0
        %1384 = vmatpush1.bf16.msra.mxu0 0
        %1385 = vmatprep.subr.bf16.mxu0 0
        %1386 = vmatpush1.bf16.msra.mxu0 0
        %1387 = vmatprep.subr.bf16.mxu0 0
        %1388 = vmatpush1.bf16.msra.mxu0 0
        %1389 = vmatprep.subr.bf16.mxu0 0
        %1390 = vmatpush1.bf16.msra.mxu0 0
        %1391 = vmatprep.subr.bf16.mxu0 0
        %1392 = vmatpush1.bf16.msra.mxu0 0
        %1393 = vmatprep.subr.bf16.mxu0 0
        %1394 = vmatpush1.bf16.msra.mxu0 0
        %1395 = vmatprep.mubr.bf16.mxu0 0
        %1396 = vmatmul.mubr.bf16.gmra.mrb[0].mxu0 %v1361
        %v1397 = vpop.f32.mrb[0].mxu0
        %v1398 = vadd.f32 0.0, %v1397
        %v1399 = vpop.f32.mrb[0].mxu0
        %v1400 = vpop.f32.mrb[0].mxu0
        %v1401 = vadd.f32 0.0, %v1400
        %v1402 = vpop.f32.mrb[0].mxu0
        %1403 = vdwg.mxu0
        %v1404 = vpack.c.bf16 %v1401, %v1398
        %s1405 = scalar_lea.vmem [#allocation8], 256
        %v1406 = vld [vmem:[%s1405] sm:$0xf]
        %v1407 = vld [vmem:[%s1405 + $0x4] sm:$0xf]
        %v1408 = vld [vmem:[%s1405 + $0x8] sm:$0xf]
        %v1409 = vld [vmem:[%s1405 + $0xc] sm:$0xf]
        %v1410 = vld [vmem:[%s1405 + $0x10] sm:$0xf]
        %v1411 = vld [vmem:[%s1405 + $0x14] sm:$0xf]
        %v1412 = vld [vmem:[%s1405 + $0x18] sm:$0xf]
        %v1413 = vld [vmem:[%s1405 + $0x1c] sm:$0xf]
        %v1414 = vld [vmem:[%s1405 + $0x20] sm:$0xf]
        %v1415 = vld [vmem:[%s1405 + $0x24] sm:$0xf]
        %v1416 = vld [vmem:[%s1405 + $0x28] sm:$0xf]
        %v1417 = vld [vmem:[%s1405 + $0x2c] sm:$0xf]
        %v1418 = vld [vmem:[%s1405 + $0x30] sm:$0xf]
        %v1419 = vld [vmem:[%s1405 + $0x34] sm:$0xf]
        %v1420 = vld [vmem:[%s1405 + $0x38] sm:$0xf]
        %v1421 = vld [vmem:[%s1405 + $0x3c] sm:$0xf]
        %v1438 = vunpack.c.l.b16 %v1406
        %v1439 = vunpack.c.l.b16 %v1407
        %v1440 = vunpack.c.l.b16 %v1408
        %v1441 = vunpack.c.l.b16 %v1409
        %v1442 = vunpack.c.l.b16 %v1410
        %v1443 = vunpack.c.l.b16 %v1411
        %v1444 = vunpack.c.l.b16 %v1412
        %v1445 = vunpack.c.l.b16 %v1413
        %v1446 = vunpack.c.l.b16 %v1414
        %v1447 = vunpack.c.l.b16 %v1415
        %v1448 = vunpack.c.l.b16 %v1416
        %v1449 = vunpack.c.l.b16 %v1417
        %v1450 = vunpack.c.l.b16 %v1418
        %v1451 = vunpack.c.l.b16 %v1419
        %v1452 = vunpack.c.l.b16 %v1420
        %v1453 = vunpack.c.l.b16 %v1421
        %v1454 = vpack.c.b16 %v1439, %v1438
        %v1455 = vpack.c.b16 %v1441, %v1440
        %v1456 = vpack.c.b16 %v1443, %v1442
        %v1457 = vpack.c.b16 %v1445, %v1444
        %v1458 = vpack.c.b16 %v1447, %v1446
        %v1459 = vpack.c.b16 %v1449, %v1448
        %v1460 = vpack.c.b16 %v1451, %v1450
        %v1461 = vpack.c.b16 %v1453, %v1452
        %1470 = vmatprep.subr.bf16.mxu0 0
        %1471 = vmatpush1.bf16.msra.mxu0 %v1454
        %1472 = vmatprep.subr.bf16.mxu0 0
        %1473 = vmatpush1.bf16.msra.mxu0 %v1455
        %1474 = vmatprep.subr.bf16.mxu0 0
        %1475 = vmatpush1.bf16.msra.mxu0 %v1456
        %1476 = vmatprep.subr.bf16.mxu0 0
        %1477 = vmatpush1.bf16.msra.mxu0 %v1457
        %1478 = vmatprep.subr.bf16.mxu0 0
        %1479 = vmatpush1.bf16.msra.mxu0 %v1458
        %1480 = vmatprep.subr.bf16.mxu0 0
        %1481 = vmatpush1.bf16.msra.mxu0 %v1459
        %1482 = vmatprep.subr.bf16.mxu0 0
        %1483 = vmatpush1.bf16.msra.mxu0 %v1460
        %1484 = vmatprep.subr.bf16.mxu0 0
        %1485 = vmatpush1.bf16.msra.mxu0 %v1461
        %1486 = vmatprep.subr.bf16.mxu0 0
        %1487 = vmatpush1.bf16.msra.mxu0 0
        %1488 = vmatprep.subr.bf16.mxu0 0
        %1489 = vmatpush1.bf16.msra.mxu0 0
        %1490 = vmatprep.subr.bf16.mxu0 0
        %1491 = vmatpush1.bf16.msra.mxu0 0
        %1492 = vmatprep.subr.bf16.mxu0 0
        %1493 = vmatpush1.bf16.msra.mxu0 0
        %1494 = vmatprep.subr.bf16.mxu0 0
        %1495 = vmatpush1.bf16.msra.mxu0 0
        %1496 = vmatprep.subr.bf16.mxu0 0
        %1497 = vmatpush1.bf16.msra.mxu0 0
        %1498 = vmatprep.subr.bf16.mxu0 0
        %1499 = vmatpush1.bf16.msra.mxu0 0
        %1500 = vmatprep.subr.bf16.mxu0 0
        %1501 = vmatpush1.bf16.msra.mxu0 0
        %1502 = vmatprep.mubr.bf16.mxu0 0
        %1503 = vmatmul.mubr.bf16.gmra.mrb[0].mxu0 %v1404
        %v1504 = vpop.f32.mrb[0].mxu0
        %v1505 = vadd.f32 0.0, %v1504
        %v1506 = vpop.f32.mrb[0].mxu0
        %v1507 = vpop.f32.mrb[0].mxu0
        %v1508 = vadd.f32 0.0, %v1507
        %v1509 = vpop.f32.mrb[0].mxu0
        %1510 = vdwg.mxu0
        %v1511 = vadd.f32 %v1350, %v1505
        %v1512 = vadd.f32 %v1351, %v1508
        %s1513 = scalar_lea.vmem [#allocation7], 40
        %v1514 = vld [vmem:[%s1513] sm:$0xf]
        %v1515 = vld [vmem:[%s1513 + $0x4] sm:$0xf]
        %v1518 = vunpack.c.l.b16 %v1514
        %v1519 = vunpack.c.l.b16 %v1515
        %v1520 = vpack.c.b16 %v1519, %v1518
        %v1522 = vsel %vm720, %v1520, 0
        %1524 = vmatprep.subr.bf16.mxu0 0
        %1525 = vmatpush1.bf16.msra.mxu0 %v709
        %1526 = vmatprep.subr.bf16.mxu0 0
        %1527 = vmatpush1.bf16.msra.mxu0 %v710
        %1528 = vmatprep.subr.bf16.mxu0 0
        %1529 = vmatpush1.bf16.msra.mxu0 %v711
        %1530 = vmatprep.subr.bf16.mxu0 0
        %1531 = vmatpush1.bf16.msra.mxu0 %v712
        %1532 = vmatprep.subr.bf16.mxu0 0
        %1533 = vmatpush1.bf16.msra.mxu0 0
        %1534 = vmatprep.subr.bf16.mxu0 0
        %1535 = vmatpush1.bf16.msra.mxu0 0
        %1536 = vmatprep.subr.bf16.mxu0 0
        %1537 = vmatpush1.bf16.msra.mxu0 0
        %1538 = vmatprep.subr.bf16.mxu0 0
        %1539 = vmatpush1.bf16.msra.mxu0 0
        %1540 = vmatprep.subr.bf16.mxu0 0
        %1541 = vmatpush1.bf16.msra.mxu0 0
        %1542 = vmatprep.subr.bf16.mxu0 0
        %1543 = vmatpush1.bf16.msra.mxu0 0
        %1544 = vmatprep.subr.bf16.mxu0 0
        %1545 = vmatpush1.bf16.msra.mxu0 0
        %1546 = vmatprep.subr.bf16.mxu0 0
        %1547 = vmatpush1.bf16.msra.mxu0 0
        %1548 = vmatprep.subr.bf16.mxu0 0
        %1549 = vmatpush1.bf16.msra.mxu0 0
        %1550 = vmatprep.subr.bf16.mxu0 0
        %1551 = vmatpush1.bf16.msra.mxu0 0
        %1552 = vmatprep.subr.bf16.mxu0 0
        %1553 = vmatpush1.bf16.msra.mxu0 0
        %1554 = vmatprep.subr.bf16.mxu0 0
        %1555 = vmatpush1.bf16.msra.mxu0 0
        %1556 = vmatprep.mubr.bf16.mxu0 0
        %1557 = vmatmul.mubr.bf16.gmra.mrb[0].mxu0 %v1522
        %v1558 = vpop.f32.mrb[0].mxu0
        %v1559 = vadd.f32 0.0, %v1558
        %v1560 = vpop.f32.mrb[0].mxu0
        %v1561 = vpop.f32.mrb[0].mxu0
        %v1562 = vadd.f32 0.0, %v1561
        %v1563 = vpop.f32.mrb[0].mxu0
        %1564 = vdwg.mxu0
        %v1565 = vpack.c.bf16 %v1562, %v1559
        %s1566 = scalar_lea.vmem [#allocation8], 320
        %v1567 = vld [vmem:[%s1566] sm:$0xf]
        %v1568 = vld [vmem:[%s1566 + $0x4] sm:$0xf]
        %v1569 = vld [vmem:[%s1566 + $0x8] sm:$0xf]
        %v1570 = vld [vmem:[%s1566 + $0xc] sm:$0xf]
        %v1571 = vld [vmem:[%s1566 + $0x10] sm:$0xf]
        %v1572 = vld [vmem:[%s1566 + $0x14] sm:$0xf]
        %v1573 = vld [vmem:[%s1566 + $0x18] sm:$0xf]
        %v1574 = vld [vmem:[%s1566 + $0x1c] sm:$0xf]
        %v1575 = vld [vmem:[%s1566 + $0x20] sm:$0xf]
        %v1576 = vld [vmem:[%s1566 + $0x24] sm:$0xf]
        %v1577 = vld [vmem:[%s1566 + $0x28] sm:$0xf]
        %v1578 = vld [vmem:[%s1566 + $0x2c] sm:$0xf]
        %v1579 = vld [vmem:[%s1566 + $0x30] sm:$0xf]
        %v1580 = vld [vmem:[%s1566 + $0x34] sm:$0xf]
        %v1581 = vld [vmem:[%s1566 + $0x38] sm:$0xf]
        %v1582 = vld [vmem:[%s1566 + $0x3c] sm:$0xf]
        %v1599 = vunpack.c.l.b16 %v1567
        %v1600 = vunpack.c.l.b16 %v1568
        %v1601 = vunpack.c.l.b16 %v1569
        %v1602 = vunpack.c.l.b16 %v1570
        %v1603 = vunpack.c.l.b16 %v1571
        %v1604 = vunpack.c.l.b16 %v1572
        %v1605 = vunpack.c.l.b16 %v1573
        %v1606 = vunpack.c.l.b16 %v1574
        %v1607 = vunpack.c.l.b16 %v1575
        %v1608 = vunpack.c.l.b16 %v1576
        %v1609 = vunpack.c.l.b16 %v1577
        %v1610 = vunpack.c.l.b16 %v1578
        %v1611 = vunpack.c.l.b16 %v1579
        %v1612 = vunpack.c.l.b16 %v1580
        %v1613 = vunpack.c.l.b16 %v1581
        %v1614 = vunpack.c.l.b16 %v1582
        %v1615 = vpack.c.b16 %v1600, %v1599
        %v1616 = vpack.c.b16 %v1602, %v1601
        %v1617 = vpack.c.b16 %v1604, %v1603
        %v1618 = vpack.c.b16 %v1606, %v1605
        %v1619 = vpack.c.b16 %v1608, %v1607
        %v1620 = vpack.c.b16 %v1610, %v1609
        %v1621 = vpack.c.b16 %v1612, %v1611
        %v1622 = vpack.c.b16 %v1614, %v1613
        %1631 = vmatprep.subr.bf16.mxu0 0
        %1632 = vmatpush1.bf16.msra.mxu0 %v1615
        %1633 = vmatprep.subr.bf16.mxu0 0
        %1634 = vmatpush1.bf16.msra.mxu0 %v1616
        %1635 = vmatprep.subr.bf16.mxu0 0
        %1636 = vmatpush1.bf16.msra.mxu0 %v1617
        %1637 = vmatprep.subr.bf16.mxu0 0
        %1638 = vmatpush1.bf16.msra.mxu0 %v1618
        %1639 = vmatprep.subr.bf16.mxu0 0
        %1640 = vmatpush1.bf16.msra.mxu0 %v1619
        %1641 = vmatprep.subr.bf16.mxu0 0
        %1642 = vmatpush1.bf16.msra.mxu0 %v1620
        %1643 = vmatprep.subr.bf16.mxu0 0
        %1644 = vmatpush1.bf16.msra.mxu0 %v1621
        %1645 = vmatprep.subr.bf16.mxu0 0
        %1646 = vmatpush1.bf16.msra.mxu0 %v1622
        %1647 = vmatprep.subr.bf16.mxu0 0
        %1648 = vmatpush1.bf16.msra.mxu0 0
        %1649 = vmatprep.subr.bf16.mxu0 0
        %1650 = vmatpush1.bf16.msra.mxu0 0
        %1651 = vmatprep.subr.bf16.mxu0 0
        %1652 = vmatpush1.bf16.msra.mxu0 0
        %1653 = vmatprep.subr.bf16.mxu0 0
        %1654 = vmatpush1.bf16.msra.mxu0 0
        %1655 = vmatprep.subr.bf16.mxu0 0
        %1656 = vmatpush1.bf16.msra.mxu0 0
        %1657 = vmatprep.subr.bf16.mxu0 0
        %1658 = vmatpush1.bf16.msra.mxu0 0
        %1659 = vmatprep.subr.bf16.mxu0 0
        %1660 = vmatpush1.bf16.msra.mxu0 0
        %1661 = vmatprep.subr.bf16.mxu0 0
        %1662 = vmatpush1.bf16.msra.mxu0 0
        %1663 = vmatprep.mubr.bf16.mxu0 0
        %1664 = vmatmul.mubr.bf16.gmra.mrb[0].mxu0 %v1565
        %v1665 = vpop.f32.mrb[0].mxu0
        %v1666 = vadd.f32 0.0, %v1665
        %v1667 = vpop.f32.mrb[0].mxu0
        %v1668 = vpop.f32.mrb[0].mxu0
        %v1669 = vadd.f32 0.0, %v1668
        %v1670 = vpop.f32.mrb[0].mxu0
        %1671 = vdwg.mxu0
        %v1672 = vadd.f32 %v1511, %v1666
        %v1673 = vadd.f32 %v1512, %v1669
        %s1674 = scalar_lea.vmem [#allocation7], 48
        %v1675 = vld [vmem:[%s1674] sm:$0xf]
        %v1676 = vld [vmem:[%s1674 + $0x4] sm:$0xf]
        %v1679 = vunpack.c.l.b16 %v1675
        %v1680 = vunpack.c.l.b16 %v1676
        %v1681 = vpack.c.b16 %v1680, %v1679
        %v1683 = vsel %vm720, %v1681, 0
        %1685 = vmatprep.subr.bf16.mxu0 0
        %1686 = vmatpush1.bf16.msra.mxu0 %v709
        %1687 = vmatprep.subr.bf16.mxu0 0
        %1688 = vmatpush1.bf16.msra.mxu0 %v710
        %1689 = vmatprep.subr.bf16.mxu0 0
        %1690 = vmatpush1.bf16.msra.mxu0 %v711
        %1691 = vmatprep.subr.bf16.mxu0 0
        %1692 = vmatpush1.bf16.msra.mxu0 %v712
        %1693 = vmatprep.subr.bf16.mxu0 0
        %1694 = vmatpush1.bf16.msra.mxu0 0
        %1695 = vmatprep.subr.bf16.mxu0 0
        %1696 = vmatpush1.bf16.msra.mxu0 0
        %1697 = vmatprep.subr.bf16.mxu0 0
        %1698 = vmatpush1.bf16.msra.mxu0 0
        %1699 = vmatprep.subr.bf16.mxu0 0
        %1700 = vmatpush1.bf16.msra.mxu0 0
        %1701 = vmatprep.subr.bf16.mxu0 0
        %1702 = vmatpush1.bf16.msra.mxu0 0
        %1703 = vmatprep.subr.bf16.mxu0 0
        %1704 = vmatpush1.bf16.msra.mxu0 0
        %1705 = vmatprep.subr.bf16.mxu0 0
        %1706 = vmatpush1.bf16.msra.mxu0 0
        %1707 = vmatprep.subr.bf16.mxu0 0
        %1708 = vmatpush1.bf16.msra.mxu0 0
        %1709 = vmatprep.subr.bf16.mxu0 0
        %1710 = vmatpush1.bf16.msra.mxu0 0
        %1711 = vmatprep.subr.bf16.mxu0 0
        %1712 = vmatpush1.bf16.msra.mxu0 0
        %1713 = vmatprep.subr.bf16.mxu0 0
        %1714 = vmatpush1.bf16.msra.mxu0 0
        %1715 = vmatprep.subr.bf16.mxu0 0
        %1716 = vmatpush1.bf16.msra.mxu0 0
        %1717 = vmatprep.mubr.bf16.mxu0 0
        %1718 = vmatmul.mubr.bf16.gmra.mrb[0].mxu0 %v1683
        %v1719 = vpop.f32.mrb[0].mxu0
        %v1720 = vadd.f32 0.0, %v1719
        %v1721 = vpop.f32.mrb[0].mxu0
        %v1722 = vpop.f32.mrb[0].mxu0
        %v1723 = vadd.f32 0.0, %v1722
        %v1724 = vpop.f32.mrb[0].mxu0
        %1725 = vdwg.mxu0
        %v1726 = vpack.c.bf16 %v1723, %v1720
        %s1727 = scalar_lea.vmem [#allocation8], 384
        %v1728 = vld [vmem:[%s1727] sm:$0xf]
        %v1729 = vld [vmem:[%s1727 + $0x4] sm:$0xf]
        %v1730 = vld [vmem:[%s1727 + $0x8] sm:$0xf]
        %v1731 = vld [vmem:[%s1727 + $0xc] sm:$0xf]
        %v1732 = vld [vmem:[%s1727 + $0x10] sm:$0xf]
        %v1733 = vld [vmem:[%s1727 + $0x14] sm:$0xf]
        %v1734 = vld [vmem:[%s1727 + $0x18] sm:$0xf]
        %v1735 = vld [vmem:[%s1727 + $0x1c] sm:$0xf]
        %v1736 = vld [vmem:[%s1727 + $0x20] sm:$0xf]
        %v1737 = vld [vmem:[%s1727 + $0x24] sm:$0xf]
        %v1738 = vld [vmem:[%s1727 + $0x28] sm:$0xf]
        %v1739 = vld [vmem:[%s1727 + $0x2c] sm:$0xf]
        %v1740 = vld [vmem:[%s1727 + $0x30] sm:$0xf]
        %v1741 = vld [vmem:[%s1727 + $0x34] sm:$0xf]
        %v1742 = vld [vmem:[%s1727 + $0x38] sm:$0xf]
        %v1743 = vld [vmem:[%s1727 + $0x3c] sm:$0xf]
        %v1760 = vunpack.c.l.b16 %v1728
        %v1761 = vunpack.c.l.b16 %v1729
        %v1762 = vunpack.c.l.b16 %v1730
        %v1763 = vunpack.c.l.b16 %v1731
        %v1764 = vunpack.c.l.b16 %v1732
        %v1765 = vunpack.c.l.b16 %v1733
        %v1766 = vunpack.c.l.b16 %v1734
        %v1767 = vunpack.c.l.b16 %v1735
        %v1768 = vunpack.c.l.b16 %v1736
        %v1769 = vunpack.c.l.b16 %v1737
        %v1770 = vunpack.c.l.b16 %v1738
        %v1771 = vunpack.c.l.b16 %v1739
        %v1772 = vunpack.c.l.b16 %v1740
        %v1773 = vunpack.c.l.b16 %v1741
        %v1774 = vunpack.c.l.b16 %v1742
        %v1775 = vunpack.c.l.b16 %v1743
        %v1776 = vpack.c.b16 %v1761, %v1760
        %v1777 = vpack.c.b16 %v1763, %v1762
        %v1778 = vpack.c.b16 %v1765, %v1764
        %v1779 = vpack.c.b16 %v1767, %v1766
        %v1780 = vpack.c.b16 %v1769, %v1768
        %v1781 = vpack.c.b16 %v1771, %v1770
        %v1782 = vpack.c.b16 %v1773, %v1772
        %v1783 = vpack.c.b16 %v1775, %v1774
        %1792 = vmatprep.subr.bf16.mxu0 0
        %1793 = vmatpush1.bf16.msra.mxu0 %v1776
        %1794 = vmatprep.subr.bf16.mxu0 0
        %1795 = vmatpush1.bf16.msra.mxu0 %v1777
        %1796 = vmatprep.subr.bf16.mxu0 0
        %1797 = vmatpush1.bf16.msra.mxu0 %v1778
        %1798 = vmatprep.subr.bf16.mxu0 0
        %1799 = vmatpush1.bf16.msra.mxu0 %v1779
        %1800 = vmatprep.subr.bf16.mxu0 0
        %1801 = vmatpush1.bf16.msra.mxu0 %v1780
        %1802 = vmatprep.subr.bf16.mxu0 0
        %1803 = vmatpush1.bf16.msra.mxu0 %v1781
        %1804 = vmatprep.subr.bf16.mxu0 0
        %1805 = vmatpush1.bf16.msra.mxu0 %v1782
        %1806 = vmatprep.subr.bf16.mxu0 0
        %1807 = vmatpush1.bf16.msra.mxu0 %v1783
        %1808 = vmatprep.subr.bf16.mxu0 0
        %1809 = vmatpush1.bf16.msra.mxu0 0
        %1810 = vmatprep.subr.bf16.mxu0 0
        %1811 = vmatpush1.bf16.msra.mxu0 0
        %1812 = vmatprep.subr.bf16.mxu0 0
        %1813 = vmatpush1.bf16.msra.mxu0 0
        %1814 = vmatprep.subr.bf16.mxu0 0
        %1815 = vmatpush1.bf16.msra.mxu0 0
        %1816 = vmatprep.subr.bf16.mxu0 0
        %1817 = vmatpush1.bf16.msra.mxu0 0
        %1818 = vmatprep.subr.bf16.mxu0 0
        %1819 = vmatpush1.bf16.msra.mxu0 0
        %1820 = vmatprep.subr.bf16.mxu0 0
        %1821 = vmatpush1.bf16.msra.mxu0 0
        %1822 = vmatprep.subr.bf16.mxu0 0
        %1823 = vmatpush1.bf16.msra.mxu0 0
        %1824 = vmatprep.mubr.bf16.mxu0 0
        %1825 = vmatmul.mubr.bf16.gmra.mrb[0].mxu0 %v1726
        %v1826 = vpop.f32.mrb[0].mxu0
        %v1827 = vadd.f32 0.0, %v1826
        %v1828 = vpop.f32.mrb[0].mxu0
        %v1829 = vpop.f32.mrb[0].mxu0
        %v1830 = vadd.f32 0.0, %v1829
        %v1831 = vpop.f32.mrb[0].mxu0
        %1832 = vdwg.mxu0
        %v1833 = vadd.f32 %v1672, %v1827
        %v1834 = vadd.f32 %v1673, %v1830
        %s1835 = scalar_lea.vmem [#allocation7], 56
        %v1836 = vld [vmem:[%s1835] sm:$0xf]
        %v1837 = vld [vmem:[%s1835 + $0x4] sm:$0xf]
        %v1840 = vunpack.c.l.b16 %v1836
        %v1841 = vunpack.c.l.b16 %v1837
        %v1842 = vpack.c.b16 %v1841, %v1840
        %v1844 = vsel %vm720, %v1842, 0
        %1846 = vmatprep.subr.bf16.mxu0 0
        %1847 = vmatpush1.bf16.msra.mxu0 %v709
        %1848 = vmatprep.subr.bf16.mxu0 0
        %1849 = vmatpush1.bf16.msra.mxu0 %v710
        %1850 = vmatprep.subr.bf16.mxu0 0
        %1851 = vmatpush1.bf16.msra.mxu0 %v711
        %1852 = vmatprep.subr.bf16.mxu0 0
        %1853 = vmatpush1.bf16.msra.mxu0 %v712
        %1854 = vmatprep.subr.bf16.mxu0 0
        %1855 = vmatpush1.bf16.msra.mxu0 0
        %1856 = vmatprep.subr.bf16.mxu0 0
        %1857 = vmatpush1.bf16.msra.mxu0 0
        %1858 = vmatprep.subr.bf16.mxu0 0
        %1859 = vmatpush1.bf16.msra.mxu0 0
        %1860 = vmatprep.subr.bf16.mxu0 0
        %1861 = vmatpush1.bf16.msra.mxu0 0
        %1862 = vmatprep.subr.bf16.mxu0 0
        %1863 = vmatpush1.bf16.msra.mxu0 0
        %1864 = vmatprep.subr.bf16.mxu0 0
        %1865 = vmatpush1.bf16.msra.mxu0 0
        %1866 = vmatprep.subr.bf16.mxu0 0
        %1867 = vmatpush1.bf16.msra.mxu0 0
        %1868 = vmatprep.subr.bf16.mxu0 0
        %1869 = vmatpush1.bf16.msra.mxu0 0
        %1870 = vmatprep.subr.bf16.mxu0 0
        %1871 = vmatpush1.bf16.msra.mxu0 0
        %1872 = vmatprep.subr.bf16.mxu0 0
        %1873 = vmatpush1.bf16.msra.mxu0 0
        %1874 = vmatprep.subr.bf16.mxu0 0
        %1875 = vmatpush1.bf16.msra.mxu0 0
        %1876 = vmatprep.subr.bf16.mxu0 0
        %1877 = vmatpush1.bf16.msra.mxu0 0
        %1878 = vmatprep.mubr.bf16.mxu0 0
        %1879 = vmatmul.mubr.bf16.gmra.mrb[0].mxu0 %v1844
        %v1880 = vpop.f32.mrb[0].mxu0
        %v1881 = vadd.f32 0.0, %v1880
        %v1882 = vpop.f32.mrb[0].mxu0
        %v1883 = vpop.f32.mrb[0].mxu0
        %v1884 = vadd.f32 0.0, %v1883
        %v1885 = vpop.f32.mrb[0].mxu0
        %1886 = vdwg.mxu0
        %v1887 = vpack.c.bf16 %v1884, %v1881
        %s1888 = scalar_lea.vmem [#allocation8], 448
        %v1889 = vld [vmem:[%s1888] sm:$0xf]
        %v1890 = vld [vmem:[%s1888 + $0x4] sm:$0xf]
        %v1891 = vld [vmem:[%s1888 + $0x8] sm:$0xf]
        %v1892 = vld [vmem:[%s1888 + $0xc] sm:$0xf]
        %v1893 = vld [vmem:[%s1888 + $0x10] sm:$0xf]
        %v1894 = vld [vmem:[%s1888 + $0x14] sm:$0xf]
        %v1895 = vld [vmem:[%s1888 + $0x18] sm:$0xf]
        %v1896 = vld [vmem:[%s1888 + $0x1c] sm:$0xf]
        %v1897 = vld [vmem:[%s1888 + $0x20] sm:$0xf]
        %v1898 = vld [vmem:[%s1888 + $0x24] sm:$0xf]
        %v1899 = vld [vmem:[%s1888 + $0x28] sm:$0xf]
        %v1900 = vld [vmem:[%s1888 + $0x2c] sm:$0xf]
        %v1901 = vld [vmem:[%s1888 + $0x30] sm:$0xf]
        %v1902 = vld [vmem:[%s1888 + $0x34] sm:$0xf]
        %v1903 = vld [vmem:[%s1888 + $0x38] sm:$0xf]
        %v1904 = vld [vmem:[%s1888 + $0x3c] sm:$0xf]
        %v1921 = vunpack.c.l.b16 %v1889
        %v1922 = vunpack.c.l.b16 %v1890
        %v1923 = vunpack.c.l.b16 %v1891
        %v1924 = vunpack.c.l.b16 %v1892
        %v1925 = vunpack.c.l.b16 %v1893
        %v1926 = vunpack.c.l.b16 %v1894
        %v1927 = vunpack.c.l.b16 %v1895
        %v1928 = vunpack.c.l.b16 %v1896
        %v1929 = vunpack.c.l.b16 %v1897
        %v1930 = vunpack.c.l.b16 %v1898
        %v1931 = vunpack.c.l.b16 %v1899
        %v1932 = vunpack.c.l.b16 %v1900
        %v1933 = vunpack.c.l.b16 %v1901
        %v1934 = vunpack.c.l.b16 %v1902
        %v1935 = vunpack.c.l.b16 %v1903
        %v1936 = vunpack.c.l.b16 %v1904
        %v1937 = vpack.c.b16 %v1922, %v1921
        %v1938 = vpack.c.b16 %v1924, %v1923
        %v1939 = vpack.c.b16 %v1926, %v1925
        %v1940 = vpack.c.b16 %v1928, %v1927
        %v1941 = vpack.c.b16 %v1930, %v1929
        %v1942 = vpack.c.b16 %v1932, %v1931
        %v1943 = vpack.c.b16 %v1934, %v1933
        %v1944 = vpack.c.b16 %v1936, %v1935
        %1953 = vmatprep.subr.bf16.mxu0 0
        %1954 = vmatpush1.bf16.msra.mxu0 %v1937
        %1955 = vmatprep.subr.bf16.mxu0 0
        %1956 = vmatpush1.bf16.msra.mxu0 %v1938
        %1957 = vmatprep.subr.bf16.mxu0 0
        %1958 = vmatpush1.bf16.msra.mxu0 %v1939
        %1959 = vmatprep.subr.bf16.mxu0 0
        %1960 = vmatpush1.bf16.msra.mxu0 %v1940
        %1961 = vmatprep.subr.bf16.mxu0 0
        %1962 = vmatpush1.bf16.msra.mxu0 %v1941
        %1963 = vmatprep.subr.bf16.mxu0 0
        %1964 = vmatpush1.bf16.msra.mxu0 %v1942
        %1965 = vmatprep.subr.bf16.mxu0 0
        %1966 = vmatpush1.bf16.msra.mxu0 %v1943
        %1967 = vmatprep.subr.bf16.mxu0 0
        %1968 = vmatpush1.bf16.msra.mxu0 %v1944
        %1969 = vmatprep.subr.bf16.mxu0 0
        %1970 = vmatpush1.bf16.msra.mxu0 0
        %1971 = vmatprep.subr.bf16.mxu0 0
        %1972 = vmatpush1.bf16.msra.mxu0 0
        %1973 = vmatprep.subr.bf16.mxu0 0
        %1974 = vmatpush1.bf16.msra.mxu0 0
        %1975 = vmatprep.subr.bf16.mxu0 0
        %1976 = vmatpush1.bf16.msra.mxu0 0
        %1977 = vmatprep.subr.bf16.mxu0 0
        %1978 = vmatpush1.bf16.msra.mxu0 0
        %1979 = vmatprep.subr.bf16.mxu0 0
        %1980 = vmatpush1.bf16.msra.mxu0 0
        %1981 = vmatprep.subr.bf16.mxu0 0
        %1982 = vmatpush1.bf16.msra.mxu0 0
        %1983 = vmatprep.subr.bf16.mxu0 0
        %1984 = vmatpush1.bf16.msra.mxu0 0
        %1985 = vmatprep.mubr.bf16.mxu0 0
        %1986 = vmatmul.mubr.bf16.gmra.mrb[0].mxu0 %v1887
        %v1987 = vpop.f32.mrb[0].mxu0
        %v1988 = vadd.f32 0.0, %v1987
        %v1989 = vpop.f32.mrb[0].mxu0
        %v1990 = vpop.f32.mrb[0].mxu0
        %v1991 = vadd.f32 0.0, %v1990
        %v1992 = vpop.f32.mrb[0].mxu0
        %1993 = vdwg.mxu0
        %v1994 = vadd.f32 %v1833, %v1988
        %v1995 = vadd.f32 %v1834, %v1991
        %s1996 = scalar_lea.vmem [#allocation7], 64
        %v1997 = vld [vmem:[%s1996] sm:$0xf]
        %v1998 = vld [vmem:[%s1996 + $0x4] sm:$0xf]
        %v2001 = vunpack.c.l.b16 %v1997
        %v2002 = vunpack.c.l.b16 %v1998
        %v2003 = vpack.c.b16 %v2002, %v2001
        %v2005 = vsel %vm720, %v2003, 0
        %2007 = vmatprep.subr.bf16.mxu0 0
        %2008 = vmatpush1.bf16.msra.mxu0 %v709
        %2009 = vmatprep.subr.bf16.mxu0 0
        %2010 = vmatpush1.bf16.msra.mxu0 %v710
        %2011 = vmatprep.subr.bf16.mxu0 0
        %2012 = vmatpush1.bf16.msra.mxu0 %v711
        %2013 = vmatprep.subr.bf16.mxu0 0
        %2014 = vmatpush1.bf16.msra.mxu0 %v712
        %2015 = vmatprep.subr.bf16.mxu0 0
        %2016 = vmatpush1.bf16.msra.mxu0 0
        %2017 = vmatprep.subr.bf16.mxu0 0
        %2018 = vmatpush1.bf16.msra.mxu0 0
        %2019 = vmatprep.subr.bf16.mxu0 0
        %2020 = vmatpush1.bf16.msra.mxu0 0
        %2021 = vmatprep.subr.bf16.mxu0 0
        %2022 = vmatpush1.bf16.msra.mxu0 0
        %2023 = vmatprep.subr.bf16.mxu0 0
        %2024 = vmatpush1.bf16.msra.mxu0 0
        %2025 = vmatprep.subr.bf16.mxu0 0
        %2026 = vmatpush1.bf16.msra.mxu0 0
        %2027 = vmatprep.subr.bf16.mxu0 0
        %2028 = vmatpush1.bf16.msra.mxu0 0
        %2029 = vmatprep.subr.bf16.mxu0 0
        %2030 = vmatpush1.bf16.msra.mxu0 0
        %2031 = vmatprep.subr.bf16.mxu0 0
        %2032 = vmatpush1.bf16.msra.mxu0 0
        %2033 = vmatprep.subr.bf16.mxu0 0
        %2034 = vmatpush1.bf16.msra.mxu0 0
        %2035 = vmatprep.subr.bf16.mxu0 0
        %2036 = vmatpush1.bf16.msra.mxu0 0
        %2037 = vmatprep.subr.bf16.mxu0 0
        %2038 = vmatpush1.bf16.msra.mxu0 0
        %2039 = vmatprep.mubr.bf16.mxu0 0
        %2040 = vmatmul.mubr.bf16.gmra.mrb[0].mxu0 %v2005
        %v2041 = vpop.f32.mrb[0].mxu0
        %v2042 = vadd.f32 0.0, %v2041
        %v2043 = vpop.f32.mrb[0].mxu0
        %v2044 = vpop.f32.mrb[0].mxu0
        %v2045 = vadd.f32 0.0, %v2044
        %v2046 = vpop.f32.mrb[0].mxu0
        %2047 = vdwg.mxu0
        %v2048 = vpack.c.bf16 %v2045, %v2042
        %s2049 = scalar_lea.vmem [#allocation8], 512
        %v2050 = vld [vmem:[%s2049] sm:$0xf]
        %v2051 = vld [vmem:[%s2049 + $0x4] sm:$0xf]
        %v2052 = vld [vmem:[%s2049 + $0x8] sm:$0xf]
        %v2053 = vld [vmem:[%s2049 + $0xc] sm:$0xf]
        %v2054 = vld [vmem:[%s2049 + $0x10] sm:$0xf]
        %v2055 = vld [vmem:[%s2049 + $0x14] sm:$0xf]
        %v2056 = vld [vmem:[%s2049 + $0x18] sm:$0xf]
        %v2057 = vld [vmem:[%s2049 + $0x1c] sm:$0xf]
        %v2058 = vld [vmem:[%s2049 + $0x20] sm:$0xf]
        %v2059 = vld [vmem:[%s2049 + $0x24] sm:$0xf]
        %v2060 = vld [vmem:[%s2049 + $0x28] sm:$0xf]
        %v2061 = vld [vmem:[%s2049 + $0x2c] sm:$0xf]
        %v2062 = vld [vmem:[%s2049 + $0x30] sm:$0xf]
        %v2063 = vld [vmem:[%s2049 + $0x34] sm:$0xf]
        %v2064 = vld [vmem:[%s2049 + $0x38] sm:$0xf]
        %v2065 = vld [vmem:[%s2049 + $0x3c] sm:$0xf]
        %v2082 = vunpack.c.l.b16 %v2050
        %v2083 = vunpack.c.l.b16 %v2051
        %v2084 = vunpack.c.l.b16 %v2052
        %v2085 = vunpack.c.l.b16 %v2053
        %v2086 = vunpack.c.l.b16 %v2054
        %v2087 = vunpack.c.l.b16 %v2055
        %v2088 = vunpack.c.l.b16 %v2056
        %v2089 = vunpack.c.l.b16 %v2057
        %v2090 = vunpack.c.l.b16 %v2058
        %v2091 = vunpack.c.l.b16 %v2059
        %v2092 = vunpack.c.l.b16 %v2060
        %v2093 = vunpack.c.l.b16 %v2061
        %v2094 = vunpack.c.l.b16 %v2062
        %v2095 = vunpack.c.l.b16 %v2063
        %v2096 = vunpack.c.l.b16 %v2064
        %v2097 = vunpack.c.l.b16 %v2065
        %v2098 = vpack.c.b16 %v2083, %v2082
        %v2099 = vpack.c.b16 %v2085, %v2084
        %v2100 = vpack.c.b16 %v2087, %v2086
        %v2101 = vpack.c.b16 %v2089, %v2088
        %v2102 = vpack.c.b16 %v2091, %v2090
        %v2103 = vpack.c.b16 %v2093, %v2092
        %v2104 = vpack.c.b16 %v2095, %v2094
        %v2105 = vpack.c.b16 %v2097, %v2096
        %2114 = vmatprep.subr.bf16.mxu0 0
        %2115 = vmatpush1.bf16.msra.mxu0 %v2098
        %2116 = vmatprep.subr.bf16.mxu0 0
        %2117 = vmatpush1.bf16.msra.mxu0 %v2099
        %2118 = vmatprep.subr.bf16.mxu0 0
        %2119 = vmatpush1.bf16.msra.mxu0 %v2100
        %2120 = vmatprep.subr.bf16.mxu0 0
        %2121 = vmatpush1.bf16.msra.mxu0 %v2101
        %2122 = vmatprep.subr.bf16.mxu0 0
        %2123 = vmatpush1.bf16.msra.mxu0 %v2102
        %2124 = vmatprep.subr.bf16.mxu0 0
        %2125 = vmatpush1.bf16.msra.mxu0 %v2103
        %2126 = vmatprep.subr.bf16.mxu0 0
        %2127 = vmatpush1.bf16.msra.mxu0 %v2104
        %2128 = vmatprep.subr.bf16.mxu0 0
        %2129 = vmatpush1.bf16.msra.mxu0 %v2105
        %2130 = vmatprep.subr.bf16.mxu0 0
        %2131 = vmatpush1.bf16.msra.mxu0 0
        %2132 = vmatprep.subr.bf16.mxu0 0
        %2133 = vmatpush1.bf16.msra.mxu0 0
        %2134 = vmatprep.subr.bf16.mxu0 0
        %2135 = vmatpush1.bf16.msra.mxu0 0
        %2136 = vmatprep.subr.bf16.mxu0 0
        %2137 = vmatpush1.bf16.msra.mxu0 0
        %2138 = vmatprep.subr.bf16.mxu0 0
        %2139 = vmatpush1.bf16.msra.mxu0 0
        %2140 = vmatprep.subr.bf16.mxu0 0
        %2141 = vmatpush1.bf16.msra.mxu0 0
        %2142 = vmatprep.subr.bf16.mxu0 0
        %2143 = vmatpush1.bf16.msra.mxu0 0
        %2144 = vmatprep.subr.bf16.mxu0 0
        %2145 = vmatpush1.bf16.msra.mxu0 0
        %2146 = vmatprep.mubr.bf16.mxu0 0
        %2147 = vmatmul.mubr.bf16.gmra.mrb[0].mxu0 %v2048
        %v2148 = vpop.f32.mrb[0].mxu0
        %v2149 = vadd.f32 0.0, %v2148
        %v2150 = vpop.f32.mrb[0].mxu0
        %v2151 = vpop.f32.mrb[0].mxu0
        %v2152 = vadd.f32 0.0, %v2151
        %v2153 = vpop.f32.mrb[0].mxu0
        %2154 = vdwg.mxu0
        %v2155 = vadd.f32 %v1994, %v2149
        %v2156 = vadd.f32 %v1995, %v2152
        %v2157 = vld [vmem:[%s6 + $0x3] sm:$0x1]
        %v2158 = vld [vmem:[%s6 + $0x4] sm:$0x1]
        %v2159 = vld [vmem:[%s6 + $0x5] sm:$0x1]
        %v2160 = vlaneseq
        %v2161 = vshrl.u32 %v2160, 7
        %v2162 = vsub.s32 0, %v2161
        %v2163 = vrot.slane %v2157, %v2162
        %v2164 = vadd.f32 %v2155, %v2163
        %v2165 = vadd.f32 %v2156, %v2163
        %2166 = vadd.xlane.f32.xlu0 %v2164
        %v2167 = vpop.xlane.xlu0 %2166
        %2168 = vadd.xlane.f32.xlu0 %v2165
        %v2169 = vpop.xlane.xlu0 %2168
        %v2170 = vmul.f32 %v2167, 0.041666668
        %v2171 = vmul.f32 %v2169, 0.041666668
        %v2172 = vmul.f32 %v2164, %v2164
        %v2173 = vmul.f32 %v2165, %v2165
        %2174 = vadd.xlane.f32.xlu0 %v2172
        %v2175 = vpop.xlane.xlu0 %2174
        %2176 = vadd.xlane.f32.xlu0 %v2173
        %v2177 = vpop.xlane.xlu0 %2176
        %v2178 = vmul.f32 %v2175, 0.041666668
        %v2179 = vmul.f32 %v2177, 0.041666668
        %v2180 = vmul.f32 %v2170, %v2170
        %v2181 = vmul.f32 %v2171, %v2171
        %v2182 = vsub.f32 %v2178, %v2180
        %v2183 = vsub.f32 %v2179, %v2181
        %v2184 = vadd.f32 %v2182, 1e-06
        %v2185 = vadd.f32 %v2183, 1e-06
        %v2186 = vrsqrt.pop %v2184
        %v2187 = vrsqrt.pop %v2185
        %v2188 = vsub.f32 %v2164, %v2170
        %v2189 = vsub.f32 %v2165, %v2171
        %v2190 = vmul.f32 %v2188, %v2186
        %v2191 = vmul.f32 %v2189, %v2187
        %v2192 = vlaneseq
        %v2193 = vshrl.u32 %v2192, 7
        %v2194 = vsub.s32 0, %v2193
        %v2195 = vrot.slane %v2158, %v2194
        %v2196 = vmul.f32 %v2195, %v2190
        %v2197 = vmul.f32 %v2195, %v2191
        %v2198 = vlaneseq
        %v2199 = vshrl.u32 %v2198, 7
        %v2200 = vsub.s32 0, %v2199
        %v2201 = vrot.slane %v2159, %v2200
        %v2202 = vadd.f32 %v2196, %v2201
        %v2203 = vadd.f32 %v2197, %v2201
        %v2204 = vmul.f32 %v2202, 0.5
        %v2205 = vmul.f32 %v2203, 0.5
        %v2206 = vmul.f32 %v2202, 0.70710677
        %v2207 = vmul.f32 %v2203, 0.70710677
        %v2208 = verf.f32.pop %v2206
        %v2209 = verf.f32.pop %v2207
        %v2210 = vadd.f32 %v2208, 1.0
        %v2211 = vadd.f32 %v2209, 1.0
        %v2212 = vmul.f32 %v2204, %v2210
        %v2213 = vmul.f32 %v2205, %v2211
        %v2214 = vpack.c.bf16 %v2213, %v2212
        %v2215 = vld [vmem:[#allocation10] sm:$0xf]
        %v2216 = vld [vmem:[#allocation10 + $0x4] sm:$0xf]
        %v2219 = vunpack.c.l.b16 %v2215
        %v2220 = vunpack.c.l.b16 %v2216
        %v2221 = vpack.c.b16 %v2220, %v2219
        %vm2222 = vcmask 130048
        %v2224 = vsel %vm2222, %v2221, 0
        %2226 = vmatprep.subr.bf16.mxu0 0
        %2227 = vmatpush1.bf16.msra.mxu0 %v2214
        %2228 = vmatprep.subr.bf16.mxu0 0
        %2229 = vmatpush1.bf16.msra.mxu0 0
        %2230 = vmatprep.subr.bf16.mxu0 0
        %2231 = vmatpush1.bf16.msra.mxu0 0
        %2232 = vmatprep.subr.bf16.mxu0 0
        %2233 = vmatpush1.bf16.msra.mxu0 0
        %2234 = vmatprep.subr.bf16.mxu0 0
        %2235 = vmatpush1.bf16.msra.mxu0 0
        %2236 = vmatprep.subr.bf16.mxu0 0
        %2237 = vmatpush1.bf16.msra.mxu0 0
        %2238 = vmatprep.subr.bf16.mxu0 0
        %2239 = vmatpush1.bf16.msra.mxu0 0
        %2240 = vmatprep.subr.bf16.mxu0 0
        %2241 = vmatpush1.bf16.msra.mxu0 0
        %2242 = vmatprep.subr.bf16.mxu0 0
        %2243 = vmatpush1.bf16.msra.mxu0 0
        %2244 = vmatprep.subr.bf16.mxu0 0
        %2245 = vmatpush1.bf16.msra.mxu0 0
        %2246 = vmatprep.subr.bf16.mxu0 0
        %2247 = vmatpush1.bf16.msra.mxu0 0
        %2248 = vmatprep.subr.bf16.mxu0 0
        %2249 = vmatpush1.bf16.msra.mxu0 0
        %2250 = vmatprep.subr.bf16.mxu0 0
        %2251 = vmatpush1.bf16.msra.mxu0 0
        %2252 = vmatprep.subr.bf16.mxu0 0
        %2253 = vmatpush1.bf16.msra.mxu0 0
        %2254 = vmatprep.subr.bf16.mxu0 0
        %2255 = vmatpush1.bf16.msra.mxu0 0
        %2256 = vmatprep.subr.bf16.mxu0 0
        %2257 = vmatpush1.bf16.msra.mxu0 0
        %2258 = vmatprep.mubr.bf16.mxu0 0
        %2259 = vmatmul.mubr.bf16.gmra.mrb[0].mxu0 %v2224
        %v2260 = vpop.f32.mrb[0].mxu0
        %v2261 = vadd.f32 0.0, %v2260
        %v2262 = vpop.f32.mrb[0].mxu0
        %v2263 = vpop.f32.mrb[0].mxu0
        %v2264 = vadd.f32 0.0, %v2263
        %v2265 = vpop.f32.mrb[0].mxu0
        %2266 = vdwg.mxu0
        %v2267 = vpack.c.bf16 %v2264, %v2261
        %v2268 = vld [vmem:[#allocation11] sm:$0xf]
        %v2269 = vld [vmem:[#allocation11 + $0x4] sm:$0xf]
        %v2270 = vld [vmem:[#allocation11 + $0x8] sm:$0xf]
        %v2271 = vld [vmem:[#allocation11 + $0xc] sm:$0xf]
        %v2272 = vld [vmem:[#allocation11 + $0x10] sm:$0xf]
        %v2273 = vld [vmem:[#allocation11 + $0x14] sm:$0xf]
        %v2274 = vld [vmem:[#allocation11 + $0x18] sm:$0xf]
        %v2275 = vld [vmem:[#allocation11 + $0x1c] sm:$0xf]
        %v2276 = vld [vmem:[#allocation11 + $0x20] sm:$0xf]
        %v2277 = vld [vmem:[#allocation11 + $0x24] sm:$0xf]
        %v2278 = vld [vmem:[#allocation11 + $0x28] sm:$0xf]
        %v2279 = vld [vmem:[#allocation11 + $0x2c] sm:$0xf]
        %v2280 = vld [vmem:[#allocation11 + $0x30] sm:$0xf]
        %v2281 = vld [vmem:[#allocation11 + $0x34] sm:$0xf]
        %v2282 = vld [vmem:[#allocation11 + $0x38] sm:$0xf]
        %v2283 = vld [vmem:[#allocation11 + $0x3c] sm:$0xf]
        %s2284 = scalar_lea.vmem [#allocation10], 8
        %v2285 = vld [vmem:[%s2284] sm:$0xf]
        %v2286 = vld [vmem:[%s2284 + $0x4] sm:$0xf]
        %v2289 = vunpack.c.l.b16 %v2285
        %v2290 = vunpack.c.l.b16 %v2286
        %v2291 = vpack.c.b16 %v2290, %v2289
        %v2293 = vsel %vm2222, %v2291, 0
        %2295 = vmatprep.subr.bf16.mxu0 0
        %2296 = vmatpush1.bf16.msra.mxu0 %v2214
        %2297 = vmatprep.subr.bf16.mxu0 0
        %2298 = vmatpush1.bf16.msra.mxu0 0
        %2299 = vmatprep.subr.bf16.mxu0 0
        %2300 = vmatpush1.bf16.msra.mxu0 0
        %2301 = vmatprep.subr.bf16.mxu0 0
        %2302 = vmatpush1.bf16.msra.mxu0 0
        %2303 = vmatprep.subr.bf16.mxu0 0
        %2304 = vmatpush1.bf16.msra.mxu0 0
        %2305 = vmatprep.subr.bf16.mxu0 0
        %2306 = vmatpush1.bf16.msra.mxu0 0
        %2307 = vmatprep.subr.bf16.mxu0 0
        %2308 = vmatpush1.bf16.msra.mxu0 0
        %2309 = vmatprep.subr.bf16.mxu0 0
        %2310 = vmatpush1.bf16.msra.mxu0 0
        %2311 = vmatprep.subr.bf16.mxu0 0
        %2312 = vmatpush1.bf16.msra.mxu0 0
        %2313 = vmatprep.subr.bf16.mxu0 0
        %2314 = vmatpush1.bf16.msra.mxu0 0
        %2315 = vmatprep.subr.bf16.mxu0 0
        %2316 = vmatpush1.bf16.msra.mxu0 0
        %2317 = vmatprep.subr.bf16.mxu0 0
        %2318 = vmatpush1.bf16.msra.mxu0 0
        %2319 = vmatprep.subr.bf16.mxu0 0
        %2320 = vmatpush1.bf16.msra.mxu0 0
        %2321 = vmatprep.subr.bf16.mxu0 0
        %2322 = vmatpush1.bf16.msra.mxu0 0
        %2323 = vmatprep.subr.bf16.mxu0 0
        %2324 = vmatpush1.bf16.msra.mxu0 0
        %2325 = vmatprep.subr.bf16.mxu0 0
        %2326 = vmatpush1.bf16.msra.mxu0 0
        %2327 = vmatprep.mubr.bf16.mxu0 0
        %2328 = vmatmul.mubr.bf16.gmra.mrb[0].mxu0 %v2293
        %v2329 = vpop.f32.mrb[0].mxu0
        %v2330 = vadd.f32 0.0, %v2329
        %v2331 = vpop.f32.mrb[0].mxu0
        %v2332 = vpop.f32.mrb[0].mxu0
        %v2333 = vadd.f32 0.0, %v2332
        %v2334 = vpop.f32.mrb[0].mxu0
        %2335 = vdwg.mxu0
        %v2336 = vpack.c.bf16 %v2333, %v2330
        %s2337 = scalar_lea.vmem [#allocation11], 64
        %v2338 = vld [vmem:[%s2337] sm:$0xf]
        %v2339 = vld [vmem:[%s2337 + $0x4] sm:$0xf]
        %v2340 = vld [vmem:[%s2337 + $0x8] sm:$0xf]
        %v2341 = vld [vmem:[%s2337 + $0xc] sm:$0xf]
        %v2342 = vld [vmem:[%s2337 + $0x10] sm:$0xf]
        %v2343 = vld [vmem:[%s2337 + $0x14] sm:$0xf]
        %v2344 = vld [vmem:[%s2337 + $0x18] sm:$0xf]
        %v2345 = vld [vmem:[%s2337 + $0x1c] sm:$0xf]
        %v2346 = vld [vmem:[%s2337 + $0x20] sm:$0xf]
        %v2347 = vld [vmem:[%s2337 + $0x24] sm:$0xf]
        %v2348 = vld [vmem:[%s2337 + $0x28] sm:$0xf]
        %v2349 = vld [vmem:[%s2337 + $0x2c] sm:$0xf]
        %v2350 = vld [vmem:[%s2337 + $0x30] sm:$0xf]
        %v2351 = vld [vmem:[%s2337 + $0x34] sm:$0xf]
        %v2352 = vld [vmem:[%s2337 + $0x38] sm:$0xf]
        %v2353 = vld [vmem:[%s2337 + $0x3c] sm:$0xf]
        %v2370 = vunpack.c.l.b16 %v2338
        %v2371 = vunpack.c.l.b16 %v2339
        %v2372 = vunpack.c.l.b16 %v2340
        %v2373 = vunpack.c.l.b16 %v2341
        %v2374 = vunpack.c.l.b16 %v2342
        %v2375 = vunpack.c.l.b16 %v2343
        %v2376 = vunpack.c.l.b16 %v2344
        %v2377 = vunpack.c.l.b16 %v2345
        %v2378 = vunpack.c.l.b16 %v2346
        %v2379 = vunpack.c.l.b16 %v2347
        %v2380 = vunpack.c.l.b16 %v2348
        %v2381 = vunpack.c.l.b16 %v2349
        %v2382 = vunpack.c.l.b16 %v2350
        %v2383 = vunpack.c.l.b16 %v2351
        %v2384 = vunpack.c.l.b16 %v2352
        %v2385 = vunpack.c.l.b16 %v2353
        %v2386 = vpack.c.b16 %v2371, %v2370
        %v2387 = vpack.c.b16 %v2373, %v2372
        %v2388 = vpack.c.b16 %v2375, %v2374
        %v2389 = vpack.c.b16 %v2377, %v2376
        %v2390 = vpack.c.b16 %v2379, %v2378
        %v2391 = vpack.c.b16 %v2381, %v2380
        %v2392 = vpack.c.b16 %v2383, %v2382
        %v2393 = vpack.c.b16 %v2385, %v2384
        %2402 = vmatprep.subr.bf16.mxu0 0
        %2403 = vmatpush1.bf16.msra.mxu0 %v2386
        %2404 = vmatprep.subr.bf16.mxu0 0
        %2405 = vmatpush1.bf16.msra.mxu0 %v2387
        %2406 = vmatprep.subr.bf16.mxu0 0
        %2407 = vmatpush1.bf16.msra.mxu0 %v2388
        %2408 = vmatprep.subr.bf16.mxu0 0
        %2409 = vmatpush1.bf16.msra.mxu0 %v2389
        %2410 = vmatprep.subr.bf16.mxu0 0
        %2411 = vmatpush1.bf16.msra.mxu0 %v2390
        %2412 = vmatprep.subr.bf16.mxu0 0
        %2413 = vmatpush1.bf16.msra.mxu0 %v2391
        %2414 = vmatprep.subr.bf16.mxu0 0
        %2415 = vmatpush1.bf16.msra.mxu0 %v2392
        %2416 = vmatprep.subr.bf16.mxu0 0
        %2417 = vmatpush1.bf16.msra.mxu0 %v2393
        %2418 = vmatprep.subr.bf16.mxu0 0
        %2419 = vmatpush1.bf16.msra.mxu0 0
        %2420 = vmatprep.subr.bf16.mxu0 0
        %2421 = vmatpush1.bf16.msra.mxu0 0
        %2422 = vmatprep.subr.bf16.mxu0 0
        %2423 = vmatpush1.bf16.msra.mxu0 0
        %2424 = vmatprep.subr.bf16.mxu0 0
        %2425 = vmatpush1.bf16.msra.mxu0 0
        %2426 = vmatprep.subr.bf16.mxu0 0
        %2427 = vmatpush1.bf16.msra.mxu0 0
        %2428 = vmatprep.subr.bf16.mxu0 0
        %2429 = vmatpush1.bf16.msra.mxu0 0
        %2430 = vmatprep.subr.bf16.mxu0 0
        %2431 = vmatpush1.bf16.msra.mxu0 0
        %2432 = vmatprep.subr.bf16.mxu0 0
        %2433 = vmatpush1.bf16.msra.mxu0 0
        %2434 = vmatprep.mubr.bf16.mxu0 0
        %2435 = vmatmul.mubr.bf16.gmra.mrb[0].mxu0 %v2336
        %v2436 = vpop.f32.mrb[0].mxu0
        %v2437 = vadd.f32 0.0, %v2436
        %v2438 = vpop.f32.mrb[0].mxu0
        %v2439 = vpop.f32.mrb[0].mxu0
        %v2440 = vadd.f32 0.0, %v2439
        %v2441 = vpop.f32.mrb[0].mxu0
        %2442 = vdwg.mxu0
        %v2459 = vunpack.c.l.b16 %v2268
        %v2460 = vunpack.c.l.b16 %v2269
        %v2461 = vunpack.c.l.b16 %v2270
        %v2462 = vunpack.c.l.b16 %v2271
        %v2463 = vunpack.c.l.b16 %v2272
        %v2464 = vunpack.c.l.b16 %v2273
        %v2465 = vunpack.c.l.b16 %v2274
        %v2466 = vunpack.c.l.b16 %v2275
        %v2467 = vunpack.c.l.b16 %v2276
        %v2468 = vunpack.c.l.b16 %v2277
        %v2469 = vunpack.c.l.b16 %v2278
        %v2470 = vunpack.c.l.b16 %v2279
        %v2471 = vunpack.c.l.b16 %v2280
        %v2472 = vunpack.c.l.b16 %v2281
        %v2473 = vunpack.c.l.b16 %v2282
        %v2474 = vunpack.c.l.b16 %v2283
        %v2475 = vpack.c.b16 %v2460, %v2459
        %v2476 = vpack.c.b16 %v2462, %v2461
        %v2477 = vpack.c.b16 %v2464, %v2463
        %v2478 = vpack.c.b16 %v2466, %v2465
        %v2479 = vpack.c.b16 %v2468, %v2467
        %v2480 = vpack.c.b16 %v2470, %v2469
        %v2481 = vpack.c.b16 %v2472, %v2471
        %v2482 = vpack.c.b16 %v2474, %v2473
        %2491 = vmatprep.subr.bf16.mxu0 0
        %2492 = vmatpush1.bf16.msra.mxu0 %v2475
        %2493 = vmatprep.subr.bf16.mxu0 0
        %2494 = vmatpush1.bf16.msra.mxu0 %v2476
        %2495 = vmatprep.subr.bf16.mxu0 0
        %2496 = vmatpush1.bf16.msra.mxu0 %v2477
        %2497 = vmatprep.subr.bf16.mxu0 0
        %2498 = vmatpush1.bf16.msra.mxu0 %v2478
        %2499 = vmatprep.subr.bf16.mxu0 0
        %2500 = vmatpush1.bf16.msra.mxu0 %v2479
        %2501 = vmatprep.subr.bf16.mxu0 0
        %2502 = vmatpush1.bf16.msra.mxu0 %v2480
        %2503 = vmatprep.subr.bf16.mxu0 0
        %2504 = vmatpush1.bf16.msra.mxu0 %v2481
        %2505 = vmatprep.subr.bf16.mxu0 0
        %2506 = vmatpush1.bf16.msra.mxu0 %v2482
        %2507 = vmatprep.subr.bf16.mxu0 0
        %2508 = vmatpush1.bf16.msra.mxu0 0
        %2509 = vmatprep.subr.bf16.mxu0 0
        %2510 = vmatpush1.bf16.msra.mxu0 0
        %2511 = vmatprep.subr.bf16.mxu0 0
        %2512 = vmatpush1.bf16.msra.mxu0 0
        %2513 = vmatprep.subr.bf16.mxu0 0
        %2514 = vmatpush1.bf16.msra.mxu0 0
        %2515 = vmatprep.subr.bf16.mxu0 0
        %2516 = vmatpush1.bf16.msra.mxu0 0
        %2517 = vmatprep.subr.bf16.mxu0 0
        %2518 = vmatpush1.bf16.msra.mxu0 0
        %2519 = vmatprep.subr.bf16.mxu0 0
        %2520 = vmatpush1.bf16.msra.mxu0 0
        %2521 = vmatprep.subr.bf16.mxu0 0
        %2522 = vmatpush1.bf16.msra.mxu0 0
        %2523 = vmatprep.mubr.bf16.mxu0 0
        %2524 = vmatmul.mubr.bf16.gmra.mrb[0].mxu0 %v2267
        %v2525 = vpop.f32.mrb[0].mxu0
        %v2526 = vadd.f32 %v2437, %v2525
        %v2527 = vpop.f32.mrb[0].mxu0
        %v2528 = vpop.f32.mrb[0].mxu0
        %v2529 = vadd.f32 %v2440, %v2528
        %v2530 = vpop.f32.mrb[0].mxu0
        %2531 = vdwg.mxu0
        %s2532 = scalar_lea.vmem [#allocation10], 16
        %v2533 = vld [vmem:[%s2532] sm:$0xf]
        %v2534 = vld [vmem:[%s2532 + $0x4] sm:$0xf]
        %v2537 = vunpack.c.l.b16 %v2533
        %v2538 = vunpack.c.l.b16 %v2534
        %v2539 = vpack.c.b16 %v2538, %v2537
        %v2541 = vsel %vm2222, %v2539, 0
        %2543 = vmatprep.subr.bf16.mxu0 0
        %2544 = vmatpush1.bf16.msra.mxu0 %v2214
        %2545 = vmatprep.subr.bf16.mxu0 0
        %2546 = vmatpush1.bf16.msra.mxu0 0
        %2547 = vmatprep.subr.bf16.mxu0 0
        %2548 = vmatpush1.bf16.msra.mxu0 0
        %2549 = vmatprep.subr.bf16.mxu0 0
        %2550 = vmatpush1.bf16.msra.mxu0 0
        %2551 = vmatprep.subr.bf16.mxu0 0
        %2552 = vmatpush1.bf16.msra.mxu0 0
        %2553 = vmatprep.subr.bf16.mxu0 0
        %2554 = vmatpush1.bf16.msra.mxu0 0
        %2555 = vmatprep.subr.bf16.mxu0 0
        %2556 = vmatpush1.bf16.msra.mxu0 0
        %2557 = vmatprep.subr.bf16.mxu0 0
        %2558 = vmatpush1.bf16.msra.mxu0 0
        %2559 = vmatprep.subr.bf16.mxu0 0
        %2560 = vmatpush1.bf16.msra.mxu0 0
        %2561 = vmatprep.subr.bf16.mxu0 0
        %2562 = vmatpush1.bf16.msra.mxu0 0
        %2563 = vmatprep.subr.bf16.mxu0 0
        %2564 = vmatpush1.bf16.msra.mxu0 0
        %2565 = vmatprep.subr.bf16.mxu0 0
        %2566 = vmatpush1.bf16.msra.mxu0 0
        %2567 = vmatprep.subr.bf16.mxu0 0
        %2568 = vmatpush1.bf16.msra.mxu0 0
        %2569 = vmatprep.subr.bf16.mxu0 0
        %2570 = vmatpush1.bf16.msra.mxu0 0
        %2571 = vmatprep.subr.bf16.mxu0 0
        %2572 = vmatpush1.bf16.msra.mxu0 0
        %2573 = vmatprep.subr.bf16.mxu0 0
        %2574 = vmatpush1.bf16.msra.mxu0 0
        %2575 = vmatprep.mubr.bf16.mxu0 0
        %2576 = vmatmul.mubr.bf16.gmra.mrb[0].mxu0 %v2541
        %v2577 = vpop.f32.mrb[0].mxu0
        %v2578 = vadd.f32 0.0, %v2577
        %v2579 = vpop.f32.mrb[0].mxu0
        %v2580 = vpop.f32.mrb[0].mxu0
        %v2581 = vadd.f32 0.0, %v2580
        %v2582 = vpop.f32.mrb[0].mxu0
        %2583 = vdwg.mxu0
        %v2584 = vpack.c.bf16 %v2581, %v2578
        %s2585 = scalar_lea.vmem [#allocation11], 128
        %v2586 = vld [vmem:[%s2585] sm:$0xf]
        %v2587 = vld [vmem:[%s2585 + $0x4] sm:$0xf]
        %v2588 = vld [vmem:[%s2585 + $0x8] sm:$0xf]
        %v2589 = vld [vmem:[%s2585 + $0xc] sm:$0xf]
        %v2590 = vld [vmem:[%s2585 + $0x10] sm:$0xf]
        %v2591 = vld [vmem:[%s2585 + $0x14] sm:$0xf]
        %v2592 = vld [vmem:[%s2585 + $0x18] sm:$0xf]
        %v2593 = vld [vmem:[%s2585 + $0x1c] sm:$0xf]
        %v2594 = vld [vmem:[%s2585 + $0x20] sm:$0xf]
        %v2595 = vld [vmem:[%s2585 + $0x24] sm:$0xf]
        %v2596 = vld [vmem:[%s2585 + $0x28] sm:$0xf]
        %v2597 = vld [vmem:[%s2585 + $0x2c] sm:$0xf]
        %v2598 = vld [vmem:[%s2585 + $0x30] sm:$0xf]
        %v2599 = vld [vmem:[%s2585 + $0x34] sm:$0xf]
        %v2600 = vld [vmem:[%s2585 + $0x38] sm:$0xf]
        %v2601 = vld [vmem:[%s2585 + $0x3c] sm:$0xf]
        %v2618 = vunpack.c.l.b16 %v2586
        %v2619 = vunpack.c.l.b16 %v2587
        %v2620 = vunpack.c.l.b16 %v2588
        %v2621 = vunpack.c.l.b16 %v2589
        %v2622 = vunpack.c.l.b16 %v2590
        %v2623 = vunpack.c.l.b16 %v2591
        %v2624 = vunpack.c.l.b16 %v2592
        %v2625 = vunpack.c.l.b16 %v2593
        %v2626 = vunpack.c.l.b16 %v2594
        %v2627 = vunpack.c.l.b16 %v2595
        %v2628 = vunpack.c.l.b16 %v2596
        %v2629 = vunpack.c.l.b16 %v2597
        %v2630 = vunpack.c.l.b16 %v2598
        %v2631 = vunpack.c.l.b16 %v2599
        %v2632 = vunpack.c.l.b16 %v2600
        %v2633 = vunpack.c.l.b16 %v2601
        %v2634 = vpack.c.b16 %v2619, %v2618
        %v2635 = vpack.c.b16 %v2621, %v2620
        %v2636 = vpack.c.b16 %v2623, %v2622
        %v2637 = vpack.c.b16 %v2625, %v2624
        %v2638 = vpack.c.b16 %v2627, %v2626
        %v2639 = vpack.c.b16 %v2629, %v2628
        %v2640 = vpack.c.b16 %v2631, %v2630
        %v2641 = vpack.c.b16 %v2633, %v2632
        %2650 = vmatprep.subr.bf16.mxu0 0
        %2651 = vmatpush1.bf16.msra.mxu0 %v2634
        %2652 = vmatprep.subr.bf16.mxu0 0
        %2653 = vmatpush1.bf16.msra.mxu0 %v2635
        %2654 = vmatprep.subr.bf16.mxu0 0
        %2655 = vmatpush1.bf16.msra.mxu0 %v2636
        %2656 = vmatprep.subr.bf16.mxu0 0
        %2657 = vmatpush1.bf16.msra.mxu0 %v2637
        %2658 = vmatprep.subr.bf16.mxu0 0
        %2659 = vmatpush1.bf16.msra.mxu0 %v2638
        %2660 = vmatprep.subr.bf16.mxu0 0
        %2661 = vmatpush1.bf16.msra.mxu0 %v2639
        %2662 = vmatprep.subr.bf16.mxu0 0
        %2663 = vmatpush1.bf16.msra.mxu0 %v2640
        %2664 = vmatprep.subr.bf16.mxu0 0
        %2665 = vmatpush1.bf16.msra.mxu0 %v2641
        %2666 = vmatprep.subr.bf16.mxu0 0
        %2667 = vmatpush1.bf16.msra.mxu0 0
        %2668 = vmatprep.subr.bf16.mxu0 0
        %2669 = vmatpush1.bf16.msra.mxu0 0
        %2670 = vmatprep.subr.bf16.mxu0 0
        %2671 = vmatpush1.bf16.msra.mxu0 0
        %2672 = vmatprep.subr.bf16.mxu0 0
        %2673 = vmatpush1.bf16.msra.mxu0 0
        %2674 = vmatprep.subr.bf16.mxu0 0
        %2675 = vmatpush1.bf16.msra.mxu0 0
        %2676 = vmatprep.subr.bf16.mxu0 0
        %2677 = vmatpush1.bf16.msra.mxu0 0
        %2678 = vmatprep.subr.bf16.mxu0 0
        %2679 = vmatpush1.bf16.msra.mxu0 0
        %2680 = vmatprep.subr.bf16.mxu0 0
        %2681 = vmatpush1.bf16.msra.mxu0 0
        %2682 = vmatprep.mubr.bf16.mxu0 0
        %2683 = vmatmul.mubr.bf16.gmra.mrb[0].mxu0 %v2584
        %v2684 = vpop.f32.mrb[0].mxu0
        %v2685 = vadd.f32 0.0, %v2684
        %v2686 = vpop.f32.mrb[0].mxu0
        %v2687 = vpop.f32.mrb[0].mxu0
        %v2688 = vadd.f32 0.0, %v2687
        %v2689 = vpop.f32.mrb[0].mxu0
        %2690 = vdwg.mxu0
        %v2691 = vadd.f32 %v2526, %v2685
        %v2692 = vadd.f32 %v2529, %v2688
        %s2693 = scalar_lea.vmem [#allocation10], 24
        %v2694 = vld [vmem:[%s2693] sm:$0xf]
        %v2695 = vld [vmem:[%s2693 + $0x4] sm:$0xf]
        %v2698 = vunpack.c.l.b16 %v2694
        %v2699 = vunpack.c.l.b16 %v2695
        %v2700 = vpack.c.b16 %v2699, %v2698
        %v2702 = vsel %vm2222, %v2700, 0
        %2704 = vmatprep.subr.bf16.mxu0 0
        %2705 = vmatpush1.bf16.msra.mxu0 %v2214
        %2706 = vmatprep.subr.bf16.mxu0 0
        %2707 = vmatpush1.bf16.msra.mxu0 0
        %2708 = vmatprep.subr.bf16.mxu0 0
        %2709 = vmatpush1.bf16.msra.mxu0 0
        %2710 = vmatprep.subr.bf16.mxu0 0
        %2711 = vmatpush1.bf16.msra.mxu0 0
        %2712 = vmatprep.subr.bf16.mxu0 0
        %2713 = vmatpush1.bf16.msra.mxu0 0
        %2714 = vmatprep.subr.bf16.mxu0 0
        %2715 = vmatpush1.bf16.msra.mxu0 0
        %2716 = vmatprep.subr.bf16.mxu0 0
        %2717 = vmatpush1.bf16.msra.mxu0 0
        %2718 = vmatprep.subr.bf16.mxu0 0
        %2719 = vmatpush1.bf16.msra.mxu0 0
        %2720 = vmatprep.subr.bf16.mxu0 0
        %2721 = vmatpush1.bf16.msra.mxu0 0
        %2722 = vmatprep.subr.bf16.mxu0 0
        %2723 = vmatpush1.bf16.msra.mxu0 0
        %2724 = vmatprep.subr.bf16.mxu0 0
        %2725 = vmatpush1.bf16.msra.mxu0 0
        %2726 = vmatprep.subr.bf16.mxu0 0
        %2727 = vmatpush1.bf16.msra.mxu0 0
        %2728 = vmatprep.subr.bf16.mxu0 0
        %2729 = vmatpush1.bf16.msra.mxu0 0
        %2730 = vmatprep.subr.bf16.mxu0 0
        %2731 = vmatpush1.bf16.msra.mxu0 0
        %2732 = vmatprep.subr.bf16.mxu0 0
        %2733 = vmatpush1.bf16.msra.mxu0 0
        %2734 = vmatprep.subr.bf16.mxu0 0
        %2735 = vmatpush1.bf16.msra.mxu0 0
        %2736 = vmatprep.mubr.bf16.mxu0 0
        %2737 = vmatmul.mubr.bf16.gmra.mrb[0].mxu0 %v2702
        %v2738 = vpop.f32.mrb[0].mxu0
        %v2739 = vadd.f32 0.0, %v2738
        %v2740 = vpop.f32.mrb[0].mxu0
        %v2741 = vpop.f32.mrb[0].mxu0
        %v2742 = vadd.f32 0.0, %v2741
        %v2743 = vpop.f32.mrb[0].mxu0
        %2744 = vdwg.mxu0
        %v2745 = vpack.c.bf16 %v2742, %v2739
        %s2746 = scalar_lea.vmem [#allocation11], 192
        %v2747 = vld [vmem:[%s2746] sm:$0xf]
        %v2748 = vld [vmem:[%s2746 + $0x4] sm:$0xf]
        %v2749 = vld [vmem:[%s2746 + $0x8] sm:$0xf]
        %v2750 = vld [vmem:[%s2746 + $0xc] sm:$0xf]
        %v2751 = vld [vmem:[%s2746 + $0x10] sm:$0xf]
        %v2752 = vld [vmem:[%s2746 + $0x14] sm:$0xf]
        %v2753 = vld [vmem:[%s2746 + $0x18] sm:$0xf]
        %v2754 = vld [vmem:[%s2746 + $0x1c] sm:$0xf]
        %v2755 = vld [vmem:[%s2746 + $0x20] sm:$0xf]
        %v2756 = vld [vmem:[%s2746 + $0x24] sm:$0xf]
        %v2757 = vld [vmem:[%s2746 + $0x28] sm:$0xf]
        %v2758 = vld [vmem:[%s2746 + $0x2c] sm:$0xf]
        %v2759 = vld [vmem:[%s2746 + $0x30] sm:$0xf]
        %v2760 = vld [vmem:[%s2746 + $0x34] sm:$0xf]
        %v2761 = vld [vmem:[%s2746 + $0x38] sm:$0xf]
        %v2762 = vld [vmem:[%s2746 + $0x3c] sm:$0xf]
        %v2779 = vunpack.c.l.b16 %v2747
        %v2780 = vunpack.c.l.b16 %v2748
        %v2781 = vunpack.c.l.b16 %v2749
        %v2782 = vunpack.c.l.b16 %v2750
        %v2783 = vunpack.c.l.b16 %v2751
        %v2784 = vunpack.c.l.b16 %v2752
        %v2785 = vunpack.c.l.b16 %v2753
        %v2786 = vunpack.c.l.b16 %v2754
        %v2787 = vunpack.c.l.b16 %v2755
        %v2788 = vunpack.c.l.b16 %v2756
        %v2789 = vunpack.c.l.b16 %v2757
        %v2790 = vunpack.c.l.b16 %v2758
        %v2791 = vunpack.c.l.b16 %v2759
        %v2792 = vunpack.c.l.b16 %v2760
        %v2793 = vunpack.c.l.b16 %v2761
        %v2794 = vunpack.c.l.b16 %v2762
        %v2795 = vpack.c.b16 %v2780, %v2779
        %v2796 = vpack.c.b16 %v2782, %v2781
        %v2797 = vpack.c.b16 %v2784, %v2783
        %v2798 = vpack.c.b16 %v2786, %v2785
        %v2799 = vpack.c.b16 %v2788, %v2787
        %v2800 = vpack.c.b16 %v2790, %v2789
        %v2801 = vpack.c.b16 %v2792, %v2791
        %v2802 = vpack.c.b16 %v2794, %v2793
        %2811 = vmatprep.subr.bf16.mxu0 0
        %2812 = vmatpush1.bf16.msra.mxu0 %v2795
        %2813 = vmatprep.subr.bf16.mxu0 0
        %2814 = vmatpush1.bf16.msra.mxu0 %v2796
        %2815 = vmatprep.subr.bf16.mxu0 0
        %2816 = vmatpush1.bf16.msra.mxu0 %v2797
        %2817 = vmatprep.subr.bf16.mxu0 0
        %2818 = vmatpush1.bf16.msra.mxu0 %v2798
        %2819 = vmatprep.subr.bf16.mxu0 0
        %2820 = vmatpush1.bf16.msra.mxu0 %v2799
        %2821 = vmatprep.subr.bf16.mxu0 0
        %2822 = vmatpush1.bf16.msra.mxu0 %v2800
        %2823 = vmatprep.subr.bf16.mxu0 0
        %2824 = vmatpush1.bf16.msra.mxu0 %v2801
        %2825 = vmatprep.subr.bf16.mxu0 0
        %2826 = vmatpush1.bf16.msra.mxu0 %v2802
        %2827 = vmatprep.subr.bf16.mxu0 0
        %2828 = vmatpush1.bf16.msra.mxu0 0
        %2829 = vmatprep.subr.bf16.mxu0 0
        %2830 = vmatpush1.bf16.msra.mxu0 0
        %2831 = vmatprep.subr.bf16.mxu0 0
        %2832 = vmatpush1.bf16.msra.mxu0 0
        %2833 = vmatprep.subr.bf16.mxu0 0
        %2834 = vmatpush1.bf16.msra.mxu0 0
        %2835 = vmatprep.subr.bf16.mxu0 0
        %2836 = vmatpush1.bf16.msra.mxu0 0
        %2837 = vmatprep.subr.bf16.mxu0 0
        %2838 = vmatpush1.bf16.msra.mxu0 0
        %2839 = vmatprep.subr.bf16.mxu0 0
        %2840 = vmatpush1.bf16.msra.mxu0 0
        %2841 = vmatprep.subr.bf16.mxu0 0
        %2842 = vmatpush1.bf16.msra.mxu0 0
        %2843 = vmatprep.mubr.bf16.mxu0 0
        %2844 = vmatmul.mubr.bf16.gmra.mrb[0].mxu0 %v2745
        %v2845 = vpop.f32.mrb[0].mxu0
        %v2846 = vadd.f32 0.0, %v2845
        %v2847 = vpop.f32.mrb[0].mxu0
        %v2848 = vpop.f32.mrb[0].mxu0
        %v2849 = vadd.f32 0.0, %v2848
        %v2850 = vpop.f32.mrb[0].mxu0
        %2851 = vdwg.mxu0
        %v2852 = vadd.f32 %v2691, %v2846
        %v2853 = vadd.f32 %v2692, %v2849
        %s2854 = scalar_lea.vmem [#allocation10], 32
        %v2855 = vld [vmem:[%s2854] sm:$0xf]
        %v2856 = vld [vmem:[%s2854 + $0x4] sm:$0xf]
        %v2859 = vunpack.c.l.b16 %v2855
        %v2860 = vunpack.c.l.b16 %v2856
        %v2861 = vpack.c.b16 %v2860, %v2859
        %v2863 = vsel %vm2222, %v2861, 0
        %2865 = vmatprep.subr.bf16.mxu0 0
        %2866 = vmatpush1.bf16.msra.mxu0 %v2214
        %2867 = vmatprep.subr.bf16.mxu0 0
        %2868 = vmatpush1.bf16.msra.mxu0 0
        %2869 = vmatprep.subr.bf16.mxu0 0
        %2870 = vmatpush1.bf16.msra.mxu0 0
        %2871 = vmatprep.subr.bf16.mxu0 0
        %2872 = vmatpush1.bf16.msra.mxu0 0
        %2873 = vmatprep.subr.bf16.mxu0 0
        %2874 = vmatpush1.bf16.msra.mxu0 0
        %2875 = vmatprep.subr.bf16.mxu0 0
        %2876 = vmatpush1.bf16.msra.mxu0 0
        %2877 = vmatprep.subr.bf16.mxu0 0
        %2878 = vmatpush1.bf16.msra.mxu0 0
        %2879 = vmatprep.subr.bf16.mxu0 0
        %2880 = vmatpush1.bf16.msra.mxu0 0
        %2881 = vmatprep.subr.bf16.mxu0 0
        %2882 = vmatpush1.bf16.msra.mxu0 0
        %2883 = vmatprep.subr.bf16.mxu0 0
        %2884 = vmatpush1.bf16.msra.mxu0 0
        %2885 = vmatprep.subr.bf16.mxu0 0
        %2886 = vmatpush1.bf16.msra.mxu0 0
        %2887 = vmatprep.subr.bf16.mxu0 0
        %2888 = vmatpush1.bf16.msra.mxu0 0
        %2889 = vmatprep.subr.bf16.mxu0 0
        %2890 = vmatpush1.bf16.msra.mxu0 0
        %2891 = vmatprep.subr.bf16.mxu0 0
        %2892 = vmatpush1.bf16.msra.mxu0 0
        %2893 = vmatprep.subr.bf16.mxu0 0
        %2894 = vmatpush1.bf16.msra.mxu0 0
        %2895 = vmatprep.subr.bf16.mxu0 0
        %2896 = vmatpush1.bf16.msra.mxu0 0
        %2897 = vmatprep.mubr.bf16.mxu0 0
        %2898 = vmatmul.mubr.bf16.gmra.mrb[0].mxu0 %v2863
        %v2899 = vpop.f32.mrb[0].mxu0
        %v2900 = vadd.f32 0.0, %v2899
        %v2901 = vpop.f32.mrb[0].mxu0
        %v2902 = vpop.f32.mrb[0].mxu0
        %v2903 = vadd.f32 0.0, %v2902
        %v2904 = vpop.f32.mrb[0].mxu0
        %2905 = vdwg.mxu0
        %v2906 = vpack.c.bf16 %v2903, %v2900
        %s2907 = scalar_lea.vmem [#allocation11], 256
        %v2908 = vld [vmem:[%s2907] sm:$0xf]
        %v2909 = vld [vmem:[%s2907 + $0x4] sm:$0xf]
        %v2910 = vld [vmem:[%s2907 + $0x8] sm:$0xf]
        %v2911 = vld [vmem:[%s2907 + $0xc] sm:$0xf]
        %v2912 = vld [vmem:[%s2907 + $0x10] sm:$0xf]
        %v2913 = vld [vmem:[%s2907 + $0x14] sm:$0xf]
        %v2914 = vld [vmem:[%s2907 + $0x18] sm:$0xf]
        %v2915 = vld [vmem:[%s2907 + $0x1c] sm:$0xf]
        %v2916 = vld [vmem:[%s2907 + $0x20] sm:$0xf]
        %v2917 = vld [vmem:[%s2907 + $0x24] sm:$0xf]
        %v2918 = vld [vmem:[%s2907 + $0x28] sm:$0xf]
        %v2919 = vld [vmem:[%s2907 + $0x2c] sm:$0xf]
        %v2920 = vld [vmem:[%s2907 + $0x30] sm:$0xf]
        %v2921 = vld [vmem:[%s2907 + $0x34] sm:$0xf]
        %v2922 = vld [vmem:[%s2907 + $0x38] sm:$0xf]
        %v2923 = vld [vmem:[%s2907 + $0x3c] sm:$0xf]
        %v2940 = vunpack.c.l.b16 %v2908
        %v2941 = vunpack.c.l.b16 %v2909
        %v2942 = vunpack.c.l.b16 %v2910
        %v2943 = vunpack.c.l.b16 %v2911
        %v2944 = vunpack.c.l.b16 %v2912
        %v2945 = vunpack.c.l.b16 %v2913
        %v2946 = vunpack.c.l.b16 %v2914
        %v2947 = vunpack.c.l.b16 %v2915
        %v2948 = vunpack.c.l.b16 %v2916
        %v2949 = vunpack.c.l.b16 %v2917
        %v2950 = vunpack.c.l.b16 %v2918
        %v2951 = vunpack.c.l.b16 %v2919
        %v2952 = vunpack.c.l.b16 %v2920
        %v2953 = vunpack.c.l.b16 %v2921
        %v2954 = vunpack.c.l.b16 %v2922
        %v2955 = vunpack.c.l.b16 %v2923
        %v2956 = vpack.c.b16 %v2941, %v2940
        %v2957 = vpack.c.b16 %v2943, %v2942
        %v2958 = vpack.c.b16 %v2945, %v2944
        %v2959 = vpack.c.b16 %v2947, %v2946
        %v2960 = vpack.c.b16 %v2949, %v2948
        %v2961 = vpack.c.b16 %v2951, %v2950
        %v2962 = vpack.c.b16 %v2953, %v2952
        %v2963 = vpack.c.b16 %v2955, %v2954
        %2972 = vmatprep.subr.bf16.mxu0 0
        %2973 = vmatpush1.bf16.msra.mxu0 %v2956
        %2974 = vmatprep.subr.bf16.mxu0 0
        %2975 = vmatpush1.bf16.msra.mxu0 %v2957
        %2976 = vmatprep.subr.bf16.mxu0 0
        %2977 = vmatpush1.bf16.msra.mxu0 %v2958
        %2978 = vmatprep.subr.bf16.mxu0 0
        %2979 = vmatpush1.bf16.msra.mxu0 %v2959
        %2980 = vmatprep.subr.bf16.mxu0 0
        %2981 = vmatpush1.bf16.msra.mxu0 %v2960
        %2982 = vmatprep.subr.bf16.mxu0 0
        %2983 = vmatpush1.bf16.msra.mxu0 %v2961
        %2984 = vmatprep.subr.bf16.mxu0 0
        %2985 = vmatpush1.bf16.msra.mxu0 %v2962
        %2986 = vmatprep.subr.bf16.mxu0 0
        %2987 = vmatpush1.bf16.msra.mxu0 %v2963
        %2988 = vmatprep.subr.bf16.mxu0 0
        %2989 = vmatpush1.bf16.msra.mxu0 0
        %2990 = vmatprep.subr.bf16.mxu0 0
        %2991 = vmatpush1.bf16.msra.mxu0 0
        %2992 = vmatprep.subr.bf16.mxu0 0
        %2993 = vmatpush1.bf16.msra.mxu0 0
        %2994 = vmatprep.subr.bf16.mxu0 0
        %2995 = vmatpush1.bf16.msra.mxu0 0
        %2996 = vmatprep.subr.bf16.mxu0 0
        %2997 = vmatpush1.bf16.msra.mxu0 0
        %2998 = vmatprep.subr.bf16.mxu0 0
        %2999 = vmatpush1.bf16.msra.mxu0 0
        %3000 = vmatprep.subr.bf16.mxu0 0
        %3001 = vmatpush1.bf16.msra.mxu0 0
        %3002 = vmatprep.subr.bf16.mxu0 0
        %3003 = vmatpush1.bf16.msra.mxu0 0
        %3004 = vmatprep.mubr.bf16.mxu0 0
        %3005 = vmatmul.mubr.bf16.gmra.mrb[0].mxu0 %v2906
        %v3006 = vpop.f32.mrb[0].mxu0
        %v3007 = vadd.f32 0.0, %v3006
        %v3008 = vpop.f32.mrb[0].mxu0
        %v3009 = vpop.f32.mrb[0].mxu0
        %v3010 = vadd.f32 0.0, %v3009
        %v3011 = vpop.f32.mrb[0].mxu0
        %3012 = vdwg.mxu0
        %v3013 = vadd.f32 %v2852, %v3007
        %v3014 = vadd.f32 %v2853, %v3010
        %s3015 = scalar_lea.vmem [#allocation10], 40
        %v3016 = vld [vmem:[%s3015] sm:$0xf]
        %v3017 = vld [vmem:[%s3015 + $0x4] sm:$0xf]
        %v3020 = vunpack.c.l.b16 %v3016
        %v3021 = vunpack.c.l.b16 %v3017
        %v3022 = vpack.c.b16 %v3021, %v3020
        %v3024 = vsel %vm2222, %v3022, 0
        %3026 = vmatprep.subr.bf16.mxu0 0
        %3027 = vmatpush1.bf16.msra.mxu0 %v2214
        %3028 = vmatprep.subr.bf16.mxu0 0
        %3029 = vmatpush1.bf16.msra.mxu0 0
        %3030 = vmatprep.subr.bf16.mxu0 0
        %3031 = vmatpush1.bf16.msra.mxu0 0
        %3032 = vmatprep.subr.bf16.mxu0 0
        %3033 = vmatpush1.bf16.msra.mxu0 0
        %3034 = vmatprep.subr.bf16.mxu0 0
        %3035 = vmatpush1.bf16.msra.mxu0 0
        %3036 = vmatprep.subr.bf16.mxu0 0
        %3037 = vmatpush1.bf16.msra.mxu0 0
        %3038 = vmatprep.subr.bf16.mxu0 0
        %3039 = vmatpush1.bf16.msra.mxu0 0
        %3040 = vmatprep.subr.bf16.mxu0 0
        %3041 = vmatpush1.bf16.msra.mxu0 0
        %3042 = vmatprep.subr.bf16.mxu0 0
        %3043 = vmatpush1.bf16.msra.mxu0 0
        %3044 = vmatprep.subr.bf16.mxu0 0
        %3045 = vmatpush1.bf16.msra.mxu0 0
        %3046 = vmatprep.subr.bf16.mxu0 0
        %3047 = vmatpush1.bf16.msra.mxu0 0
        %3048 = vmatprep.subr.bf16.mxu0 0
        %3049 = vmatpush1.bf16.msra.mxu0 0
        %3050 = vmatprep.subr.bf16.mxu0 0
        %3051 = vmatpush1.bf16.msra.mxu0 0
        %3052 = vmatprep.subr.bf16.mxu0 0
        %3053 = vmatpush1.bf16.msra.mxu0 0
        %3054 = vmatprep.subr.bf16.mxu0 0
        %3055 = vmatpush1.bf16.msra.mxu0 0
        %3056 = vmatprep.subr.bf16.mxu0 0
        %3057 = vmatpush1.bf16.msra.mxu0 0
        %3058 = vmatprep.mubr.bf16.mxu0 0
        %3059 = vmatmul.mubr.bf16.gmra.mrb[0].mxu0 %v3024
        %v3060 = vpop.f32.mrb[0].mxu0
        %v3061 = vadd.f32 0.0, %v3060
        %v3062 = vpop.f32.mrb[0].mxu0
        %v3063 = vpop.f32.mrb[0].mxu0
        %v3064 = vadd.f32 0.0, %v3063
        %v3065 = vpop.f32.mrb[0].mxu0
        %3066 = vdwg.mxu0
        %v3067 = vpack.c.bf16 %v3064, %v3061
        %s3068 = scalar_lea.vmem [#allocation11], 320
        %v3069 = vld [vmem:[%s3068] sm:$0xf]
        %v3070 = vld [vmem:[%s3068 + $0x4] sm:$0xf]
        %v3071 = vld [vmem:[%s3068 + $0x8] sm:$0xf]
        %v3072 = vld [vmem:[%s3068 + $0xc] sm:$0xf]
        %v3073 = vld [vmem:[%s3068 + $0x10] sm:$0xf]
        %v3074 = vld [vmem:[%s3068 + $0x14] sm:$0xf]
        %v3075 = vld [vmem:[%s3068 + $0x18] sm:$0xf]
        %v3076 = vld [vmem:[%s3068 + $0x1c] sm:$0xf]
        %v3077 = vld [vmem:[%s3068 + $0x20] sm:$0xf]
        %v3078 = vld [vmem:[%s3068 + $0x24] sm:$0xf]
        %v3079 = vld [vmem:[%s3068 + $0x28] sm:$0xf]
        %v3080 = vld [vmem:[%s3068 + $0x2c] sm:$0xf]
        %v3081 = vld [vmem:[%s3068 + $0x30] sm:$0xf]
        %v3082 = vld [vmem:[%s3068 + $0x34] sm:$0xf]
        %v3083 = vld [vmem:[%s3068 + $0x38] sm:$0xf]
        %v3084 = vld [vmem:[%s3068 + $0x3c] sm:$0xf]
        %v3101 = vunpack.c.l.b16 %v3069
        %v3102 = vunpack.c.l.b16 %v3070
        %v3103 = vunpack.c.l.b16 %v3071
        %v3104 = vunpack.c.l.b16 %v3072
        %v3105 = vunpack.c.l.b16 %v3073
        %v3106 = vunpack.c.l.b16 %v3074
        %v3107 = vunpack.c.l.b16 %v3075
        %v3108 = vunpack.c.l.b16 %v3076
        %v3109 = vunpack.c.l.b16 %v3077
        %v3110 = vunpack.c.l.b16 %v3078
        %v3111 = vunpack.c.l.b16 %v3079
        %v3112 = vunpack.c.l.b16 %v3080
        %v3113 = vunpack.c.l.b16 %v3081
        %v3114 = vunpack.c.l.b16 %v3082
        %v3115 = vunpack.c.l.b16 %v3083
        %v3116 = vunpack.c.l.b16 %v3084
        %v3117 = vpack.c.b16 %v3102, %v3101
        %v3118 = vpack.c.b16 %v3104, %v3103
        %v3119 = vpack.c.b16 %v3106, %v3105
        %v3120 = vpack.c.b16 %v3108, %v3107
        %v3121 = vpack.c.b16 %v3110, %v3109
        %v3122 = vpack.c.b16 %v3112, %v3111
        %v3123 = vpack.c.b16 %v3114, %v3113
        %v3124 = vpack.c.b16 %v3116, %v3115
        %3133 = vmatprep.subr.bf16.mxu0 0
        %3134 = vmatpush1.bf16.msra.mxu0 %v3117
        %3135 = vmatprep.subr.bf16.mxu0 0
        %3136 = vmatpush1.bf16.msra.mxu0 %v3118
        %3137 = vmatprep.subr.bf16.mxu0 0
        %3138 = vmatpush1.bf16.msra.mxu0 %v3119
        %3139 = vmatprep.subr.bf16.mxu0 0
        %3140 = vmatpush1.bf16.msra.mxu0 %v3120
        %3141 = vmatprep.subr.bf16.mxu0 0
        %3142 = vmatpush1.bf16.msra.mxu0 %v3121
        %3143 = vmatprep.subr.bf16.mxu0 0
        %3144 = vmatpush1.bf16.msra.mxu0 %v3122
        %3145 = vmatprep.subr.bf16.mxu0 0
        %3146 = vmatpush1.bf16.msra.mxu0 %v3123
        %3147 = vmatprep.subr.bf16.mxu0 0
        %3148 = vmatpush1.bf16.msra.mxu0 %v3124
        %3149 = vmatprep.subr.bf16.mxu0 0
        %3150 = vmatpush1.bf16.msra.mxu0 0
        %3151 = vmatprep.subr.bf16.mxu0 0
        %3152 = vmatpush1.bf16.msra.mxu0 0
        %3153 = vmatprep.subr.bf16.mxu0 0
        %3154 = vmatpush1.bf16.msra.mxu0 0
        %3155 = vmatprep.subr.bf16.mxu0 0
        %3156 = vmatpush1.bf16.msra.mxu0 0
        %3157 = vmatprep.subr.bf16.mxu0 0
        %3158 = vmatpush1.bf16.msra.mxu0 0
        %3159 = vmatprep.subr.bf16.mxu0 0
        %3160 = vmatpush1.bf16.msra.mxu0 0
        %3161 = vmatprep.subr.bf16.mxu0 0
        %3162 = vmatpush1.bf16.msra.mxu0 0
        %3163 = vmatprep.subr.bf16.mxu0 0
        %3164 = vmatpush1.bf16.msra.mxu0 0
        %3165 = vmatprep.mubr.bf16.mxu0 0
        %3166 = vmatmul.mubr.bf16.gmra.mrb[0].mxu0 %v3067
        %v3167 = vpop.f32.mrb[0].mxu0
        %v3168 = vadd.f32 0.0, %v3167
        %v3169 = vpop.f32.mrb[0].mxu0
        %v3170 = vpop.f32.mrb[0].mxu0
        %v3171 = vadd.f32 0.0, %v3170
        %v3172 = vpop.f32.mrb[0].mxu0
        %3173 = vdwg.mxu0
        %v3174 = vadd.f32 %v3013, %v3168
        %v3175 = vadd.f32 %v3014, %v3171
        %s3176 = scalar_lea.vmem [#allocation10], 48
        %v3177 = vld [vmem:[%s3176] sm:$0xf]
        %v3178 = vld [vmem:[%s3176 + $0x4] sm:$0xf]
        %v3181 = vunpack.c.l.b16 %v3177
        %v3182 = vunpack.c.l.b16 %v3178
        %v3183 = vpack.c.b16 %v3182, %v3181
        %v3185 = vsel %vm2222, %v3183, 0
        %3187 = vmatprep.subr.bf16.mxu0 0
        %3188 = vmatpush1.bf16.msra.mxu0 %v2214
        %3189 = vmatprep.subr.bf16.mxu0 0
        %3190 = vmatpush1.bf16.msra.mxu0 0
        %3191 = vmatprep.subr.bf16.mxu0 0
        %3192 = vmatpush1.bf16.msra.mxu0 0
        %3193 = vmatprep.subr.bf16.mxu0 0
        %3194 = vmatpush1.bf16.msra.mxu0 0
        %3195 = vmatprep.subr.bf16.mxu0 0
        %3196 = vmatpush1.bf16.msra.mxu0 0
        %3197 = vmatprep.subr.bf16.mxu0 0
        %3198 = vmatpush1.bf16.msra.mxu0 0
        %3199 = vmatprep.subr.bf16.mxu0 0
        %3200 = vmatpush1.bf16.msra.mxu0 0
        %3201 = vmatprep.subr.bf16.mxu0 0
        %3202 = vmatpush1.bf16.msra.mxu0 0
        %3203 = vmatprep.subr.bf16.mxu0 0
        %3204 = vmatpush1.bf16.msra.mxu0 0
        %3205 = vmatprep.subr.bf16.mxu0 0
        %3206 = vmatpush1.bf16.msra.mxu0 0
        %3207 = vmatprep.subr.bf16.mxu0 0
        %3208 = vmatpush1.bf16.msra.mxu0 0
        %3209 = vmatprep.subr.bf16.mxu0 0
        %3210 = vmatpush1.bf16.msra.mxu0 0
        %3211 = vmatprep.subr.bf16.mxu0 0
        %3212 = vmatpush1.bf16.msra.mxu0 0
        %3213 = vmatprep.subr.bf16.mxu0 0
        %3214 = vmatpush1.bf16.msra.mxu0 0
        %3215 = vmatprep.subr.bf16.mxu0 0
        %3216 = vmatpush1.bf16.msra.mxu0 0
        %3217 = vmatprep.subr.bf16.mxu0 0
        %3218 = vmatpush1.bf16.msra.mxu0 0
        %3219 = vmatprep.mubr.bf16.mxu0 0
        %3220 = vmatmul.mubr.bf16.gmra.mrb[0].mxu0 %v3185
        %v3221 = vpop.f32.mrb[0].mxu0
        %v3222 = vadd.f32 0.0, %v3221
        %v3223 = vpop.f32.mrb[0].mxu0
        %v3224 = vpop.f32.mrb[0].mxu0
        %v3225 = vadd.f32 0.0, %v3224
        %v3226 = vpop.f32.mrb[0].mxu0
        %3227 = vdwg.mxu0
        %v3228 = vpack.c.bf16 %v3225, %v3222
        %s3229 = scalar_lea.vmem [#allocation11], 384
        %v3230 = vld [vmem:[%s3229] sm:$0xf]
        %v3231 = vld [vmem:[%s3229 + $0x4] sm:$0xf]
        %v3232 = vld [vmem:[%s3229 + $0x8] sm:$0xf]
        %v3233 = vld [vmem:[%s3229 + $0xc] sm:$0xf]
        %v3234 = vld [vmem:[%s3229 + $0x10] sm:$0xf]
        %v3235 = vld [vmem:[%s3229 + $0x14] sm:$0xf]
        %v3236 = vld [vmem:[%s3229 + $0x18] sm:$0xf]
        %v3237 = vld [vmem:[%s3229 + $0x1c] sm:$0xf]
        %v3238 = vld [vmem:[%s3229 + $0x20] sm:$0xf]
        %v3239 = vld [vmem:[%s3229 + $0x24] sm:$0xf]
        %v3240 = vld [vmem:[%s3229 + $0x28] sm:$0xf]
        %v3241 = vld [vmem:[%s3229 + $0x2c] sm:$0xf]
        %v3242 = vld [vmem:[%s3229 + $0x30] sm:$0xf]
        %v3243 = vld [vmem:[%s3229 + $0x34] sm:$0xf]
        %v3244 = vld [vmem:[%s3229 + $0x38] sm:$0xf]
        %v3245 = vld [vmem:[%s3229 + $0x3c] sm:$0xf]
        %v3262 = vunpack.c.l.b16 %v3230
        %v3263 = vunpack.c.l.b16 %v3231
        %v3264 = vunpack.c.l.b16 %v3232
        %v3265 = vunpack.c.l.b16 %v3233
        %v3266 = vunpack.c.l.b16 %v3234
        %v3267 = vunpack.c.l.b16 %v3235
        %v3268 = vunpack.c.l.b16 %v3236
        %v3269 = vunpack.c.l.b16 %v3237
        %v3270 = vunpack.c.l.b16 %v3238
        %v3271 = vunpack.c.l.b16 %v3239
        %v3272 = vunpack.c.l.b16 %v3240
        %v3273 = vunpack.c.l.b16 %v3241
        %v3274 = vunpack.c.l.b16 %v3242
        %v3275 = vunpack.c.l.b16 %v3243
        %v3276 = vunpack.c.l.b16 %v3244
        %v3277 = vunpack.c.l.b16 %v3245
        %v3278 = vpack.c.b16 %v3263, %v3262
        %v3279 = vpack.c.b16 %v3265, %v3264
        %v3280 = vpack.c.b16 %v3267, %v3266
        %v3281 = vpack.c.b16 %v3269, %v3268
        %v3282 = vpack.c.b16 %v3271, %v3270
        %v3283 = vpack.c.b16 %v3273, %v3272
        %v3284 = vpack.c.b16 %v3275, %v3274
        %v3285 = vpack.c.b16 %v3277, %v3276
        %3294 = vmatprep.subr.bf16.mxu0 0
        %3295 = vmatpush1.bf16.msra.mxu0 %v3278
        %3296 = vmatprep.subr.bf16.mxu0 0
        %3297 = vmatpush1.bf16.msra.mxu0 %v3279
        %3298 = vmatprep.subr.bf16.mxu0 0
        %3299 = vmatpush1.bf16.msra.mxu0 %v3280
        %3300 = vmatprep.subr.bf16.mxu0 0
        %3301 = vmatpush1.bf16.msra.mxu0 %v3281
        %3302 = vmatprep.subr.bf16.mxu0 0
        %3303 = vmatpush1.bf16.msra.mxu0 %v3282
        %3304 = vmatprep.subr.bf16.mxu0 0
        %3305 = vmatpush1.bf16.msra.mxu0 %v3283
        %3306 = vmatprep.subr.bf16.mxu0 0
        %3307 = vmatpush1.bf16.msra.mxu0 %v3284
        %3308 = vmatprep.subr.bf16.mxu0 0
        %3309 = vmatpush1.bf16.msra.mxu0 %v3285
        %3310 = vmatprep.subr.bf16.mxu0 0
        %3311 = vmatpush1.bf16.msra.mxu0 0
        %3312 = vmatprep.subr.bf16.mxu0 0
        %3313 = vmatpush1.bf16.msra.mxu0 0
        %3314 = vmatprep.subr.bf16.mxu0 0
        %3315 = vmatpush1.bf16.msra.mxu0 0
        %3316 = vmatprep.subr.bf16.mxu0 0
        %3317 = vmatpush1.bf16.msra.mxu0 0
        %3318 = vmatprep.subr.bf16.mxu0 0
        %3319 = vmatpush1.bf16.msra.mxu0 0
        %3320 = vmatprep.subr.bf16.mxu0 0
        %3321 = vmatpush1.bf16.msra.mxu0 0
        %3322 = vmatprep.subr.bf16.mxu0 0
        %3323 = vmatpush1.bf16.msra.mxu0 0
        %3324 = vmatprep.subr.bf16.mxu0 0
        %3325 = vmatpush1.bf16.msra.mxu0 0
        %3326 = vmatprep.mubr.bf16.mxu0 0
        %3327 = vmatmul.mubr.bf16.gmra.mrb[0].mxu0 %v3228
        %v3328 = vpop.f32.mrb[0].mxu0
        %v3329 = vadd.f32 0.0, %v3328
        %v3330 = vpop.f32.mrb[0].mxu0
        %v3331 = vpop.f32.mrb[0].mxu0
        %v3332 = vadd.f32 0.0, %v3331
        %v3333 = vpop.f32.mrb[0].mxu0
        %3334 = vdwg.mxu0
        %v3335 = vadd.f32 %v3174, %v3329
        %v3336 = vadd.f32 %v3175, %v3332
        %s3337 = scalar_lea.vmem [#allocation10], 56
        %v3338 = vld [vmem:[%s3337] sm:$0xf]
        %v3339 = vld [vmem:[%s3337 + $0x4] sm:$0xf]
        %v3342 = vunpack.c.l.b16 %v3338
        %v3343 = vunpack.c.l.b16 %v3339
        %v3344 = vpack.c.b16 %v3343, %v3342
        %v3346 = vsel %vm2222, %v3344, 0
        %3348 = vmatprep.subr.bf16.mxu0 0
        %3349 = vmatpush1.bf16.msra.mxu0 %v2214
        %3350 = vmatprep.subr.bf16.mxu0 0
        %3351 = vmatpush1.bf16.msra.mxu0 0
        %3352 = vmatprep.subr.bf16.mxu0 0
        %3353 = vmatpush1.bf16.msra.mxu0 0
        %3354 = vmatprep.subr.bf16.mxu0 0
        %3355 = vmatpush1.bf16.msra.mxu0 0
        %3356 = vmatprep.subr.bf16.mxu0 0
        %3357 = vmatpush1.bf16.msra.mxu0 0
        %3358 = vmatprep.subr.bf16.mxu0 0
        %3359 = vmatpush1.bf16.msra.mxu0 0
        %3360 = vmatprep.subr.bf16.mxu0 0
        %3361 = vmatpush1.bf16.msra.mxu0 0
        %3362 = vmatprep.subr.bf16.mxu0 0
        %3363 = vmatpush1.bf16.msra.mxu0 0
        %3364 = vmatprep.subr.bf16.mxu0 0
        %3365 = vmatpush1.bf16.msra.mxu0 0
        %3366 = vmatprep.subr.bf16.mxu0 0
        %3367 = vmatpush1.bf16.msra.mxu0 0
        %3368 = vmatprep.subr.bf16.mxu0 0
        %3369 = vmatpush1.bf16.msra.mxu0 0
        %3370 = vmatprep.subr.bf16.mxu0 0
        %3371 = vmatpush1.bf16.msra.mxu0 0
        %3372 = vmatprep.subr.bf16.mxu0 0
        %3373 = vmatpush1.bf16.msra.mxu0 0
        %3374 = vmatprep.subr.bf16.mxu0 0
        %3375 = vmatpush1.bf16.msra.mxu0 0
        %3376 = vmatprep.subr.bf16.mxu0 0
        %3377 = vmatpush1.bf16.msra.mxu0 0
        %3378 = vmatprep.subr.bf16.mxu0 0
        %3379 = vmatpush1.bf16.msra.mxu0 0
        %3380 = vmatprep.mubr.bf16.mxu0 0
        %3381 = vmatmul.mubr.bf16.gmra.mrb[0].mxu0 %v3346
        %v3382 = vpop.f32.mrb[0].mxu0
        %v3383 = vadd.f32 0.0, %v3382
        %v3384 = vpop.f32.mrb[0].mxu0
        %v3385 = vpop.f32.mrb[0].mxu0
        %v3386 = vadd.f32 0.0, %v3385
        %v3387 = vpop.f32.mrb[0].mxu0
        %3388 = vdwg.mxu0
        %v3389 = vpack.c.bf16 %v3386, %v3383
        %s3390 = scalar_lea.vmem [#allocation11], 448
        %v3391 = vld [vmem:[%s3390] sm:$0xf]
        %v3392 = vld [vmem:[%s3390 + $0x4] sm:$0xf]
        %v3393 = vld [vmem:[%s3390 + $0x8] sm:$0xf]
        %v3394 = vld [vmem:[%s3390 + $0xc] sm:$0xf]
        %v3395 = vld [vmem:[%s3390 + $0x10] sm:$0xf]
        %v3396 = vld [vmem:[%s3390 + $0x14] sm:$0xf]
        %v3397 = vld [vmem:[%s3390 + $0x18] sm:$0xf]
        %v3398 = vld [vmem:[%s3390 + $0x1c] sm:$0xf]
        %v3399 = vld [vmem:[%s3390 + $0x20] sm:$0xf]
        %v3400 = vld [vmem:[%s3390 + $0x24] sm:$0xf]
        %v3401 = vld [vmem:[%s3390 + $0x28] sm:$0xf]
        %v3402 = vld [vmem:[%s3390 + $0x2c] sm:$0xf]
        %v3403 = vld [vmem:[%s3390 + $0x30] sm:$0xf]
        %v3404 = vld [vmem:[%s3390 + $0x34] sm:$0xf]
        %v3405 = vld [vmem:[%s3390 + $0x38] sm:$0xf]
        %v3406 = vld [vmem:[%s3390 + $0x3c] sm:$0xf]
        %v3423 = vunpack.c.l.b16 %v3391
        %v3424 = vunpack.c.l.b16 %v3392
        %v3425 = vunpack.c.l.b16 %v3393
        %v3426 = vunpack.c.l.b16 %v3394
        %v3427 = vunpack.c.l.b16 %v3395
        %v3428 = vunpack.c.l.b16 %v3396
        %v3429 = vunpack.c.l.b16 %v3397
        %v3430 = vunpack.c.l.b16 %v3398
        %v3431 = vunpack.c.l.b16 %v3399
        %v3432 = vunpack.c.l.b16 %v3400
        %v3433 = vunpack.c.l.b16 %v3401
        %v3434 = vunpack.c.l.b16 %v3402
        %v3435 = vunpack.c.l.b16 %v3403
        %v3436 = vunpack.c.l.b16 %v3404
        %v3437 = vunpack.c.l.b16 %v3405
        %v3438 = vunpack.c.l.b16 %v3406
        %v3439 = vpack.c.b16 %v3424, %v3423
        %v3440 = vpack.c.b16 %v3426, %v3425
        %v3441 = vpack.c.b16 %v3428, %v3427
        %v3442 = vpack.c.b16 %v3430, %v3429
        %v3443 = vpack.c.b16 %v3432, %v3431
        %v3444 = vpack.c.b16 %v3434, %v3433
        %v3445 = vpack.c.b16 %v3436, %v3435
        %v3446 = vpack.c.b16 %v3438, %v3437
        %3455 = vmatprep.subr.bf16.mxu0 0
        %3456 = vmatpush1.bf16.msra.mxu0 %v3439
        %3457 = vmatprep.subr.bf16.mxu0 0
        %3458 = vmatpush1.bf16.msra.mxu0 %v3440
        %3459 = vmatprep.subr.bf16.mxu0 0
        %3460 = vmatpush1.bf16.msra.mxu0 %v3441
        %3461 = vmatprep.subr.bf16.mxu0 0
        %3462 = vmatpush1.bf16.msra.mxu0 %v3442
        %3463 = vmatprep.subr.bf16.mxu0 0
        %3464 = vmatpush1.bf16.msra.mxu0 %v3443
        %3465 = vmatprep.subr.bf16.mxu0 0
        %3466 = vmatpush1.bf16.msra.mxu0 %v3444
        %3467 = vmatprep.subr.bf16.mxu0 0
        %3468 = vmatpush1.bf16.msra.mxu0 %v3445
        %3469 = vmatprep.subr.bf16.mxu0 0
        %3470 = vmatpush1.bf16.msra.mxu0 %v3446
        %3471 = vmatprep.subr.bf16.mxu0 0
        %3472 = vmatpush1.bf16.msra.mxu0 0
        %3473 = vmatprep.subr.bf16.mxu0 0
        %3474 = vmatpush1.bf16.msra.mxu0 0
        %3475 = vmatprep.subr.bf16.mxu0 0
        %3476 = vmatpush1.bf16.msra.mxu0 0
        %3477 = vmatprep.subr.bf16.mxu0 0
        %3478 = vmatpush1.bf16.msra.mxu0 0
        %3479 = vmatprep.subr.bf16.mxu0 0
        %3480 = vmatpush1.bf16.msra.mxu0 0
        %3481 = vmatprep.subr.bf16.mxu0 0
        %3482 = vmatpush1.bf16.msra.mxu0 0
        %3483 = vmatprep.subr.bf16.mxu0 0
        %3484 = vmatpush1.bf16.msra.mxu0 0
        %3485 = vmatprep.subr.bf16.mxu0 0
        %3486 = vmatpush1.bf16.msra.mxu0 0
        %3487 = vmatprep.mubr.bf16.mxu0 0
        %3488 = vmatmul.mubr.bf16.gmra.mrb[0].mxu0 %v3389
        %v3489 = vpop.f32.mrb[0].mxu0
        %v3490 = vadd.f32 0.0, %v3489
        %v3491 = vpop.f32.mrb[0].mxu0
        %v3492 = vpop.f32.mrb[0].mxu0
        %v3493 = vadd.f32 0.0, %v3492
        %v3494 = vpop.f32.mrb[0].mxu0
        %3495 = vdwg.mxu0
        %v3496 = vadd.f32 %v3335, %v3490
        %v3497 = vadd.f32 %v3336, %v3493
        %s3498 = scalar_lea.vmem [#allocation10], 64
        %v3499 = vld [vmem:[%s3498] sm:$0xf]
        %v3500 = vld [vmem:[%s3498 + $0x4] sm:$0xf]
        %v3503 = vunpack.c.l.b16 %v3499
        %v3504 = vunpack.c.l.b16 %v3500
        %v3505 = vpack.c.b16 %v3504, %v3503
        %v3507 = vsel %vm2222, %v3505, 0
        %3509 = vmatprep.subr.bf16.mxu0 0
        %3510 = vmatpush1.bf16.msra.mxu0 %v2214
        %3511 = vmatprep.subr.bf16.mxu0 0
        %3512 = vmatpush1.bf16.msra.mxu0 0
        %3513 = vmatprep.subr.bf16.mxu0 0
        %3514 = vmatpush1.bf16.msra.mxu0 0
        %3515 = vmatprep.subr.bf16.mxu0 0
        %3516 = vmatpush1.bf16.msra.mxu0 0
        %3517 = vmatprep.subr.bf16.mxu0 0
        %3518 = vmatpush1.bf16.msra.mxu0 0
        %3519 = vmatprep.subr.bf16.mxu0 0
        %3520 = vmatpush1.bf16.msra.mxu0 0
        %3521 = vmatprep.subr.bf16.mxu0 0
        %3522 = vmatpush1.bf16.msra.mxu0 0
        %3523 = vmatprep.subr.bf16.mxu0 0
        %3524 = vmatpush1.bf16.msra.mxu0 0
        %3525 = vmatprep.subr.bf16.mxu0 0
        %3526 = vmatpush1.bf16.msra.mxu0 0
        %3527 = vmatprep.subr.bf16.mxu0 0
        %3528 = vmatpush1.bf16.msra.mxu0 0
        %3529 = vmatprep.subr.bf16.mxu0 0
        %3530 = vmatpush1.bf16.msra.mxu0 0
        %3531 = vmatprep.subr.bf16.mxu0 0
        %3532 = vmatpush1.bf16.msra.mxu0 0
        %3533 = vmatprep.subr.bf16.mxu0 0
        %3534 = vmatpush1.bf16.msra.mxu0 0
        %3535 = vmatprep.subr.bf16.mxu0 0
        %3536 = vmatpush1.bf16.msra.mxu0 0
        %3537 = vmatprep.subr.bf16.mxu0 0
        %3538 = vmatpush1.bf16.msra.mxu0 0
        %3539 = vmatprep.subr.bf16.mxu0 0
        %3540 = vmatpush1.bf16.msra.mxu0 0
        %3541 = vmatprep.mubr.bf16.mxu0 0
        %3542 = vmatmul.mubr.bf16.gmra.mrb[0].mxu0 %v3507
        %v3543 = vpop.f32.mrb[0].mxu0
        %v3544 = vadd.f32 0.0, %v3543
        %v3545 = vpop.f32.mrb[0].mxu0
        %v3546 = vpop.f32.mrb[0].mxu0
        %v3547 = vadd.f32 0.0, %v3546
        %v3548 = vpop.f32.mrb[0].mxu0
        %3549 = vdwg.mxu0
        %v3550 = vpack.c.bf16 %v3547, %v3544
        %s3551 = scalar_lea.vmem [#allocation11], 512
        %v3552 = vld [vmem:[%s3551] sm:$0xf]
        %v3553 = vld [vmem:[%s3551 + $0x4] sm:$0xf]
        %v3554 = vld [vmem:[%s3551 + $0x8] sm:$0xf]
        %v3555 = vld [vmem:[%s3551 + $0xc] sm:$0xf]
        %v3556 = vld [vmem:[%s3551 + $0x10] sm:$0xf]
        %v3557 = vld [vmem:[%s3551 + $0x14] sm:$0xf]
        %v3558 = vld [vmem:[%s3551 + $0x18] sm:$0xf]
        %v3559 = vld [vmem:[%s3551 + $0x1c] sm:$0xf]
        %v3560 = vld [vmem:[%s3551 + $0x20] sm:$0xf]
        %v3561 = vld [vmem:[%s3551 + $0x24] sm:$0xf]
        %v3562 = vld [vmem:[%s3551 + $0x28] sm:$0xf]
        %v3563 = vld [vmem:[%s3551 + $0x2c] sm:$0xf]
        %v3564 = vld [vmem:[%s3551 + $0x30] sm:$0xf]
        %v3565 = vld [vmem:[%s3551 + $0x34] sm:$0xf]
        %v3566 = vld [vmem:[%s3551 + $0x38] sm:$0xf]
        %v3567 = vld [vmem:[%s3551 + $0x3c] sm:$0xf]
        %v3584 = vunpack.c.l.b16 %v3552
        %v3585 = vunpack.c.l.b16 %v3553
        %v3586 = vunpack.c.l.b16 %v3554
        %v3587 = vunpack.c.l.b16 %v3555
        %v3588 = vunpack.c.l.b16 %v3556
        %v3589 = vunpack.c.l.b16 %v3557
        %v3590 = vunpack.c.l.b16 %v3558
        %v3591 = vunpack.c.l.b16 %v3559
        %v3592 = vunpack.c.l.b16 %v3560
        %v3593 = vunpack.c.l.b16 %v3561
        %v3594 = vunpack.c.l.b16 %v3562
        %v3595 = vunpack.c.l.b16 %v3563
        %v3596 = vunpack.c.l.b16 %v3564
        %v3597 = vunpack.c.l.b16 %v3565
        %v3598 = vunpack.c.l.b16 %v3566
        %v3599 = vunpack.c.l.b16 %v3567
        %v3600 = vpack.c.b16 %v3585, %v3584
        %v3601 = vpack.c.b16 %v3587, %v3586
        %v3602 = vpack.c.b16 %v3589, %v3588
        %v3603 = vpack.c.b16 %v3591, %v3590
        %v3604 = vpack.c.b16 %v3593, %v3592
        %v3605 = vpack.c.b16 %v3595, %v3594
        %v3606 = vpack.c.b16 %v3597, %v3596
        %v3607 = vpack.c.b16 %v3599, %v3598
        %3616 = vmatprep.subr.bf16.mxu0 0
        %3617 = vmatpush1.bf16.msra.mxu0 %v3600
        %3618 = vmatprep.subr.bf16.mxu0 0
        %3619 = vmatpush1.bf16.msra.mxu0 %v3601
        %3620 = vmatprep.subr.bf16.mxu0 0
        %3621 = vmatpush1.bf16.msra.mxu0 %v3602
        %3622 = vmatprep.subr.bf16.mxu0 0
        %3623 = vmatpush1.bf16.msra.mxu0 %v3603
        %3624 = vmatprep.subr.bf16.mxu0 0
        %3625 = vmatpush1.bf16.msra.mxu0 %v3604
        %3626 = vmatprep.subr.bf16.mxu0 0
        %3627 = vmatpush1.bf16.msra.mxu0 %v3605
        %3628 = vmatprep.subr.bf16.mxu0 0
        %3629 = vmatpush1.bf16.msra.mxu0 %v3606
        %3630 = vmatprep.subr.bf16.mxu0 0
        %3631 = vmatpush1.bf16.msra.mxu0 %v3607
        %3632 = vmatprep.subr.bf16.mxu0 0
        %3633 = vmatpush1.bf16.msra.mxu0 0
        %3634 = vmatprep.subr.bf16.mxu0 0
        %3635 = vmatpush1.bf16.msra.mxu0 0
        %3636 = vmatprep.subr.bf16.mxu0 0
        %3637 = vmatpush1.bf16.msra.mxu0 0
        %3638 = vmatprep.subr.bf16.mxu0 0
        %3639 = vmatpush1.bf16.msra.mxu0 0
        %3640 = vmatprep.subr.bf16.mxu0 0
        %3641 = vmatpush1.bf16.msra.mxu0 0
        %3642 = vmatprep.subr.bf16.mxu0 0
        %3643 = vmatpush1.bf16.msra.mxu0 0
        %3644 = vmatprep.subr.bf16.mxu0 0
        %3645 = vmatpush1.bf16.msra.mxu0 0
        %3646 = vmatprep.subr.bf16.mxu0 0
        %3647 = vmatpush1.bf16.msra.mxu0 0
        %3648 = vmatprep.mubr.bf16.mxu0 0
        %3649 = vmatmul.mubr.bf16.gmra.mrb[0].mxu0 %v3550
        %v3650 = vpop.f32.mrb[0].mxu0
        %v3651 = vadd.f32 0.0, %v3650
        %v3652 = vpop.f32.mrb[0].mxu0
        %v3653 = vpop.f32.mrb[0].mxu0
        %v3654 = vadd.f32 0.0, %v3653
        %v3655 = vpop.f32.mrb[0].mxu0
        %3656 = vdwg.mxu0
        %v3657 = vadd.f32 %v3496, %v3651
        %v3658 = vadd.f32 %v3497, %v3654
        %v3659 = vld [vmem:[%s6 + $0x6] sm:$0x1]
        %v3660 = vld [vmem:[%s6 + $0x7] sm:$0x1]
        %v3661 = vld [vmem:[%s6 + $0x8] sm:$0x1]
        %v3662 = vlaneseq
        %v3663 = vshrl.u32 %v3662, 7
        %v3664 = vsub.s32 0, %v3663
        %v3665 = vrot.slane %v3659, %v3664
        %v3666 = vadd.f32 %v3657, %v3665
        %v3667 = vadd.f32 %v3658, %v3665
        %3668 = vadd.xlane.f32.xlu0 %v3666
        %v3669 = vpop.xlane.xlu0 %3668
        %3670 = vadd.xlane.f32.xlu0 %v3667
        %v3671 = vpop.xlane.xlu0 %3670
        %v3672 = vmul.f32 %v3669, 0.03125
        %v3673 = vmul.f32 %v3671, 0.03125
        %v3674 = vmul.f32 %v3666, %v3666
        %v3675 = vmul.f32 %v3667, %v3667
        %3676 = vadd.xlane.f32.xlu0 %v3674
        %v3677 = vpop.xlane.xlu0 %3676
        %3678 = vadd.xlane.f32.xlu0 %v3675
        %v3679 = vpop.xlane.xlu0 %3678
        %v3680 = vmul.f32 %v3677, 0.03125
        %v3681 = vmul.f32 %v3679, 0.03125
        %v3682 = vmul.f32 %v3672, %v3672
        %v3683 = vmul.f32 %v3673, %v3673
        %v3684 = vsub.f32 %v3680, %v3682
        %v3685 = vsub.f32 %v3681, %v3683
        %v3686 = vadd.f32 %v3684, 1e-06
        %v3687 = vadd.f32 %v3685, 1e-06
        %v3688 = vrsqrt.pop %v3686
        %v3689 = vrsqrt.pop %v3687
        %v3690 = vsub.f32 %v3666, %v3672
        %v3691 = vsub.f32 %v3667, %v3673
        %v3692 = vmul.f32 %v3690, %v3688
        %v3693 = vmul.f32 %v3691, %v3689
        %v3694 = vlaneseq
        %v3695 = vshrl.u32 %v3694, 7
        %v3696 = vsub.s32 0, %v3695
        %v3697 = vrot.slane %v3660, %v3696
        %v3698 = vmul.f32 %v3697, %v3692
        %v3699 = vmul.f32 %v3697, %v3693
        %v3700 = vlaneseq
        %v3701 = vshrl.u32 %v3700, 7
        %v3702 = vsub.s32 0, %v3701
        %v3703 = vrot.slane %v3661, %v3702
        %v3704 = vadd.f32 %v3698, %v3703
        %v3705 = vadd.f32 %v3699, %v3703
        %v3706 = vmul.f32 %v3704, 0.5
        %v3707 = vmul.f32 %v3705, 0.5
        %v3708 = vmul.f32 %v3704, 0.70710677
        %v3709 = vmul.f32 %v3705, 0.70710677
        %v3710 = verf.f32.pop %v3708
        %v3711 = verf.f32.pop %v3709
        %v3712 = vadd.f32 %v3710, 1.0
        %v3713 = vadd.f32 %v3711, 1.0
        %v3714 = vmul.f32 %v3706, %v3712
        %v3715 = vmul.f32 %v3707, %v3713
        %3716 = vst [vmem:[%s369] sm:$0xff] %v3714
        %3717 = vst [vmem:[%s369 + $0x8] sm:$0xff] %v3715
        %s3718 = sand.u32 %s187, 1
        %s3719 = scalar_lea.sflag [#allocation4], %s3718
        %s3720 = sand.u32 %s187, 1
        %s3721 = smul.addr %s3720, 16
        %s3722 = scalar_lea.vmem [#allocation13], %s3721
        // Predicated region
        $region73: #{tpu_custom_call.1} parent=47 // pred_check
          %p3723 = pneg %p197
        $region74: #{tpu_custom_call.1} parent=47 // pred_check_branch
          %3725 = sbr.rel (%p3723) target = $region76
        $region75: #{tpu_custom_call.1} parent=47 // pred_region
          %s3726 = smul.u32 2, %s27
          %s3728 = ssub.s32 256, 256
          %3729 = vsyncadd %s3719, %s3728
          %s3730 = smul.addr %s3726, 128
          %s3731 = scalar_lea.hbm %s7, %s3730
          %s3732 = sshll.u32 %s3722, 4
          %s3733 = int_to_ptr.vmem [resolvable:$true] %s3732
          %3738 = dma.vmem_to_hbm [thread:$0]  %s3733, 256, %s3731, %s3719, 128, 128, 8
        $region76: #{tpu_custom_call.1} parent=47 // pred_fallthru
          _
      $region48: #{tpu_custom_call.1} parent=5 // pred_fallthru
        _
      %p3739 = scmp.le.s32.totalorder 2, %s22
      // Predicated region
      $region77: #{tpu_custom_call.1} parent=5 // pred_check
        %p3740 = pneg %p3739
      $region78: #{tpu_custom_call.1} parent=5 // pred_check_branch
        %3742 = sbr.rel (%p3740) target = $region80
      $region79: #{tpu_custom_call.1} parent=5 // pred_region
        %s3743 = ssub.s32 %s22, 2
        // Predicated region
        $region81: #{tpu_custom_call.1} parent=79 // pred_check
          %p3744 = pneg %p203
        $region82: #{tpu_custom_call.1} parent=79 // pred_check_branch
          %3746 = sbr.rel (%p3744) target = $region84
        $region83: #{tpu_custom_call.1} parent=79 // pred_region
          %s3747 = sand.u32 %s188, 1
          %s3748 = scalar_lea.sflag [#allocation4], %s3747
          %s3749 = sand.u32 %s188, 1
          %s3750 = smul.addr %s3749, 16
          %s3751 = scalar_lea.vmem [#allocation13], %s3750
          %3752 = dma.done %s3748, 256
        $region84: #{tpu_custom_call.1} parent=79 // pred_fallthru
          _
      $region80: #{tpu_custom_call.1} parent=5 // pred_fallthru
        _
    $region6: #{tpu_custom_call.1} parent=1 // loop_footer
      %s26 = sadd.s32 1, %s22
    $region7: #{tpu_custom_call.1} parent=1 // loop_footer_branch
      %21 = sbr.rel target = $region3
    $region8: #{tpu_custom_call.1} parent=1 // loop_exit
      _
    %3753 = vsyncpa [#allocation3], 1
    %s3754 = scalar_lea.sflag [#allocation3], 1
    %3755 = vsyncpa %s3754, 1
    %3756 = vsyncpa [#allocation6], 1
    %3757 = vsyncpa [#allocation9], 1
    %3758 = vsyncpa [#allocation12], 1
    %3759 = vsyncpa [#allocation4], 1
    %s3760 = scalar_lea.sflag [#allocation4], 1
    %3761 = vsyncpa %s3760, 1

</llo_original>
